<compile_context>
chip_gen: v7x
topology: tpu7x:2x2x1
jax: 0.10.0
libtpu: 0.0.40
codegen_flags: <defaults>
</compile_context>

<pallas_src>
import functools

import jax
import jax.numpy as jnp
import numpy as np
from jax.experimental import pallas as pl
from jax.experimental.pallas import tpu as pltpu


# ----------------------------------------------------------------------------- tiling config

def _tpu_vmem_bytes():
    try:
        info = pltpu.get_tpu_info()
        return int(getattr(info, "vmem_capacity_bytes", 0) or 0)
    except Exception:
        return 0


_VMEM_BYTES = _tpu_vmem_bytes()
_BIG_VMEM = _VMEM_BYTES >= (100 << 20)          # v5e/v6e: 128 MiB per core; v7x: 64 MiB
_TN_CAP = 2048 if _BIG_VMEM else 1024           # live VMEM per tile ~11 MB @ TN=2048
_VMEM_LIMIT = (64 << 20) if _BIG_VMEM else (40 << 20)
_SPLIT = 2                                      # split-reduction over points (dual-TC on v7x)
_ALIGN = 128


def _plan(n, cap, split):
    """Pad n to a multiple of split*128 and pick (tn, tiles_per_split, n_pad).

    n_pad = split * tiles * tn, tn a multiple of 128 and <= cap.
    """
    unit = split * _ALIGN
    n_pad = ((n + unit - 1) // unit) * unit
    per_split = n_pad // split
    tn = _ALIGN
    for cand in range(_ALIGN, min(cap, per_split) + 1, _ALIGN):
        if per_split % cand == 0:
            tn = cand
    tiles = per_split // tn
    return tn, tiles, n_pad


# ----------------------------------------------------------------------------- kernels

def _conv3_max_kernel(x_ref, w1_ref, b1_ref, w2_ref, b2_ref, w3_ref, gmax_ref,
                      *, n_valid, tn, tiles):
    # x: (TN, 8) bf16; w1 (8,64) (shared or per-batch), w2 (64,128), w3 (128,1024) bf16;
    # conv3 bias / relu are hoisted past the max (applied in the wrapper).
    h = jnp.dot(x_ref[...], w1_ref[...], preferred_element_type=jnp.float32) + b1_ref[...]
    h = jnp.maximum(h, 0.0).astype(jnp.bfloat16)
    h = jnp.dot(h, w2_ref[...], preferred_element_type=jnp.float32) + b2_ref[...]
    h = jnp.maximum(h, 0.0).astype(jnp.bfloat16)
    h = jnp.dot(h, w3_ref[...], preferred_element_type=jnp.float32)      # raw conv3 (TN,1024) f32

    if n_valid is not None:
        # mask padded points out of the max
        base = (pl.program_id(1) * tiles + pl.program_id(2)) * tn
        row = base + jax.lax.broadcasted_iota(jnp.int32, (tn, 1), 0)
        h = jnp.where(row < n_valid, h, -jnp.inf)

    tile_max = jnp.max(h, axis=0, keepdims=True)                          # (1, 1024)

    @pl.when(pl.program_id(2) == 0)
    def _():
        gmax_ref[...] = jnp.full_like(gmax_ref, -jnp.inf)

    gmax_ref[...] = jnp.maximum(gmax_ref[...], tile_max)


def _cls_head_kernel(x_ref, w1_ref, fb1_ref, bias1_ref, wp_ref, w2_ref, b2_ref,
                     w3_ref, b3_ref, w4t_ref, b4t_ref, o_ref):
    # Recompute pointfeat (K=8 matmul, hides under the wider MXU work) instead of a
    # (B, N, 64) HBM round-trip.  bias1 (1,512) f32 already contains g_feat @ W_g + b1.
    h = jnp.dot(x_ref[...], w1_ref[...], preferred_element_type=jnp.float32) + fb1_ref[...]
    h = jnp.maximum(h, 0.0).astype(jnp.bfloat16)                          # pointfeat (TN, 64)
    h = jnp.dot(h, wp_ref[...], preferred_element_type=jnp.float32) + bias1_ref[...]
    h = jnp.maximum(h, 0.0).astype(jnp.bfloat16)                          # (TN, 512)
    h = jnp.dot(h, w2_ref[...], preferred_element_type=jnp.float32) + b2_ref[...]
    h = jnp.maximum(h, 0.0).astype(jnp.bfloat16)                          # (TN, 256)
    h = jnp.dot(h, w3_ref[...], preferred_element_type=jnp.float32) + b3_ref[...]
    h = jnp.maximum(h, 0.0).astype(jnp.bfloat16)                          # (TN, 128)
    # final layer transposed: (Kpad,128) x (TN,128)^T -> (Kpad, TN)  (lane-dense output)
    logits = jax.lax.dot_general(w4t_ref[...], h, (((1,), (1,)), ((), ())),
                                 preferred_element_type=jnp.float32) + b4t_ref[...]
    # fused log_softmax over the (padded) class axis; -inf bias rows contribute exp()=0.
    m = jnp.max(logits, axis=0, keepdims=True)
    s = logits - m
    lse = jnp.log(jnp.sum(jnp.exp(s), axis=0, keepdims=True))
    o_ref[...] = (s - lse).astype(o_ref.dtype)


# ----------------------------------------------------------------------------- pallas wrappers

def conv3_max(x, w1, b1, w2, b2, w3, *, tn, tiles, split, n_valid):
    """Fused 3->64->128->1024 conv stack + max over points.

    x: (B, n_pad, 8) bf16.  w1 is either shared (8, 64) or per-batch (B, 8, 64) bf16
    (trans folded in).  Returns the raw (pre-bias3) channel max, shape (B, 1024) f32.
    """
    B, n_pad, CK = x.shape
    C1 = w1.shape[-1]
    C2, C3 = w2.shape[1], w3.shape[1]
    per_batch_w1 = (w1.ndim == 3)
    w1_spec = (pl.BlockSpec((None, CK, C1), lambda b, s, t: (b, 0, 0)) if per_batch_w1
               else pl.BlockSpec((CK, C1), lambda b, s, t: (0, 0)))
    grid = (B, split, tiles)
    gmax = pl.pallas_call(
        functools.partial(_conv3_max_kernel, n_valid=n_valid, tn=tn, tiles=tiles),
        out_shape=jax.ShapeDtypeStruct((split, B, 1, C3), jnp.float32),
        grid=grid,
        in_specs=[
            pl.BlockSpec((None, tn, CK), lambda b, s, t: (b, s * tiles + t, 0)),
            w1_spec,
            pl.BlockSpec((1, C1), lambda b, s, t: (0, 0)),
            pl.BlockSpec((C1, C2), lambda b, s, t: (0, 0)),
            pl.BlockSpec((1, C2), lambda b, s, t: (0, 0)),
            pl.BlockSpec((C2, C3), lambda b, s, t: (0, 0)),
        ],
        out_specs=pl.BlockSpec((None, None, 1, C3), lambda b, s, t: (s, b, 0, 0)),
        compiler_params=pltpu.CompilerParams(
            dimension_semantics=("parallel", "parallel", "arbitrary"),
            vmem_limit_bytes=_VMEM_LIMIT,
        ),
    )(x, w1, b1, w2, b2, w3)
    # combine the split-reduction partial maxima
    return jnp.max(gmax, axis=0)[:, 0, :]                                 # (B, C3)


def cls_head(x, w1b, fb1, bias1, wp, w2, b2, w3, b3, w4t, b4t, *, tn):
    """Segmentation head.  x: (B, n_pad, 8) bf16, w1b: (B, 8, 64) bf16, bias1: (B, 1, 512) f32.

    Returns log-softmax scores, transposed + class-padded: (B, Kpad, n_pad) f32.
    """
    B, n_pad, CK = x.shape
    C1 = w1b.shape[2]
    Cp, C2, C3 = wp.shape[1], w2.shape[1], w3.shape[1]
    Kpad = w4t.shape[0]
    grid = (B, n_pad // tn)
    return pl.pallas_call(
        _cls_head_kernel,
        out_shape=jax.ShapeDtypeStruct((B, Kpad, n_pad), jnp.float32),
        grid=grid,
        in_specs=[
            pl.BlockSpec((None, tn, CK), lambda b, t: (b, t, 0)),
            pl.BlockSpec((None, CK, C1), lambda b, t: (b, 0, 0)),
            pl.BlockSpec((1, C1), lambda b, t: (0, 0)),
            pl.BlockSpec((None, 1, Cp), lambda b, t: (b, 0, 0)),
            pl.BlockSpec((C1, Cp), lambda b, t: (0, 0)),
            pl.BlockSpec((Cp, C2), lambda b, t: (0, 0)),
            pl.BlockSpec((1, C2), lambda b, t: (0, 0)),
            pl.BlockSpec((C2, C3), lambda b, t: (0, 0)),
            pl.BlockSpec((1, C3), lambda b, t: (0, 0)),
            pl.BlockSpec((Kpad, C3), lambda b, t: (0, 0)),
            pl.BlockSpec((Kpad, 1), lambda b, t: (0, 0)),
        ],
        out_specs=pl.BlockSpec((None, Kpad, tn), lambda b, t: (b, 0, t)),
        compiler_params=pltpu.CompilerParams(
            dimension_semantics=("parallel", "parallel"),
            vmem_limit_bytes=_VMEM_LIMIT,
        ),
    )(x, w1b, fb1, bias1, wp, w2, b2, w3, b3, w4t, b4t)


# ----------------------------------------------------------------------------- params

def init_params(key, k=2):
    keys = iter(jax.random.split(key, 256))

    def conv(cin, cout):  # torch layout: weight (cout, cin), bias (cout,)
        return dict(
            w=0.1 * jax.random.normal(next(keys), (cout, cin), jnp.float32),
            b=0.1 * jax.random.normal(next(keys), (cout,), jnp.float32),
        )

    def bn(c):
        return dict(
            gamma=1.0 + 0.1 * jax.random.normal(next(keys), (c,), jnp.float32),
            beta=0.1 * jax.random.normal(next(keys), (c,), jnp.float32),
            mean=0.1 * jax.random.normal(next(keys), (c,), jnp.float32),
            var=1.0 + 0.1 * jax.random.uniform(next(keys), (c,), jnp.float32),
        )

    p = {}
    p["stn"] = dict(
        conv=[(conv(3, 64), bn(64)), (conv(64, 128), bn(128)), (conv(128, 1024), bn(1024))],
        fc=[(conv(1024, 512), bn(512)), (conv(512, 256), bn(256)), (conv(256, 9), None)],
    )
    p["feat"] = dict(
        conv=[(conv(3, 64), bn(64)), (conv(64, 128), bn(128)), (conv(128, 1024), bn(1024))]
    )
    p["cls"] = dict(
        conv=[
            (conv(1088, 512), bn(512)),
            (conv(512, 256), bn(256)),
            (conv(256, 128), bn(128)),
            (conv(128, k), None),
        ]
    )
    return p


def fold(convd, bnd, eps=1e-5):
    """Fold inference-mode BatchNorm into the preceding 1x1 conv / linear."""
    w, b = convd["w"], convd["b"]  # (cout, cin), (cout,)
    if bnd is not None:
        s = bnd["gamma"] / jnp.sqrt(bnd["var"] + eps)
        w = w * s[:, None]
        b = (b - bnd["mean"]) * s + bnd["beta"]
    return (w.T, b)  # (cin, cout), (cout,)


def prepare_params(p):
    """BN-fold, transpose, split the 1088-wide cls conv1, pad Cin=3 -> 8, cast to bf16."""
    bf16 = jnp.bfloat16

    def pad8(w):  # (3, cout) -> (8, cout), zero rows for the padded input channels
        return jnp.pad(w, ((0, 8 - w.shape[0]), (0, 0)))

    out = {}

    (w1, b1), (w2, b2), (w3, b3) = [fold(c, g) for (c, g) in p["stn"]["conv"]]
    out["stn_conv"] = dict(
        w1=pad8(w1).astype(bf16), b1=b1.reshape(1, -1),
        w2=w2.astype(bf16), b2=b2.reshape(1, -1),
        w3=w3.astype(bf16), b3=b3.reshape(1, -1),   # b3 applied in wrapper (hoisted past max)
    )
    out["stn_fc"] = [fold(c, g) + (r,) for (c, g), r in zip(p["stn"]["fc"], [True, True, False])]

    (fw1, fb1), (fw2, fb2), (fw3, fb3) = [fold(c, g) for (c, g) in p["feat"]["conv"]]
    out["feat_w1"] = fw1                      # (3, 64) f32; trans is folded in at runtime
    out["feat_b1"] = fb1.reshape(1, -1)
    out["feat_conv"] = dict(w2=fw2.astype(bf16), b2=fb2.reshape(1, -1),
                            w3=fw3.astype(bf16), b3=fb3.reshape(1, -1))

    (cw1, cb1), (cw2, cb2), (cw3, cb3), (cw4, cb4) = [fold(c, g) for (c, g) in p["cls"]["conv"]]
    K = cw4.shape[1]
    Kpad = ((K + 7) // 8) * 8
    out["num_classes"] = K
    # torch concat order is [global(1024), pointfeat(64)] along channels.
    out["cls_wg"] = cw1[:1024].astype(bf16)   # (1024, 512) -> folded into a per-batch bias
    out["cls_wp"] = cw1[1024:].astype(bf16)   # (64, 512)   -> applied to pointfeat in-kernel
    out["cls_b1"] = cb1                       # (512,) f32
    # final layer stored transposed & class-padded: zero weight rows + -inf bias rows
    w4t = jnp.zeros((Kpad, cw4.shape[0]), jnp.float32).at[:K].set(cw4.T)
    b4t = jnp.full((Kpad, 1), -jnp.inf, jnp.float32).at[:K, 0].set(cb4)
    out["cls"] = dict(w2=cw2.astype(bf16), b2=cb2.reshape(1, -1),
                      w3=cw3.astype(bf16), b3=cb3.reshape(1, -1),
                      w4t=w4t.astype(bf16), b4t=b4t,
                      w4=cw4.astype(bf16), b4=cb4.reshape(1, -1))   # plain copies for the ref
    return out


# ----------------------------------------------------------------------------- forward

def forward(x_bcn, p):
    """PointNetDenseCls.forward.  x_bcn: (B, 3, N) float32 (PyTorch NCW layout)."""
    B, _, N = x_bcn.shape
    f32, bf16 = jnp.float32, jnp.bfloat16

    tn, tiles, n_pad = _plan(N, _TN_CAP, _SPLIT)
    n_valid = N if n_pad != N else None

    x = jnp.transpose(x_bcn, (0, 2, 1))                                  # (B, N, 3)
    xp = jnp.pad(x, ((0, 0), (0, n_pad - N), (0, 5))).astype(bf16)       # (B, n_pad, 8) bf16

    # ---- STN3d: fused conv stack + max-over-points (kernel 1) ----
    sc = p["stn_conv"]
    g_raw = conv3_max(xp, sc["w1"], sc["b1"], sc["w2"], sc["b2"], sc["w3"],
                      tn=tn, tiles=tiles, split=_SPLIT, n_valid=n_valid)  # (B, 1024)
    g = jnp.maximum(g_raw + sc["b3"], 0.0)                               # hoisted bias + relu
    # tiny FC stack on (B, 1024): plain JAX (launch overhead would dominate a kernel)
    for (w, b, relu) in p["stn_fc"]:
        g = g @ w + b
        if relu:
            g = jnp.maximum(g, 0.0)
    trans = g.reshape(B, 3, 3) + jnp.eye(3, dtype=f32)[None]             # (B, 3, 3)

    # ---- PointNetfeat: fold trans into conv1 weight (replaces torch.bmm), kernel 2 ----
    w1b = jnp.einsum("bij,jk->bik", trans, p["feat_w1"])                 # (B, 3, 64) f32
    w1b = jnp.pad(w1b, ((0, 0), (0, 5), (0, 0))).astype(bf16)            # (B, 8, 64) bf16
    fc = p["feat_conv"]
    gf_raw = conv3_max(xp, w1b, p["feat_b1"], fc["w2"], fc["b2"], fc["w3"],
                       tn=tn, tiles=tiles, split=_SPLIT, n_valid=n_valid)
    g_feat = gf_raw + fc["b3"]                                           # bn3 only (no relu)

    # ---- dense head: global feature folded into a per-batch bias (no 1088 concat) ----
    bias1 = jnp.einsum("bc,cd->bd", g_feat.astype(bf16), p["cls_wg"],
                       preferred_element_type=f32) + p["cls_b1"]          # (B, 512)
    bias1 = bias1[:, None, :]                                             # (B, 1, 512)
    cl = p["cls"]
    scores = cls_head(xp, w1b, p["feat_b1"], bias1, p["cls_wp"],
                      cl["w2"], cl["b2"], cl["w3"], cl["b3"], cl["w4t"], cl["b4t"],
                      tn=tn)                                              # (B, Kpad, n_pad)
    K = p["num_classes"]
    out = jnp.transpose(scores[:, :K, :N], (0, 2, 1))                     # (B, N, K)
    return out, trans, None


# ----------------------------------------------------------------------------- pure-JAX reference
# Mirrors the exact quantization points of the kernels (bf16 operands, f32 accumulation).

def ref_forward(x_bcn, p):
    B, _, N = x_bcn.shape
    f32, bf16 = jnp.float32, jnp.bfloat16

    def mm(a, w):  # bf16 x bf16 -> f32
        return jnp.einsum("...k,kc->...c", a, w, preferred_element_type=f32)

    x = jnp.transpose(x_bcn, (0, 2, 1))
    xp = jnp.pad(x, ((0, 0), (0, 0), (0, 5))).astype(bf16)

    sc = p["stn_conv"]
    h = jnp.maximum(mm(xp, sc["w1"]) + sc["b1"], 0.0).astype(bf16)
    h = jnp.maximum(mm(h, sc["w2"]) + sc["b2"], 0.0).astype(bf16)
    h = jnp.maximum(mm(h, sc["w3"]) + sc["b3"], 0.0)
    g = jnp.max(h, axis=1)                                      # (B, 1024)
    for (w, b, relu) in p["stn_fc"]:
        g = g @ w + b
        if relu:
            g = jnp.maximum(g, 0.0)
    trans = g.reshape(B, 3, 3) + jnp.eye(3, dtype=f32)[None]

    w1b = jnp.einsum("bij,jk->bik", trans, p["feat_w1"])
    w1b = jnp.pad(w1b, ((0, 0), (0, 5), (0, 0))).astype(bf16)
    fc = p["feat_conv"]
    h1 = jnp.maximum(jnp.einsum("bnk,bkc->bnc", xp, w1b, preferred_element_type=f32)
                     + p["feat_b1"], 0.0).astype(bf16)
    pointfeat = h1
    h = jnp.maximum(mm(h1, fc["w2"]) + fc["b2"], 0.0).astype(bf16)
    h = mm(h, fc["w3"]) + fc["b3"]
    gf = jnp.max(h, axis=1)                                     # (B, 1024)

    cl = p["cls"]
    bias1 = jnp.einsum("bc,cd->bd", gf.astype(bf16), p["cls_wg"],
                       preferred_element_type=f32) + p["cls_b1"]
    h = jnp.maximum(mm(pointfeat, p["cls_wp"]) + bias1[:, None, :], 0.0).astype(bf16)
    h = jnp.maximum(mm(h, cl["w2"]) + cl["b2"], 0.0).astype(bf16)
    h = jnp.maximum(mm(h, cl["w3"]) + cl["b3"], 0.0).astype(bf16)
    logits = mm(h, cl["w4"]) + cl["b4"]
    out = jax.nn.log_softmax(logits, axis=-1)
    return out, trans, None


# ----------------------------------------------------------------------------- main

if __name__ == "__main__":
    B, N, K = 2, 128, 2
    key = jax.random.PRNGKey(0)
    kp, kx = jax.random.split(key)

    raw = init_params(kp, k=K)
    params = prepare_params(raw)

    x = jax.random.normal(kx, (B, 3, N), jnp.float32)  # PyTorch-style (B, C, N) input

    fwd = jax.jit(lambda xx: forward(xx, params))
    out, trans, trans_feat = fwd(x)
    jax.block_until_ready((out, trans))

    assert out.shape == (B, N, K)
    assert trans.shape == (B, 3, 3)
    assert trans_feat is None

    ref_out, ref_trans, _ = ref_forward(x, params)
    np.testing.assert_allclose(np.asarray(out), np.asarray(ref_out), atol=5e-3, rtol=5e-3)
    np.testing.assert_allclose(np.asarray(trans), np.asarray(ref_trans), atol=5e-3, rtol=5e-3)

    print("KERNEL_OK")
</pallas_src>

<mosaic_0001>
module attributes {stable_mosaic.version = 11 : i64} {
  func.func @_conv3_max_kernel(%arg0: i32, %arg1: i32, %arg2: i32, %arg3: memref<1x128x8xbf16, #tpu.memory_space<vmem>>, %arg4: memref<8x64xbf16, #tpu.memory_space<vmem>>, %arg5: memref<1x64xf32, #tpu.memory_space<vmem>>, %arg6: memref<64x128xbf16, #tpu.memory_space<vmem>>, %arg7: memref<1x128xf32, #tpu.memory_space<vmem>>, %arg8: memref<128x1024xbf16, #tpu.memory_space<vmem>>, %arg9: memref<1x1x1x1024xf32, #tpu.memory_space<vmem>>) attributes {dimension_semantics = [#tpu.dimension_semantics<parallel>, #tpu.dimension_semantics<parallel>, #tpu.dimension_semantics<arbitrary>], iteration_bounds = array<i64: 2, 2, 1>, scalar_prefetch = 0 : i64, scratch_operands = 0 : i64, tpu.core_type = #tpu.core_type<tc>, window_params = [{transform_indices = @transform_0, window_bounds = array<i64: 1, 128, 8>}, {pipeline_mode = #tpu.pipeline_mode<synchronous>, transform_indices = @transform_1, window_bounds = array<i64: 8, 64>}, {pipeline_mode = #tpu.pipeline_mode<synchronous>, transform_indices = @transform_2, window_bounds = array<i64: 1, 64>}, {pipeline_mode = #tpu.pipeline_mode<synchronous>, transform_indices = @transform_3, window_bounds = array<i64: 64, 128>}, {pipeline_mode = #tpu.pipeline_mode<synchronous>, transform_indices = @transform_4, window_bounds = array<i64: 1, 128>}, {pipeline_mode = #tpu.pipeline_mode<synchronous>, transform_indices = @transform_5, window_bounds = array<i64: 128, 1024>}, {transform_indices = @transform_6, window_bounds = array<i64: 1, 1, 1, 1024>}]} {
    %c0 = arith.constant 0 : index
    %c0_0 = arith.constant 0 : index
    %c0_1 = arith.constant 0 : index
    %0 = vector.load %arg3[%c0, %c0_0, %c0_1] : memref<1x128x8xbf16, #tpu.memory_space<vmem>>, vector<1x128x8xbf16>
    %1 = vector.shape_cast %0 : vector<1x128x8xbf16> to vector<128x8xbf16>
    %c0_2 = arith.constant 0 : index
    %c0_3 = arith.constant 0 : index
    %2 = vector.load %arg4[%c0_2, %c0_3] : memref<8x64xbf16, #tpu.memory_space<vmem>>, vector<8x64xbf16>
    %cst = arith.constant dense<0.000000e+00> : vector<128x64xf32>
    %3 = tpu.matmul %1, %2, %cst {dimension_numbers = #tpu.dot_dimension_numbers<[1], [0], [0], [1], [0, 0, 1, 1], [], []>} : vector<128x8xbf16>, vector<8x64xbf16>, vector<128x64xf32> -> vector<128x64xf32>
    %c0_4 = arith.constant 0 : index
    %c0_5 = arith.constant 0 : index
    %4 = vector.load %arg5[%c0_4, %c0_5] : memref<1x64xf32, #tpu.memory_space<vmem>>, vector<1x64xf32>
    %5 = vector.broadcast %4 : vector<1x64xf32> to vector<128x64xf32>
    %6 = arith.addf %3, %5 : vector<128x64xf32>
    %cst_6 = arith.constant 0.000000e+00 : f32
    %7 = vector.broadcast %cst_6 : f32 to vector<128x64xf32>
    %8 = arith.maximumf %6, %7 : vector<128x64xf32>
    %9 = arith.truncf %8 : vector<128x64xf32> to vector<128x64xbf16>
    %c0_7 = arith.constant 0 : index
    %c0_8 = arith.constant 0 : index
    %10 = vector.load %arg6[%c0_7, %c0_8] : memref<64x128xbf16, #tpu.memory_space<vmem>>, vector<64x128xbf16>
    %cst_9 = arith.constant dense<0.000000e+00> : vector<128x128xf32>
    %11 = tpu.matmul %9, %10, %cst_9 {dimension_numbers = #tpu.dot_dimension_numbers<[1], [0], [0], [1], [0, 0, 1, 1], [], []>} : vector<128x64xbf16>, vector<64x128xbf16>, vector<128x128xf32> -> vector<128x128xf32>
    %c0_10 = arith.constant 0 : index
    %c0_11 = arith.constant 0 : index
    %12 = vector.load %arg7[%c0_10, %c0_11] : memref<1x128xf32, #tpu.memory_space<vmem>>, vector<1x128xf32>
    %13 = vector.broadcast %12 : vector<1x128xf32> to vector<128x128xf32>
    %14 = arith.addf %11, %13 : vector<128x128xf32>
    %cst_12 = arith.constant 0.000000e+00 : f32
    %15 = vector.broadcast %cst_12 : f32 to vector<128x128xf32>
    %16 = arith.maximumf %14, %15 : vector<128x128xf32>
    %17 = arith.truncf %16 : vector<128x128xf32> to vector<128x128xbf16>
    %c0_13 = arith.constant 0 : index
    %c0_14 = arith.constant 0 : index
    %18 = vector.load %arg8[%c0_13, %c0_14] : memref<128x1024xbf16, #tpu.memory_space<vmem>>, vector<128x1024xbf16>
    %cst_15 = arith.constant dense<0.000000e+00> : vector<128x1024xf32>
    %19 = tpu.matmul %17, %18, %cst_15 {dimension_numbers = #tpu.dot_dimension_numbers<[1], [0], [0], [1], [0, 0, 1, 1], [], []>} : vector<128x128xbf16>, vector<128x1024xbf16>, vector<128x1024xf32> -> vector<128x1024xf32>
    %c1_i32 = arith.constant 1 : i32
    %20 = arith.muli %arg1, %c1_i32 : i32
    %21 = arith.addi %20, %arg2 : i32
    %c128_i32 = arith.constant 128 : i32
    %22 = arith.muli %21, %c128_i32 : i32
    %23 = tpu.iota {dimensions = array<i32: 0>} : vector<128x1xi32>
    %24 = vector.broadcast %22 : i32 to vector<128x1xi32>
    %25 = arith.addi %24, %23 : vector<128x1xi32>
    %c128_i32_16 = arith.constant 128 : i32
    %26 = vector.broadcast %c128_i32_16 : i32 to vector<128x1xi32>
    %27 = arith.cmpi slt, %25, %26 : vector<128x1xi32>
    %cst_17 = arith.constant 0xFF800000 : f32
    %28 = vector.shape_cast %27 : vector<128x1xi1> to vector<128x1xi1>
    %29 = vector.broadcast %28 : vector<128x1xi1> to vector<128x1024xi1>
    %30 = vector.broadcast %cst_17 : f32 to vector<128x1024xf32>
    %31 = arith.select %29, %19, %30 : vector<128x1024xi1>, vector<128x1024xf32>
    %cst_18 = arith.constant dense<0xFF800000> : vector<1024xf32>
    %32 = vector.multi_reduction <maximumf>, %31, %cst_18 [0] : vector<128x1024xf32> to vector<1024xf32>
    %33 = vector.shape_cast %32 : vector<1024xf32> to vector<1x1024xf32>
    %c0_i32 = arith.constant 0 : i32
    %34 = arith.cmpi eq, %arg2, %c0_i32 : i32
    %35 = arith.extui %34 : i1 to i32
    %c0_i32_19 = arith.constant 0 : i32
    %36 = arith.cmpi ne, %35, %c0_i32_19 : i32
    scf.if %36 {
      %cst_28 = arith.constant 0xFF800000 : f32
      %43 = vector.broadcast %cst_28 : f32 to vector<1x1024xf32>
      %c0_29 = arith.constant 0 : index
      %c0_30 = arith.constant 0 : index
      %c0_31 = arith.constant 0 : index
      %c0_32 = arith.constant 0 : index
      %44 = vector.load %arg9[%c0_29, %c0_30, %c0_31, %c0_32] : memref<1x1x1x1024xf32, #tpu.memory_space<vmem>>, vector<1x1x1x1024xf32>
      %45 = vector.shape_cast %44 : vector<1x1x1x1024xf32> to vector<1x1024xf32>
      %46 = vector.shape_cast %43 : vector<1x1024xf32> to vector<1x1x1x1024xf32>
      tpu.vector_store %arg9[%c0_29, %c0_30, %c0_31, %c0_32], %46 {strides = array<i32>} : memref<1x1x1x1024xf32, #tpu.memory_space<vmem>>, vector<1x1x1x1024xf32>,
    } else {
    }
    %c0_20 = arith.constant 0 : index
    %c0_21 = arith.constant 0 : index
    %c0_22 = arith.constant 0 : index
    %c0_23 = arith.constant 0 : index
    %37 = vector.load %arg9[%c0_20, %c0_21, %c0_22, %c0_23] : memref<1x1x1x1024xf32, #tpu.memory_space<vmem>>, vector<1x1x1x1024xf32>
    %38 = vector.shape_cast %37 : vector<1x1x1x1024xf32> to vector<1x1024xf32>
    %39 = arith.maximumf %38, %33 : vector<1x1024xf32>
    %c0_24 = arith.constant 0 : index
    %c0_25 = arith.constant 0 : index
    %c0_26 = arith.constant 0 : index
    %c0_27 = arith.constant 0 : index
    %40 = vector.load %arg9[%c0_24, %c0_25, %c0_26, %c0_27] : memref<1x1x1x1024xf32, #tpu.memory_space<vmem>>, vector<1x1x1x1024xf32>
    %41 = vector.shape_cast %40 : vector<1x1x1x1024xf32> to vector<1x1024xf32>
    %42 = vector.shape_cast %39 : vector<1x1024xf32> to vector<1x1x1x1024xf32>
    tpu.vector_store %arg9[%c0_24, %c0_25, %c0_26, %c0_27], %42 {strides = array<i32>} : memref<1x1x1x1024xf32, #tpu.memory_space<vmem>>, vector<1x1x1x1024xf32>,
    return
  }
  func.func @transform_0(%arg0: i32, %arg1: i32, %arg2: i32) -> (i32, i32, i32) {
    %c1_i32 = arith.constant 1 : i32
    %0 = arith.muli %arg1, %c1_i32 : i32
    %1 = arith.addi %0, %arg2 : i32
    %c0_i32 = arith.constant 0 : i32
    %c0_i32_0 = arith.constant 0 : i32
    return %arg0, %1, %c0_i32 : i32, i32, i32
  }
  func.func @transform_1(%arg0: i32, %arg1: i32, %arg2: i32) -> (i32, i32) {
    %c0_i32 = arith.constant 0 : i32
    %c0_i32_0 = arith.constant 0 : i32
    %c0_i32_1 = arith.constant 0 : i32
    return %c0_i32, %c0_i32_0 : i32, i32
  }
  func.func @transform_2(%arg0: i32, %arg1: i32, %arg2: i32) -> (i32, i32) {
    %c0_i32 = arith.constant 0 : i32
    %c0_i32_0 = arith.constant 0 : i32
    %c0_i32_1 = arith.constant 0 : i32
    return %c0_i32, %c0_i32_0 : i32, i32
  }
  func.func @transform_3(%arg0: i32, %arg1: i32, %arg2: i32) -> (i32, i32) {
    %c0_i32 = arith.constant 0 : i32
    %c0_i32_0 = arith.constant 0 : i32
    %c0_i32_1 = arith.constant 0 : i32
    return %c0_i32, %c0_i32_0 : i32, i32
  }
  func.func @transform_4(%arg0: i32, %arg1: i32, %arg2: i32) -> (i32, i32) {
    %c0_i32 = arith.constant 0 : i32
    %c0_i32_0 = arith.constant 0 : i32
    %c0_i32_1 = arith.constant 0 : i32
    return %c0_i32, %c0_i32_0 : i32, i32
  }
  func.func @transform_5(%arg0: i32, %arg1: i32, %arg2: i32) -> (i32, i32) {
    %c0_i32 = arith.constant 0 : i32
    %c0_i32_0 = arith.constant 0 : i32
    %c0_i32_1 = arith.constant 0 : i32
    return %c0_i32, %c0_i32_0 : i32, i32
  }
  func.func @transform_6(%arg0: i32, %arg1: i32, %arg2: i32) -> (i32, i32, i32, i32) {
    %c0_i32 = arith.constant 0 : i32
    %c0_i32_0 = arith.constant 0 : i32
    %c0_i32_1 = arith.constant 0 : i32
    return %arg1, %arg0, %c0_i32, %c0_i32_0 : i32, i32, i32, i32
  }
}

module attributes {stable_mosaic.version = 11 : i64} {
  func.func @_conv3_max_kernel(%arg0: i32, %arg1: i32, %arg2: i32, %arg3: memref<1x128x8xbf16, #tpu.memory_space<vmem>>, %arg4: memref<1x8x64xbf16, #tpu.memory_space<vmem>>, %arg5: memref<1x64xf32, #tpu.memory_space<vmem>>, %arg6: memref<64x128xbf16, #tpu.memory_space<vmem>>, %arg7: memref<1x128xf32, #tpu.memory_space<vmem>>, %arg8: memref<128x1024xbf16, #tpu.memory_space<vmem>>, %arg9: memref<1x1x1x1024xf32, #tpu.memory_space<vmem>>) attributes {dimension_semantics = [#tpu.dimension_semantics<parallel>, #tpu.dimension_semantics<parallel>, #tpu.dimension_semantics<arbitrary>], iteration_bounds = array<i64: 2, 2, 1>, scalar_prefetch = 0 : i64, scratch_operands = 0 : i64, tpu.core_type = #tpu.core_type<tc>, window_params = [{transform_indices = @transform_0, window_bounds = array<i64: 1, 128, 8>}, {transform_indices = @transform_1, window_bounds = array<i64: 1, 8, 64>}, {pipeline_mode = #tpu.pipeline_mode<synchronous>, transform_indices = @transform_2, window_bounds = array<i64: 1, 64>}, {pipeline_mode = #tpu.pipeline_mode<synchronous>, transform_indices = @transform_3, window_bounds = array<i64: 64, 128>}, {pipeline_mode = #tpu.pipeline_mode<synchronous>, transform_indices = @transform_4, window_bounds = array<i64: 1, 128>}, {pipeline_mode = #tpu.pipeline_mode<synchronous>, transform_indices = @transform_5, window_bounds = array<i64: 128, 1024>}, {transform_indices = @transform_6, window_bounds = array<i64: 1, 1, 1, 1024>}]} {
    %c0 = arith.constant 0 : index
    %c0_0 = arith.constant 0 : index
    %c0_1 = arith.constant 0 : index
    %0 = vector.load %arg3[%c0, %c0_0, %c0_1] : memref<1x128x8xbf16, #tpu.memory_space<vmem>>, vector<1x128x8xbf16>
    %1 = vector.shape_cast %0 : vector<1x128x8xbf16> to vector<128x8xbf16>
    %c0_2 = arith.constant 0 : index
    %c0_3 = arith.constant 0 : index
    %c0_4 = arith.constant 0 : index
    %2 = vector.load %arg4[%c0_2, %c0_3, %c0_4] : memref<1x8x64xbf16, #tpu.memory_space<vmem>>, vector<1x8x64xbf16>
    %3 = vector.shape_cast %2 : vector<1x8x64xbf16> to vector<8x64xbf16>
    %cst = arith.constant dense<0.000000e+00> : vector<128x64xf32>
    %4 = tpu.matmul %1, %3, %cst {dimension_numbers = #tpu.dot_dimension_numbers<[1], [0], [0], [1], [0, 0, 1, 1], [], []>} : vector<128x8xbf16>, vector<8x64xbf16>, vector<128x64xf32> -> vector<128x64xf32>
    %c0_5 = arith.constant 0 : index
    %c0_6 = arith.constant 0 : index
    %5 = vector.load %arg5[%c0_5, %c0_6] : memref<1x64xf32, #tpu.memory_space<vmem>>, vector<1x64xf32>
    %6 = vector.broadcast %5 : vector<1x64xf32> to vector<128x64xf32>
    %7 = arith.addf %4, %6 : vector<128x64xf32>
    %cst_7 = arith.constant 0.000000e+00 : f32
    %8 = vector.broadcast %cst_7 : f32 to vector<128x64xf32>
    %9 = arith.maximumf %7, %8 : vector<128x64xf32>
    %10 = arith.truncf %9 : vector<128x64xf32> to vector<128x64xbf16>
    %c0_8 = arith.constant 0 : index
    %c0_9 = arith.constant 0 : index
    %11 = vector.load %arg6[%c0_8, %c0_9] : memref<64x128xbf16, #tpu.memory_space<vmem>>, vector<64x128xbf16>
    %cst_10 = arith.constant dense<0.000000e+00> : vector<128x128xf32>
    %12 = tpu.matmul %10, %11, %cst_10 {dimension_numbers = #tpu.dot_dimension_numbers<[1], [0], [0], [1], [0, 0, 1, 1], [], []>} : vector<128x64xbf16>, vector<64x128xbf16>, vector<128x128xf32> -> vector<128x128xf32>
    %c0_11 = arith.constant 0 : index
    %c0_12 = arith.constant 0 : index
    %13 = vector.load %arg7[%c0_11, %c0_12] : memref<1x128xf32, #tpu.memory_space<vmem>>, vector<1x128xf32>
    %14 = vector.broadcast %13 : vector<1x128xf32> to vector<128x128xf32>
    %15 = arith.addf %12, %14 : vector<128x128xf32>
    %cst_13 = arith.constant 0.000000e+00 : f32
    %16 = vector.broadcast %cst_13 : f32 to vector<128x128xf32>
    %17 = arith.maximumf %15, %16 : vector<128x128xf32>
    %18 = arith.truncf %17 : vector<128x128xf32> to vector<128x128xbf16>
    %c0_14 = arith.constant 0 : index
    %c0_15 = arith.constant 0 : index
    %19 = vector.load %arg8[%c0_14, %c0_15] : memref<128x1024xbf16, #tpu.memory_space<vmem>>, vector<128x1024xbf16>
    %cst_16 = arith.constant dense<0.000000e+00> : vector<128x1024xf32>
    %20 = tpu.matmul %18, %19, %cst_16 {dimension_numbers = #tpu.dot_dimension_numbers<[1], [0], [0], [1], [0, 0, 1, 1], [], []>} : vector<128x128xbf16>, vector<128x1024xbf16>, vector<128x1024xf32> -> vector<128x1024xf32>
    %c1_i32 = arith.constant 1 : i32
    %21 = arith.muli %arg1, %c1_i32 : i32
    %22 = arith.addi %21, %arg2 : i32
    %c128_i32 = arith.constant 128 : i32
    %23 = arith.muli %22, %c128_i32 : i32
    %24 = tpu.iota {dimensions = array<i32: 0>} : vector<128x1xi32>
    %25 = vector.broadcast %23 : i32 to vector<128x1xi32>
    %26 = arith.addi %25, %24 : vector<128x1xi32>
    %c128_i32_17 = arith.constant 128 : i32
    %27 = vector.broadcast %c128_i32_17 : i32 to vector<128x1xi32>
    %28 = arith.cmpi slt, %26, %27 : vector<128x1xi32>
    %cst_18 = arith.constant 0xFF800000 : f32
    %29 = vector.shape_cast %28 : vector<128x1xi1> to vector<128x1xi1>
    %30 = vector.broadcast %29 : vector<128x1xi1> to vector<128x1024xi1>
    %31 = vector.broadcast %cst_18 : f32 to vector<128x1024xf32>
    %32 = arith.select %30, %20, %31 : vector<128x1024xi1>, vector<128x1024xf32>
    %cst_19 = arith.constant dense<0xFF800000> : vector<1024xf32>
    %33 = vector.multi_reduction <maximumf>, %32, %cst_19 [0] : vector<128x1024xf32> to vector<1024xf32>
    %34 = vector.shape_cast %33 : vector<1024xf32> to vector<1x1024xf32>
    %c0_i32 = arith.constant 0 : i32
    %35 = arith.cmpi eq, %arg2, %c0_i32 : i32
    %36 = arith.extui %35 : i1 to i32
    %c0_i32_20 = arith.constant 0 : i32
    %37 = arith.cmpi ne, %36, %c0_i32_20 : i32
    scf.if %37 {
      %cst_29 = arith.constant 0xFF800000 : f32
      %44 = vector.broadcast %cst_29 : f32 to vector<1x1024xf32>
      %c0_30 = arith.constant 0 : index
      %c0_31 = arith.constant 0 : index
      %c0_32 = arith.constant 0 : index
      %c0_33 = arith.constant 0 : index
      %45 = vector.load %arg9[%c0_30, %c0_31, %c0_32, %c0_33] : memref<1x1x1x1024xf32, #tpu.memory_space<vmem>>, vector<1x1x1x1024xf32>
      %46 = vector.shape_cast %45 : vector<1x1x1x1024xf32> to vector<1x1024xf32>
      %47 = vector.shape_cast %44 : vector<1x1024xf32> to vector<1x1x1x1024xf32>
      tpu.vector_store %arg9[%c0_30, %c0_31, %c0_32, %c0_33], %47 {strides = array<i32>} : memref<1x1x1x1024xf32, #tpu.memory_space<vmem>>, vector<1x1x1x1024xf32>,
    } else {
    }
    %c0_21 = arith.constant 0 : index
    %c0_22 = arith.constant 0 : index
    %c0_23 = arith.constant 0 : index
    %c0_24 = arith.constant 0 : index
    %38 = vector.load %arg9[%c0_21, %c0_22, %c0_23, %c0_24] : memref<1x1x1x1024xf32, #tpu.memory_space<vmem>>, vector<1x1x1x1024xf32>
    %39 = vector.shape_cast %38 : vector<1x1x1x1024xf32> to vector<1x1024xf32>
    %40 = arith.maximumf %39, %34 : vector<1x1024xf32>
    %c0_25 = arith.constant 0 : index
    %c0_26 = arith.constant 0 : index
    %c0_27 = arith.constant 0 : index
    %c0_28 = arith.constant 0 : index
    %41 = vector.load %arg9[%c0_25, %c0_26, %c0_27, %c0_28] : memref<1x1x1x1024xf32, #tpu.memory_space<vmem>>, vector<1x1x1x1024xf32>
    %42 = vector.shape_cast %41 : vector<1x1x1x1024xf32> to vector<1x1024xf32>
    %43 = vector.shape_cast %40 : vector<1x1024xf32> to vector<1x1x1x1024xf32>
    tpu.vector_store %arg9[%c0_25, %c0_26, %c0_27, %c0_28], %43 {strides = array<i32>} : memref<1x1x1x1024xf32, #tpu.memory_space<vmem>>, vector<1x1x1x1024xf32>,
    return
  }
  func.func @transform_0(%arg0: i32, %arg1: i32, %arg2: i32) -> (i32, i32, i32) {
    %c1_i32 = arith.constant 1 : i32
    %0 = arith.muli %arg1, %c1_i32 : i32
    %1 = arith.addi %0, %arg2 : i32
    %c0_i32 = arith.constant 0 : i32
    %c0_i32_0 = arith.constant 0 : i32
    return %arg0, %1, %c0_i32 : i32, i32, i32
  }
  func.func @transform_1(%arg0: i32, %arg1: i32, %arg2: i32) -> (i32, i32, i32) {
    %c0_i32 = arith.constant 0 : i32
    %c0_i32_0 = arith.constant 0 : i32
    %c0_i32_1 = arith.constant 0 : i32
    return %arg0, %c0_i32, %c0_i32_0 : i32, i32, i32
  }
  func.func @transform_2(%arg0: i32, %arg1: i32, %arg2: i32) -> (i32, i32) {
    %c0_i32 = arith.constant 0 : i32
    %c0_i32_0 = arith.constant 0 : i32
    %c0_i32_1 = arith.constant 0 : i32
    return %c0_i32, %c0_i32_0 : i32, i32
  }
  func.func @transform_3(%arg0: i32, %arg1: i32, %arg2: i32) -> (i32, i32) {
    %c0_i32 = arith.constant 0 : i32
    %c0_i32_0 = arith.constant 0 : i32
    %c0_i32_1 = arith.constant 0 : i32
    return %c0_i32, %c0_i32_0 : i32, i32
  }
  func.func @transform_4(%arg0: i32, %arg1: i32, %arg2: i32) -> (i32, i32) {
    %c0_i32 = arith.constant 0 : i32
    %c0_i32_0 = arith.constant 0 : i32
    %c0_i32_1 = arith.constant 0 : i32
    return %c0_i32, %c0_i32_0 : i32, i32
  }
  func.func @transform_5(%arg0: i32, %arg1: i32, %arg2: i32) -> (i32, i32) {
    %c0_i32 = arith.constant 0 : i32
    %c0_i32_0 = arith.constant 0 : i32
    %c0_i32_1 = arith.constant 0 : i32
    return %c0_i32, %c0_i32_0 : i32, i32
  }
  func.func @transform_6(%arg0: i32, %arg1: i32, %arg2: i32) -> (i32, i32, i32, i32) {
    %c0_i32 = arith.constant 0 : i32
    %c0_i32_0 = arith.constant 0 : i32
    %c0_i32_1 = arith.constant 0 : i32
    return %arg1, %arg0, %c0_i32, %c0_i32_0 : i32, i32, i32, i32
  }
}

module attributes {stable_mosaic.version = 11 : i64} {
  func.func @_cls_head_kernel(%arg0: i32, %arg1: i32, %arg2: memref<1x128x8xbf16, #tpu.memory_space<vmem>>, %arg3: memref<1x8x64xbf16, #tpu.memory_space<vmem>>, %arg4: memref<1x64xf32, #tpu.memory_space<vmem>>, %arg5: memref<1x1x512xf32, #tpu.memory_space<vmem>>, %arg6: memref<64x512xbf16, #tpu.memory_space<vmem>>, %arg7: memref<512x256xbf16, #tpu.memory_space<vmem>>, %arg8: memref<1x256xf32, #tpu.memory_space<vmem>>, %arg9: memref<256x128xbf16, #tpu.memory_space<vmem>>, %arg10: memref<1x128xf32, #tpu.memory_space<vmem>>, %arg11: memref<8x128xbf16, #tpu.memory_space<vmem>>, %arg12: memref<8x1xf32, #tpu.memory_space<vmem>>, %arg13: memref<1x8x128xf32, #tpu.memory_space<vmem>>) attributes {dimension_semantics = [#tpu.dimension_semantics<parallel>, #tpu.dimension_semantics<parallel>], iteration_bounds = array<i64: 2, 2>, scalar_prefetch = 0 : i64, scratch_operands = 0 : i64, tpu.core_type = #tpu.core_type<tc>, window_params = [{transform_indices = @transform_0, window_bounds = array<i64: 1, 128, 8>}, {transform_indices = @transform_1, window_bounds = array<i64: 1, 8, 64>}, {pipeline_mode = #tpu.pipeline_mode<synchronous>, transform_indices = @transform_2, window_bounds = array<i64: 1, 64>}, {transform_indices = @transform_3, window_bounds = array<i64: 1, 1, 512>}, {pipeline_mode = #tpu.pipeline_mode<synchronous>, transform_indices = @transform_4, window_bounds = array<i64: 64, 512>}, {pipeline_mode = #tpu.pipeline_mode<synchronous>, transform_indices = @transform_5, window_bounds = array<i64: 512, 256>}, {pipeline_mode = #tpu.pipeline_mode<synchronous>, transform_indices = @transform_6, window_bounds = array<i64: 1, 256>}, {pipeline_mode = #tpu.pipeline_mode<synchronous>, transform_indices = @transform_7, window_bounds = array<i64: 256, 128>}, {pipeline_mode = #tpu.pipeline_mode<synchronous>, transform_indices = @transform_8, window_bounds = array<i64: 1, 128>}, {pipeline_mode = #tpu.pipeline_mode<synchronous>, transform_indices = @transform_9, window_bounds = array<i64: 8, 128>}, {pipeline_mode = #tpu.pipeline_mode<synchronous>, transform_indices = @transform_10, window_bounds = array<i64: 8, 1>}, {transform_indices = @transform_11, window_bounds = array<i64: 1, 8, 128>}]} {
    %c0 = arith.constant 0 : index
    %c0_0 = arith.constant 0 : index
    %c0_1 = arith.constant 0 : index
    %0 = vector.load %arg2[%c0, %c0_0, %c0_1] : memref<1x128x8xbf16, #tpu.memory_space<vmem>>, vector<1x128x8xbf16>
    %1 = vector.shape_cast %0 : vector<1x128x8xbf16> to vector<128x8xbf16>
    %c0_2 = arith.constant 0 : index
    %c0_3 = arith.constant 0 : index
    %c0_4 = arith.constant 0 : index
    %2 = vector.load %arg3[%c0_2, %c0_3, %c0_4] : memref<1x8x64xbf16, #tpu.memory_space<vmem>>, vector<1x8x64xbf16>
    %3 = vector.shape_cast %2 : vector<1x8x64xbf16> to vector<8x64xbf16>
    %cst = arith.constant dense<0.000000e+00> : vector<128x64xf32>
    %4 = tpu.matmul %1, %3, %cst {dimension_numbers = #tpu.dot_dimension_numbers<[1], [0], [0], [1], [0, 0, 1, 1], [], []>} : vector<128x8xbf16>, vector<8x64xbf16>, vector<128x64xf32> -> vector<128x64xf32>
    %c0_5 = arith.constant 0 : index
    %c0_6 = arith.constant 0 : index
    %5 = vector.load %arg4[%c0_5, %c0_6] : memref<1x64xf32, #tpu.memory_space<vmem>>, vector<1x64xf32>
    %6 = vector.broadcast %5 : vector<1x64xf32> to vector<128x64xf32>
    %7 = arith.addf %4, %6 : vector<128x64xf32>
    %cst_7 = arith.constant 0.000000e+00 : f32
    %8 = vector.broadcast %cst_7 : f32 to vector<128x64xf32>
    %9 = arith.maximumf %7, %8 : vector<128x64xf32>
    %10 = arith.truncf %9 : vector<128x64xf32> to vector<128x64xbf16>
    %c0_8 = arith.constant 0 : index
    %c0_9 = arith.constant 0 : index
    %11 = vector.load %arg6[%c0_8, %c0_9] : memref<64x512xbf16, #tpu.memory_space<vmem>>, vector<64x512xbf16>
    %cst_10 = arith.constant dense<0.000000e+00> : vector<128x512xf32>
    %12 = tpu.matmul %10, %11, %cst_10 {dimension_numbers = #tpu.dot_dimension_numbers<[1], [0], [0], [1], [0, 0, 1, 1], [], []>} : vector<128x64xbf16>, vector<64x512xbf16>, vector<128x512xf32> -> vector<128x512xf32>
    %c0_11 = arith.constant 0 : index
    %c0_12 = arith.constant 0 : index
    %c0_13 = arith.constant 0 : index
    %13 = vector.load %arg5[%c0_11, %c0_12, %c0_13] : memref<1x1x512xf32, #tpu.memory_space<vmem>>, vector<1x1x512xf32>
    %14 = vector.shape_cast %13 : vector<1x1x512xf32> to vector<1x512xf32>
    %15 = vector.broadcast %14 : vector<1x512xf32> to vector<128x512xf32>
    %16 = arith.addf %12, %15 : vector<128x512xf32>
    %cst_14 = arith.constant 0.000000e+00 : f32
    %17 = vector.broadcast %cst_14 : f32 to vector<128x512xf32>
    %18 = arith.maximumf %16, %17 : vector<128x512xf32>
    %19 = arith.truncf %18 : vector<128x512xf32> to vector<128x512xbf16>
    %c0_15 = arith.constant 0 : index
    %c0_16 = arith.constant 0 : index
    %20 = vector.load %arg7[%c0_15, %c0_16] : memref<512x256xbf16, #tpu.memory_space<vmem>>, vector<512x256xbf16>
    %cst_17 = arith.constant dense<0.000000e+00> : vector<128x256xf32>
    %21 = tpu.matmul %19, %20, %cst_17 {dimension_numbers = #tpu.dot_dimension_numbers<[1], [0], [0], [1], [0, 0, 1, 1], [], []>} : vector<128x512xbf16>, vector<512x256xbf16>, vector<128x256xf32> -> vector<128x256xf32>
    %c0_18 = arith.constant 0 : index
    %c0_19 = arith.constant 0 : index
    %22 = vector.load %arg8[%c0_18, %c0_19] : memref<1x256xf32, #tpu.memory_space<vmem>>, vector<1x256xf32>
    %23 = vector.broadcast %22 : vector<1x256xf32> to vector<128x256xf32>
    %24 = arith.addf %21, %23 : vector<128x256xf32>
    %cst_20 = arith.constant 0.000000e+00 : f32
    %25 = vector.broadcast %cst_20 : f32 to vector<128x256xf32>
    %26 = arith.maximumf %24, %25 : vector<128x256xf32>
    %27 = arith.truncf %26 : vector<128x256xf32> to vector<128x256xbf16>
    %c0_21 = arith.constant 0 : index
    %c0_22 = arith.constant 0 : index
    %28 = vector.load %arg9[%c0_21, %c0_22] : memref<256x128xbf16, #tpu.memory_space<vmem>>, vector<256x128xbf16>
    %cst_23 = arith.constant dense<0.000000e+00> : vector<128x128xf32>
    %29 = tpu.matmul %27, %28, %cst_23 {dimension_numbers = #tpu.dot_dimension_numbers<[1], [0], [0], [1], [0, 0, 1, 1], [], []>} : vector<128x256xbf16>, vector<256x128xbf16>, vector<128x128xf32> -> vector<128x128xf32>
    %c0_24 = arith.constant 0 : index
    %c0_25 = arith.constant 0 : index
    %30 = vector.load %arg10[%c0_24, %c0_25] : memref<1x128xf32, #tpu.memory_space<vmem>>, vector<1x128xf32>
    %31 = vector.broadcast %30 : vector<1x128xf32> to vector<128x128xf32>
    %32 = arith.addf %29, %31 : vector<128x128xf32>
    %cst_26 = arith.constant 0.000000e+00 : f32
    %33 = vector.broadcast %cst_26 : f32 to vector<128x128xf32>
    %34 = arith.maximumf %32, %33 : vector<128x128xf32>
    %35 = arith.truncf %34 : vector<128x128xf32> to vector<128x128xbf16>
    %c0_27 = arith.constant 0 : index
    %c0_28 = arith.constant 0 : index
    %36 = vector.load %arg11[%c0_27, %c0_28] : memref<8x128xbf16, #tpu.memory_space<vmem>>, vector<8x128xbf16>
    %cst_29 = arith.constant dense<0.000000e+00> : vector<8x128xf32>
    %37 = tpu.matmul %36, %35, %cst_29 {dimension_numbers = #tpu.dot_dimension_numbers<[1], [1], [0], [0], [0, 0, 1, 0], [], []>} : vector<8x128xbf16>, vector<128x128xbf16>, vector<8x128xf32> -> vector<8x128xf32>
    %c0_30 = arith.constant 0 : index
    %c0_31 = arith.constant 0 : index
    %38 = vector.load %arg12[%c0_30, %c0_31] : memref<8x1xf32, #tpu.memory_space<vmem>>, vector<8x1xf32>
    %39 = vector.broadcast %38 : vector<8x1xf32> to vector<8x128xf32>
    %40 = arith.addf %37, %39 : vector<8x128xf32>
    %cst_32 = arith.constant dense<0xFF800000> : vector<128xf32>
    %41 = vector.multi_reduction <maximumf>, %40, %cst_32 [0] : vector<8x128xf32> to vector<128xf32>
    %42 = vector.shape_cast %41 : vector<128xf32> to vector<1x128xf32>
    %43 = vector.broadcast %42 : vector<1x128xf32> to vector<8x128xf32>
    %44 = arith.subf %40, %43 : vector<8x128xf32>
    %45 = math.exp %44 : vector<8x128xf32>
    %cst_33 = arith.constant dense<0.000000e+00> : vector<128xf32>
    %46 = vector.multi_reduction <add>, %45, %cst_33 [0] : vector<8x128xf32> to vector<128xf32>
    %47 = vector.shape_cast %46 : vector<128xf32> to vector<1x128xf32>
    %48 = math.log %47 : vector<1x128xf32>
    %49 = vector.broadcast %48 : vector<1x128xf32> to vector<8x128xf32>
    %50 = arith.subf %44, %49 : vector<8x128xf32>
    %c0_34 = arith.constant 0 : index
    %c0_35 = arith.constant 0 : index
    %c0_36 = arith.constant 0 : index
    %51 = vector.load %arg13[%c0_34, %c0_35, %c0_36] : memref<1x8x128xf32, #tpu.memory_space<vmem>>, vector<1x8x128xf32>
    %52 = vector.shape_cast %51 : vector<1x8x128xf32> to vector<8x128xf32>
    %53 = vector.shape_cast %50 : vector<8x128xf32> to vector<1x8x128xf32>
    tpu.vector_store %arg13[%c0_34, %c0_35, %c0_36], %53 {strides = array<i32>} : memref<1x8x128xf32, #tpu.memory_space<vmem>>, vector<1x8x128xf32>,
    return
  }
  func.func @transform_0(%arg0: i32, %arg1: i32) -> (i32, i32, i32) {
    %c0_i32 = arith.constant 0 : i32
    %c0_i32_0 = arith.constant 0 : i32
    return %arg0, %arg1, %c0_i32 : i32, i32, i32
  }
  func.func @transform_1(%arg0: i32, %arg1: i32) -> (i32, i32, i32) {
    %c0_i32 = arith.constant 0 : i32
    %c0_i32_0 = arith.constant 0 : i32
    %c0_i32_1 = arith.constant 0 : i32
    return %arg0, %c0_i32, %c0_i32_0 : i32, i32, i32
  }
  func.func @transform_2(%arg0: i32, %arg1: i32) -> (i32, i32) {
    %c0_i32 = arith.constant 0 : i32
    %c0_i32_0 = arith.constant 0 : i32
    %c0_i32_1 = arith.constant 0 : i32
    return %c0_i32, %c0_i32_0 : i32, i32
  }
  func.func @transform_3(%arg0: i32, %arg1: i32) -> (i32, i32, i32) {
    %c0_i32 = arith.constant 0 : i32
    %c0_i32_0 = arith.constant 0 : i32
    %c0_i32_1 = arith.constant 0 : i32
    return %arg0, %c0_i32, %c0_i32_0 : i32, i32, i32
  }
  func.func @transform_4(%arg0: i32, %arg1: i32) -> (i32, i32) {
    %c0_i32 = arith.constant 0 : i32
    %c0_i32_0 = arith.constant 0 : i32
    %c0_i32_1 = arith.constant 0 : i32
    return %c0_i32, %c0_i32_0 : i32, i32
  }
  func.func @transform_5(%arg0: i32, %arg1: i32) -> (i32, i32) {
    %c0_i32 = arith.constant 0 : i32
    %c0_i32_0 = arith.constant 0 : i32
    %c0_i32_1 = arith.constant 0 : i32
    return %c0_i32, %c0_i32_0 : i32, i32
  }
  func.func @transform_6(%arg0: i32, %arg1: i32) -> (i32, i32) {
    %c0_i32 = arith.constant 0 : i32
    %c0_i32_0 = arith.constant 0 : i32
    %c0_i32_1 = arith.constant 0 : i32
    return %c0_i32, %c0_i32_0 : i32, i32
  }
  func.func @transform_7(%arg0: i32, %arg1: i32) -> (i32, i32) {
    %c0_i32 = arith.constant 0 : i32
    %c0_i32_0 = arith.constant 0 : i32
    %c0_i32_1 = arith.constant 0 : i32
    return %c0_i32, %c0_i32_0 : i32, i32
  }
  func.func @transform_8(%arg0: i32, %arg1: i32) -> (i32, i32) {
    %c0_i32 = arith.constant 0 : i32
    %c0_i32_0 = arith.constant 0 : i32
    %c0_i32_1 = arith.constant 0 : i32
    return %c0_i32, %c0_i32_0 : i32, i32
  }
  func.func @transform_9(%arg0: i32, %arg1: i32) -> (i32, i32) {
    %c0_i32 = arith.constant 0 : i32
    %c0_i32_0 = arith.constant 0 : i32
    %c0_i32_1 = arith.constant 0 : i32
    return %c0_i32, %c0_i32_0 : i32, i32
  }
  func.func @transform_10(%arg0: i32, %arg1: i32) -> (i32, i32) {
    %c0_i32 = arith.constant 0 : i32
    %c0_i32_0 = arith.constant 0 : i32
    %c0_i32_1 = arith.constant 0 : i32
    return %c0_i32, %c0_i32_0 : i32, i32
  }
  func.func @transform_11(%arg0: i32, %arg1: i32) -> (i32, i32, i32) {
    %c0_i32 = arith.constant 0 : i32
    %c0_i32_0 = arith.constant 0 : i32
    return %arg0, %c0_i32, %arg1 : i32, i32, i32
  }
}

</mosaic_0001>

<llo_original>
// kernel: _lambda_.3
$region0: #{_lambda_.3}
  #allocation0 [shape = 'u32[]', space=smem, size = 0x4, offset = 0x4, fixed_abs, tag = 'smem constant byte address 0x4 - core index']
  #allocation1 [shape = 'u32[144,128]{1,0:T(1,128)}', space=vmem, size = 0x12000, scoped, tag = 'internal scratch']
  %s0 = inlined_call_operand.vmem [shape: bf16[2,256,8], index: 0, kind: input, shape index: {}]
  %s1 = inlined_call_operand.hbm [shape: bf16[8,64], index: 1, kind: input, shape index: {}]
  %s2 = inlined_call_operand.hbm [shape: f32[1,64], index: 2, kind: input, shape index: {}]
  %s3 = inlined_call_operand.vmem [shape: bf16[64,128], index: 3, kind: input, shape index: {}]
  %s4 = inlined_call_operand.vmem [shape: f32[1,128], index: 4, kind: input, shape index: {}]
  %s5 = inlined_call_operand.vmem [shape: bf16[128,1024], index: 5, kind: input, shape index: {}]
  %s6 = inlined_call_operand.vmem [shape: f32[2,2,1,1024], index: 6, kind: output, shape index: {}]
  %s7 = sld [smem:[#allocation0]]
  $region69: #{_lambda_.3} parent=0
    _
  %s9 = ssub.s32 1, %s7
  %s10 = scalar_select 0, %s9, %s7
  $region1: #{_lambda_.3} parent=0
    #allocation2 [shape = 'u8[2048]{0}', space=vmem, size = 0x800, scoped, tag = 'input window, operand 1, single buffered']
    #allocation3 [shape = 's32[2]{0}', space=sflag, size = 0x8, scoped, tag = 'scoped memory for _lambda_.3']
    #allocation4 [shape = 'u8[512]{0}', space=vmem, size = 0x400, scoped, tag = 'input window, operand 2, single buffered']
    #allocation5 [shape = 's32[1]{0}', space=sflag, size = 0x4, scoped, tag = 'scoped memory for _lambda_.3']
    %11 = vsyncpa [#allocation3], 0
    %12 = vsyncpa [#allocation5], 0
    loop: start=0, step=1, limit=6
    $region2: #{_lambda_.3} parent=1 // loop_pre_header
      _
    $region3: #{_lambda_.3} parent=1 // loop_header
      %s14 = sphi 0, %s18
      %p15 = scmp.ge.s32.totalorder %s14, 6
      %s21 = sphi 0, %s40
      %s22 = sphi 0, %s36
      %s23 = sphi 0, %s32
      %s24 = sphi 0, %s21
      %s25 = sphi 0, %s22
      %s26 = sphi 0, %s23
      %s27 = sphi 0, %s24
      %s28 = sphi 0, %s25
      %s29 = sphi 0, %s26
      %s47 = sphi 0, %s49
      %s50 = sphi 0, %s47
      %s51 = sphi 0, %s50
      %s67 = sphi 0, %s51
      %s71 = sphi 0, %s71
      %s73 = sphi 0, %s71
      %s74 = sphi 0, %s73
      %s88 = sphi 0, %s74
      %s92 = sphi 0, %s92
      %s94 = sphi 0, %s92
      %s95 = sphi 0, %s94
      %s109 = sphi 0, %s95
      %s113 = sphi 0, %s113
      %s115 = sphi 0, %s113
      %s116 = sphi 0, %s115
      %s130 = sphi 0, %s116
      %s134 = sphi 0, %s134
      %s136 = sphi 0, %s134
      %s137 = sphi 0, %s136
      %s151 = sphi 0, %s137
      %s155 = sphi 0, %s155
      %s157 = sphi 0, %s155
      %s158 = sphi 0, %s157
      %s172 = sphi 0, %s158
      %s180 = sphi 0, %s182
      %s183 = sphi 0, %s180
      %s184 = sphi 0, %s183
      %s200 = sphi 0, %s184
    $region4: #{_lambda_.3} parent=1 // loop_header_branch
      %17 = sbr.rel (%p15) target = $region8
    $region5: #{_lambda_.3} parent=1 // loop_body
      %s19 = ssub.s32 %s14, 1
      %s20 = ssub.s32 %s14, 2
      %s30 = sadd.s32 1, %s23
      %p31 = scmp.ge.s32.totalorder %s30, 1
      %s32 = scalar_select %p31, 0, %s30
      %s33 = sadd.s32 1, %s22
      %s34 = scalar_select %p31, %s33, %s22
      %p35 = scmp.ge.s32.totalorder %s34, 2
      %s36 = scalar_select %p35, 0, %s34
      %s37 = sadd.s32 1, %s21
      %s38 = scalar_select %p35, %s37, %s21
      %p39 = scmp.ge.s32.totalorder %s38, 2
      %s40 = scalar_select %p39, 0, %s38
      %s41 = sadd.s32 %s22, %s23
      %s42 = sadd.s32 %s36, %s32
      %s43 = ssub.s32 %s21, %s40
      %s44 = ssub.s32 %s41, %s42
      %s45 = sor.u32 %s43, %s44
      %p46 = scmp.eq.s32.totalorder %s45, 0
      %s48 = sadd.s32 %s47, 1
      %s49 = scalar_select %p46, %s47, %s48
      %p52 = pneg %p46
      %p53 = scmp.eq.s32.totalorder %s14, 3
      %p54 = por %p52, %p53
      %p55 = scmp.ne.s32.totalorder %s47, %s50
      %p56 = scmp.eq.s32.totalorder %s14, 0
      %p57 = por %p55, %p56
      %p58 = scmp.ne.s32.totalorder %s47, %s50
      %p59 = scmp.eq.s32.totalorder %s19, 3
      %p60 = por %p58, %p59
      %p61 = scmp.ne.s32.totalorder %s50, %s51
      %p62 = scmp.eq.s32.totalorder %s19, 0
      %p63 = por %p61, %p62
      %p64 = scmp.ne.s32.totalorder %s50, %s51
      %p65 = scmp.eq.s32.totalorder %s20, 3
      %p66 = por %p64, %p65
      %p68 = scmp.ne.s32.totalorder %s51, %s67
      %p69 = scmp.eq.s32.totalorder %s20, 0
      %p70 = por %p68, %p69
      %s72 = sadd.s32 %s71, 1
      %p75 = scmp.eq.s32.totalorder %s14, 3
      %p76 = scmp.ne.s32.totalorder %s71, %s73
      %p77 = scmp.eq.s32.totalorder %s14, 0
      %p78 = por %p76, %p77
      %p79 = scmp.ne.s32.totalorder %s71, %s73
      %p80 = scmp.eq.s32.totalorder %s19, 3
      %p81 = por %p79, %p80
      %p82 = scmp.ne.s32.totalorder %s73, %s74
      %p83 = scmp.eq.s32.totalorder %s19, 0
      %p84 = por %p82, %p83
      %p85 = scmp.ne.s32.totalorder %s73, %s74
      %p86 = scmp.eq.s32.totalorder %s20, 3
      %p87 = por %p85, %p86
      %p89 = scmp.ne.s32.totalorder %s74, %s88
      %p90 = scmp.eq.s32.totalorder %s20, 0
      %p91 = por %p89, %p90
      %s93 = sadd.s32 %s92, 1
      %p96 = scmp.eq.s32.totalorder %s14, 3
      %p97 = scmp.ne.s32.totalorder %s92, %s94
      %p98 = scmp.eq.s32.totalorder %s14, 0
      %p99 = por %p97, %p98
      %p100 = scmp.ne.s32.totalorder %s92, %s94
      %p101 = scmp.eq.s32.totalorder %s19, 3
      %p102 = por %p100, %p101
      %p103 = scmp.ne.s32.totalorder %s94, %s95
      %p104 = scmp.eq.s32.totalorder %s19, 0
      %p105 = por %p103, %p104
      %p106 = scmp.ne.s32.totalorder %s94, %s95
      %p107 = scmp.eq.s32.totalorder %s20, 3
      %p108 = por %p106, %p107
      %p110 = scmp.ne.s32.totalorder %s95, %s109
      %p111 = scmp.eq.s32.totalorder %s20, 0
      %p112 = por %p110, %p111
      %s114 = sadd.s32 %s113, 1
      %p117 = scmp.eq.s32.totalorder %s14, 3
      %p118 = scmp.ne.s32.totalorder %s113, %s115
      %p119 = scmp.eq.s32.totalorder %s14, 0
      %p120 = por %p118, %p119
      %p121 = scmp.ne.s32.totalorder %s113, %s115
      %p122 = scmp.eq.s32.totalorder %s19, 3
      %p123 = por %p121, %p122
      %p124 = scmp.ne.s32.totalorder %s115, %s116
      %p125 = scmp.eq.s32.totalorder %s19, 0
      %p126 = por %p124, %p125
      %p127 = scmp.ne.s32.totalorder %s115, %s116
      %p128 = scmp.eq.s32.totalorder %s20, 3
      %p129 = por %p127, %p128
      %p131 = scmp.ne.s32.totalorder %s116, %s130
      %p132 = scmp.eq.s32.totalorder %s20, 0
      %p133 = por %p131, %p132
      %s135 = sadd.s32 %s134, 1
      %p138 = scmp.eq.s32.totalorder %s14, 3
      %p139 = scmp.ne.s32.totalorder %s134, %s136
      %p140 = scmp.eq.s32.totalorder %s14, 0
      %p141 = por %p139, %p140
      %p142 = scmp.ne.s32.totalorder %s134, %s136
      %p143 = scmp.eq.s32.totalorder %s19, 3
      %p144 = por %p142, %p143
      %p145 = scmp.ne.s32.totalorder %s136, %s137
      %p146 = scmp.eq.s32.totalorder %s19, 0
      %p147 = por %p145, %p146
      %p148 = scmp.ne.s32.totalorder %s136, %s137
      %p149 = scmp.eq.s32.totalorder %s20, 3
      %p150 = por %p148, %p149
      %p152 = scmp.ne.s32.totalorder %s137, %s151
      %p153 = scmp.eq.s32.totalorder %s20, 0
      %p154 = por %p152, %p153
      %s156 = sadd.s32 %s155, 1
      %p159 = scmp.eq.s32.totalorder %s14, 3
      %p160 = scmp.ne.s32.totalorder %s155, %s157
      %p161 = scmp.eq.s32.totalorder %s14, 0
      %p162 = por %p160, %p161
      %p163 = scmp.ne.s32.totalorder %s155, %s157
      %p164 = scmp.eq.s32.totalorder %s19, 3
      %p165 = por %p163, %p164
      %p166 = scmp.ne.s32.totalorder %s157, %s158
      %p167 = scmp.eq.s32.totalorder %s19, 0
      %p168 = por %p166, %p167
      %p169 = scmp.ne.s32.totalorder %s157, %s158
      %p170 = scmp.eq.s32.totalorder %s20, 3
      %p171 = por %p169, %p170
      %p173 = scmp.ne.s32.totalorder %s158, %s172
      %p174 = scmp.eq.s32.totalorder %s20, 0
      %p175 = por %p173, %p174
      %s176 = ssub.s32 %s22, %s36
      %s177 = ssub.s32 %s21, %s40
      %s178 = sor.u32 %s176, %s177
      %p179 = scmp.eq.s32.totalorder %s178, 0
      %s181 = sadd.s32 %s180, 1
      %s182 = scalar_select %p179, %s180, %s181
      %p185 = pneg %p179
      %p186 = scmp.eq.s32.totalorder %s14, 3
      %p187 = por %p185, %p186
      %p188 = scmp.ne.s32.totalorder %s180, %s183
      %p189 = scmp.eq.s32.totalorder %s14, 0
      %p190 = por %p188, %p189
      %p191 = scmp.ne.s32.totalorder %s180, %s183
      %p192 = scmp.eq.s32.totalorder %s19, 3
      %p193 = por %p191, %p192
      %p194 = scmp.ne.s32.totalorder %s183, %s184
      %p195 = scmp.eq.s32.totalorder %s19, 0
      %p196 = por %p194, %p195
      %p197 = scmp.ne.s32.totalorder %s183, %s184
      %p198 = scmp.eq.s32.totalorder %s20, 3
      %p199 = por %p197, %p198
      %p201 = scmp.ne.s32.totalorder %s184, %s200
      %p202 = scmp.eq.s32.totalorder %s20, 0
      %p203 = por %p201, %p202
      %p204 = scmp.le.s32.totalorder 1, %s14
      %p205 = scmp.lt.s32.totalorder %s14, 5
      %p206 = pnand %p204, %p205
      %p207 = pneg %p206
      // Predicated region
      $region9: #{_lambda_.3} parent=5 // pred_check
        _
      $region10: #{_lambda_.3} parent=5 // pred_check_branch
        %209 = sbr.rel (%p206) target = $region12
      $region11: #{_lambda_.3} parent=5 // pred_region
        %s210 = ssub.s32 %s14, 1
        // Predicated region
        $region13: #{_lambda_.3} parent=11 // pred_check
          %p211 = pneg %p84
        $region14: #{_lambda_.3} parent=11 // pred_check_branch
          %213 = sbr.rel (%p211) target = $region16
        $region15: #{_lambda_.3} parent=11 // pred_region
          %s215 = ssub.s32 64, 64
          %216 = vsyncadd [#allocation3], %s215
          %s218 = sshll.u32 [#allocation2], 4
          %s219 = int_to_ptr.vmem [resolvable:$true] %s218
          %221 = dma.hbm_to_vmem [thread:$0]  %s1, 64, %s219, [#allocation3]
        $region16: #{_lambda_.3} parent=11 // pred_fallthru
          _
        // Predicated region
        $region17: #{_lambda_.3} parent=11 // pred_check
          %p222 = pneg %p105
        $region18: #{_lambda_.3} parent=11 // pred_check_branch
          %224 = sbr.rel (%p222) target = $region20
        $region19: #{_lambda_.3} parent=11 // pred_region
          %s226 = ssub.s32 16, 16
          %227 = vsyncadd [#allocation5], %s226
          %s229 = sshll.u32 [#allocation4], 4
          %s230 = int_to_ptr.vmem [resolvable:$true] %s229
          %232 = dma.hbm_to_vmem [thread:$0]  %s2, 16, %s230, [#allocation5]
        $region20: #{_lambda_.3} parent=11 // pred_fallthru
          _
        // Predicated region
        $region21: #{_lambda_.3} parent=11 // pred_check
          %p233 = pneg %p126
        $region22: #{_lambda_.3} parent=11 // pred_check_branch
          %235 = sbr.rel (%p233) target = $region24
        $region23: #{_lambda_.3} parent=11 // pred_region
          _
        $region24: #{_lambda_.3} parent=11 // pred_fallthru
          _
        // Predicated region
        $region25: #{_lambda_.3} parent=11 // pred_check
          %p236 = pneg %p147
        $region26: #{_lambda_.3} parent=11 // pred_check_branch
          %238 = sbr.rel (%p236) target = $region28
        $region27: #{_lambda_.3} parent=11 // pred_region
          _
        $region28: #{_lambda_.3} parent=11 // pred_fallthru
          _
        // Predicated region
        $region29: #{_lambda_.3} parent=11 // pred_check
          %p239 = pneg %p168
        $region30: #{_lambda_.3} parent=11 // pred_check_branch
          %241 = sbr.rel (%p239) target = $region32
        $region31: #{_lambda_.3} parent=11 // pred_region
          _
        $region32: #{_lambda_.3} parent=11 // pred_fallthru
          _
      $region12: #{_lambda_.3} parent=5 // pred_fallthru
        _
      %p242 = scmp.lt.s32.totalorder %s14, 4
      // Predicated region
      $region33: #{_lambda_.3} parent=5 // pred_check
        %p243 = pneg %p242
      $region34: #{_lambda_.3} parent=5 // pred_check_branch
        %245 = sbr.rel (%p243) target = $region36
      $region35: #{_lambda_.3} parent=5 // pred_region
        // Predicated region
        $region37: #{_lambda_.3} parent=35 // pred_check
          %p246 = pneg %p57
        $region38: #{_lambda_.3} parent=35 // pred_check_branch
          %248 = sbr.rel (%p246) target = $region40
        $region39: #{_lambda_.3} parent=35 // pred_region
          %s249 = sadd.s32 %s22, %s23
          %s250 = smul.u32 16, %s249
          %p251 = scmp.lt.s32.totalorder %s21, 1
          %s252 = scalar_select %p251, %s21, 1
          %p253 = scmp.lt.s32.totalorder %s250, 31
          %s254 = scalar_select %p253, %s250, 31
          %s255 = smul.addr %s252, 32
          %s256 = sadd.s32 %s254, %s255
          %s257 = smul.addr %s256, 4
          %s258 = scalar_lea.vmem %s0, %s257
          %s259 = sadd.s32 %s22, %s23
          %s260 = smul.u32 16, %s259
        $region40: #{_lambda_.3} parent=35 // pred_fallthru
          _
      $region36: #{_lambda_.3} parent=5 // pred_fallthru
        _
      %p261 = scmp.le.s32.totalorder 1, %s14
      %p262 = scmp.lt.s32.totalorder %s14, 5
      %p263 = pnand %p261, %p262
      %p264 = pneg %p263
      // Predicated region
      $region41: #{_lambda_.3} parent=5 // pred_check
        _
      $region42: #{_lambda_.3} parent=5 // pred_check_branch
        %266 = sbr.rel (%p263) target = $region44
      $region43: #{_lambda_.3} parent=5 // pred_region
        %s267 = ssub.s32 %s14, 1
        // Predicated region
        $region45: #{_lambda_.3} parent=43 // pred_check
          %p268 = pneg %p84
        $region46: #{_lambda_.3} parent=43 // pred_check_branch
          %270 = sbr.rel (%p268) target = $region48
        $region47: #{_lambda_.3} parent=43 // pred_region
          %271 = dma.done [#allocation3], 64
        $region48: #{_lambda_.3} parent=43 // pred_fallthru
          _
        // Predicated region
        $region49: #{_lambda_.3} parent=43 // pred_check
          %p272 = pneg %p105
        $region50: #{_lambda_.3} parent=43 // pred_check_branch
          %274 = sbr.rel (%p272) target = $region52
        $region51: #{_lambda_.3} parent=43 // pred_region
          %275 = dma.done [#allocation5], 16
        $region52: #{_lambda_.3} parent=43 // pred_fallthru
          _
        %s276 = sadd.s32 %s25, %s26
        %s277 = smul.u32 16, %s276
        %p278 = scmp.lt.s32.totalorder %s24, 1
        %s279 = scalar_select %p278, %s24, 1
        %p280 = scmp.lt.s32.totalorder %s277, 31
        %s281 = scalar_select %p280, %s277, 31
        %s282 = smul.addr %s279, 32
        %s283 = sadd.s32 %s281, %s282
        %s284 = smul.addr %s283, 4
        %s285 = scalar_lea.vmem %s0, %s284
        %p286 = pneg %p63
        %p287 = pneg %p60
        %p288 = pneg %p84
        %p289 = pneg %p81
        %p290 = pneg %p105
        %p291 = pneg %p102
        %p292 = pneg %p126
        %p293 = pneg %p123
        %p294 = pneg %p147
        %p295 = pneg %p144
        %p296 = pneg %p168
        %p297 = pneg %p165
        %p298 = pneg %p196
        %p299 = pneg %p193
        %p300 = scmp.lt.s32.totalorder %s25, 1
        %s301 = scalar_select %p300, %s25, 1
        %p302 = scmp.lt.s32.totalorder %s24, 1
        %s303 = scalar_select %p302, %s24, 1
        %s304 = smul.addr %s303, 8
        %s305 = smul.addr %s301, 16
        %s306 = sadd.s32 %s304, %s305
        %s307 = scalar_lea.vmem %s6, %s306
        %s308 = sadd.s32 %s25, %s26
        %s309 = smul.u32 16, %s308
        %p310 = scmp.lt.s32.totalorder %s24, 1
        %s311 = scalar_select %p310, %s24, 1
        %p312 = scmp.lt.s32.totalorder %s309, 31
        %s313 = scalar_select %p312, %s309, 31
        %s314 = smul.addr %s311, 32
        %s315 = sadd.s32 %s313, %s314
        %s316 = smul.addr %s315, 4
        %s317 = scalar_lea.vmem %s0, %s316
        %s318 = sadd.s32 %s25, %s26
        %s319 = smul.u32 16, %s318
        %p320 = scmp.lt.s32.totalorder %s25, 1
        %s321 = scalar_select %p320, %s25, 1
        %p322 = scmp.lt.s32.totalorder %s24, 1
        %s323 = scalar_select %p322, %s24, 1
        %s324 = smul.addr %s323, 8
        %s325 = smul.addr %s321, 16
        %s326 = sadd.s32 %s324, %s325
        %s327 = scalar_lea.vmem %s6, %s326
        %v329 = vld [vmem:[%s317] sm:$0xf]
        %v330 = vld [vmem:[%s317 + $0x4] sm:$0xf]
        %v331 = vld [vmem:[%s317 + $0x8] sm:$0xf]
        %v332 = vld [vmem:[%s317 + $0xc] sm:$0xf]
        %v333 = vld [vmem:[%s317 + $0x10] sm:$0xf]
        %v334 = vld [vmem:[%s317 + $0x14] sm:$0xf]
        %v335 = vld [vmem:[%s317 + $0x18] sm:$0xf]
        %v336 = vld [vmem:[%s317 + $0x1c] sm:$0xf]
        %v337 = vld [vmem:[%s317 + $0x20] sm:$0xf]
        %v338 = vld [vmem:[%s317 + $0x24] sm:$0xf]
        %v339 = vld [vmem:[%s317 + $0x28] sm:$0xf]
        %v340 = vld [vmem:[%s317 + $0x2c] sm:$0xf]
        %v341 = vld [vmem:[%s317 + $0x30] sm:$0xf]
        %v342 = vld [vmem:[%s317 + $0x34] sm:$0xf]
        %v343 = vld [vmem:[%s317 + $0x38] sm:$0xf]
        %v344 = vld [vmem:[%s317 + $0x3c] sm:$0xf]
        %v345 = vld [vmem:[#allocation2] sm:$0xf]
        %v346 = vld [vmem:[#allocation4] sm:$0x1]
        %v348 = vlaneseq
        %v349 = vshrl.u32 %v348, 7
        %v350 = vsub.s32 0, %v349
        %v351 = vrot.slane %v346, %v350
        %v369 = vunpack.c.l.b16 %v329
        %v370 = vunpack.c.l.b16 %v330
        %v371 = vunpack.c.l.b16 %v331
        %v372 = vunpack.c.l.b16 %v332
        %v373 = vunpack.c.l.b16 %v333
        %v374 = vunpack.c.l.b16 %v334
        %v375 = vunpack.c.l.b16 %v335
        %v376 = vunpack.c.l.b16 %v336
        %v377 = vunpack.c.l.b16 %v337
        %v378 = vunpack.c.l.b16 %v338
        %v379 = vunpack.c.l.b16 %v339
        %v380 = vunpack.c.l.b16 %v340
        %v381 = vunpack.c.l.b16 %v341
        %v382 = vunpack.c.l.b16 %v342
        %v383 = vunpack.c.l.b16 %v343
        %v384 = vunpack.c.l.b16 %v344
        %v385 = vpack.c.b16 %v370, %v369
        %v386 = vpack.c.b16 %v372, %v371
        %v387 = vpack.c.b16 %v374, %v373
        %v388 = vpack.c.b16 %v376, %v375
        %v389 = vpack.c.b16 %v378, %v377
        %v390 = vpack.c.b16 %v380, %v379
        %v391 = vpack.c.b16 %v382, %v381
        %v392 = vpack.c.b16 %v384, %v383
        %vm393 = vcmask 64512
        %v395 = vsel %vm393, %v385, 0
        %v398 = vsel %vm393, %v386, 0
        %v401 = vsel %vm393, %v387, 0
        %v404 = vsel %vm393, %v388, 0
        %v407 = vsel %vm393, %v389, 0
        %v410 = vsel %vm393, %v390, 0
        %v413 = vsel %vm393, %v391, 0
        %v416 = vsel %vm393, %v392, 0
        %vm418 = vcmask 1043456
        %v420 = vsel %vm418, %v345, 0
        %422 = vmatprep.subr.bf16.mxu0 0
        %423 = vmatpush1.bf16.msra.mxu0 %v420
        %424 = vmatprep.subr.bf16.mxu0 0
        %425 = vmatpush1.bf16.msra.mxu0 0
        %426 = vmatprep.subr.bf16.mxu0 0
        %427 = vmatpush1.bf16.msra.mxu0 0
        %428 = vmatprep.subr.bf16.mxu0 0
        %429 = vmatpush1.bf16.msra.mxu0 0
        %430 = vmatprep.subr.bf16.mxu0 0
        %431 = vmatpush1.bf16.msra.mxu0 0
        %432 = vmatprep.subr.bf16.mxu0 0
        %433 = vmatpush1.bf16.msra.mxu0 0
        %434 = vmatprep.subr.bf16.mxu0 0
        %435 = vmatpush1.bf16.msra.mxu0 0
        %436 = vmatprep.subr.bf16.mxu0 0
        %437 = vmatpush1.bf16.msra.mxu0 0
        %438 = vmatprep.subr.bf16.mxu0 0
        %439 = vmatpush1.bf16.msra.mxu0 0
        %440 = vmatprep.subr.bf16.mxu0 0
        %441 = vmatpush1.bf16.msra.mxu0 0
        %442 = vmatprep.subr.bf16.mxu0 0
        %443 = vmatpush1.bf16.msra.mxu0 0
        %444 = vmatprep.subr.bf16.mxu0 0
        %445 = vmatpush1.bf16.msra.mxu0 0
        %446 = vmatprep.subr.bf16.mxu0 0
        %447 = vmatpush1.bf16.msra.mxu0 0
        %448 = vmatprep.subr.bf16.mxu0 0
        %449 = vmatpush1.bf16.msra.mxu0 0
        %450 = vmatprep.subr.bf16.mxu0 0
        %451 = vmatpush1.bf16.msra.mxu0 0
        %452 = vmatprep.subr.bf16.mxu0 0
        %453 = vmatpush1.bf16.msra.mxu0 0
        %454 = vmatprep.mubr.bf16.mxu0 0
        %455 = vmatmul.mubr.bf16.gmra.mrb[0].mxu0 %v395
        %v456 = vpop.f32.mrb[0].mxu0
        %v457 = vadd.f32 %v351, %v456
        %v458 = vpop.f32.mrb[0].mxu0
        %v459 = vpop.f32.mrb[0].mxu0
        %v460 = vadd.f32 %v351, %v459
        %v461 = vpop.f32.mrb[0].mxu0
        %462 = vmatprep.mubr.bf16.mxu0 0
        %463 = vmatmul.mubr.bf16.gmra.mrb[0].mxu0 %v398
        %v464 = vpop.f32.mrb[0].mxu0
        %v465 = vadd.f32 %v351, %v464
        %v466 = vpop.f32.mrb[0].mxu0
        %v467 = vpop.f32.mrb[0].mxu0
        %v468 = vadd.f32 %v351, %v467
        %v469 = vpop.f32.mrb[0].mxu0
        %470 = vmatprep.mubr.bf16.mxu0 0
        %471 = vmatmul.mubr.bf16.gmra.mrb[0].mxu0 %v401
        %v472 = vpop.f32.mrb[0].mxu0
        %v473 = vadd.f32 %v351, %v472
        %v474 = vpop.f32.mrb[0].mxu0
        %v475 = vpop.f32.mrb[0].mxu0
        %v476 = vadd.f32 %v351, %v475
        %v477 = vpop.f32.mrb[0].mxu0
        %478 = vmatprep.mubr.bf16.mxu0 0
        %479 = vmatmul.mubr.bf16.gmra.mrb[0].mxu0 %v404
        %v480 = vpop.f32.mrb[0].mxu0
        %v481 = vadd.f32 %v351, %v480
        %v482 = vpop.f32.mrb[0].mxu0
        %v483 = vpop.f32.mrb[0].mxu0
        %v484 = vadd.f32 %v351, %v483
        %v485 = vpop.f32.mrb[0].mxu0
        %486 = vmatprep.mubr.bf16.mxu0 0
        %487 = vmatmul.mubr.bf16.gmra.mrb[0].mxu0 %v407
        %v488 = vpop.f32.mrb[0].mxu0
        %v489 = vadd.f32 %v351, %v488
        %v490 = vpop.f32.mrb[0].mxu0
        %v491 = vpop.f32.mrb[0].mxu0
        %v492 = vadd.f32 %v351, %v491
        %v493 = vpop.f32.mrb[0].mxu0
        %494 = vmatprep.mubr.bf16.mxu0 0
        %495 = vmatmul.mubr.bf16.gmra.mrb[0].mxu0 %v410
        %v496 = vpop.f32.mrb[0].mxu0
        %v497 = vadd.f32 %v351, %v496
        %v498 = vpop.f32.mrb[0].mxu0
        %v499 = vpop.f32.mrb[0].mxu0
        %v500 = vadd.f32 %v351, %v499
        %v501 = vpop.f32.mrb[0].mxu0
        %502 = vmatprep.mubr.bf16.mxu0 0
        %503 = vmatmul.mubr.bf16.gmra.mrb[0].mxu0 %v413
        %v504 = vpop.f32.mrb[0].mxu0
        %v505 = vadd.f32 %v351, %v504
        %v506 = vpop.f32.mrb[0].mxu0
        %v507 = vpop.f32.mrb[0].mxu0
        %v508 = vadd.f32 %v351, %v507
        %v509 = vpop.f32.mrb[0].mxu0
        %510 = vmatprep.mubr.bf16.mxu0 0
        %511 = vmatmul.mubr.bf16.gmra.mrb[0].mxu0 %v416
        %v512 = vpop.f32.mrb[0].mxu0
        %v513 = vadd.f32 %v351, %v512
        %v514 = vpop.f32.mrb[0].mxu0
        %v515 = vpop.f32.mrb[0].mxu0
        %v516 = vadd.f32 %v351, %v515
        %v517 = vpop.f32.mrb[0].mxu0
        %518 = vdwg.mxu0
        %v519 = vmax.f32 %v457, 0.0
        %v520 = vmax.f32 %v460, 0.0
        %v521 = vmax.f32 %v465, 0.0
        %v522 = vmax.f32 %v468, 0.0
        %v523 = vmax.f32 %v473, 0.0
        %v524 = vmax.f32 %v476, 0.0
        %v525 = vmax.f32 %v481, 0.0
        %v526 = vmax.f32 %v484, 0.0
        %v527 = vmax.f32 %v489, 0.0
        %v528 = vmax.f32 %v492, 0.0
        %v529 = vmax.f32 %v497, 0.0
        %v530 = vmax.f32 %v500, 0.0
        %v531 = vmax.f32 %v505, 0.0
        %v532 = vmax.f32 %v508, 0.0
        %v533 = vmax.f32 %v513, 0.0
        %v534 = vmax.f32 %v516, 0.0
        %v535 = vpack.c.bf16 %v520, %v519
        %v536 = vpack.c.bf16 %v522, %v521
        %v537 = vpack.c.bf16 %v524, %v523
        %v538 = vpack.c.bf16 %v526, %v525
        %v539 = vpack.c.bf16 %v528, %v527
        %v540 = vpack.c.bf16 %v530, %v529
        %v541 = vpack.c.bf16 %v532, %v531
        %v542 = vpack.c.bf16 %v534, %v533
        %v543 = vld [vmem:[%s3] sm:$0xf]
        %v544 = vld [vmem:[%s3 + $0x4] sm:$0xf]
        %v545 = vld [vmem:[%s3 + $0x8] sm:$0xf]
        %v546 = vld [vmem:[%s3 + $0xc] sm:$0xf]
        %v547 = vld [vmem:[%s3 + $0x10] sm:$0xf]
        %v548 = vld [vmem:[%s3 + $0x14] sm:$0xf]
        %v549 = vld [vmem:[%s3 + $0x18] sm:$0xf]
        %v550 = vld [vmem:[%s3 + $0x1c] sm:$0xf]
        %v551 = vld [vmem:[%s4] sm:$0x1]
        %v553 = vlaneseq
        %v554 = vshrl.u32 %v553, 7
        %v555 = vsub.s32 0, %v554
        %v556 = vrot.slane %v551, %v555
        %v566 = vunpack.c.l.b16 %v543
        %v567 = vunpack.c.l.b16 %v544
        %v568 = vunpack.c.l.b16 %v545
        %v569 = vunpack.c.l.b16 %v546
        %v570 = vunpack.c.l.b16 %v547
        %v571 = vunpack.c.l.b16 %v548
        %v572 = vunpack.c.l.b16 %v549
        %v573 = vunpack.c.l.b16 %v550
        %v574 = vpack.c.b16 %v567, %v566
        %v575 = vpack.c.b16 %v569, %v568
        %v576 = vpack.c.b16 %v571, %v570
        %v577 = vpack.c.b16 %v573, %v572
        %vm582 = vcmask 523264
        %v584 = vsel %vm582, %v535, 0
        %v587 = vsel %vm582, %v536, 0
        %v590 = vsel %vm582, %v537, 0
        %v593 = vsel %vm582, %v538, 0
        %v596 = vsel %vm582, %v539, 0
        %v599 = vsel %vm582, %v540, 0
        %v602 = vsel %vm582, %v541, 0
        %v605 = vsel %vm582, %v542, 0
        %607 = vmatprep.subr.bf16.mxu0 0
        %608 = vmatpush1.bf16.msra.mxu0 %v574
        %609 = vmatprep.subr.bf16.mxu0 0
        %610 = vmatpush1.bf16.msra.mxu0 %v575
        %611 = vmatprep.subr.bf16.mxu0 0
        %612 = vmatpush1.bf16.msra.mxu0 %v576
        %613 = vmatprep.subr.bf16.mxu0 0
        %614 = vmatpush1.bf16.msra.mxu0 %v577
        %615 = vmatprep.subr.bf16.mxu0 0
        %616 = vmatpush1.bf16.msra.mxu0 0
        %617 = vmatprep.subr.bf16.mxu0 0
        %618 = vmatpush1.bf16.msra.mxu0 0
        %619 = vmatprep.subr.bf16.mxu0 0
        %620 = vmatpush1.bf16.msra.mxu0 0
        %621 = vmatprep.subr.bf16.mxu0 0
        %622 = vmatpush1.bf16.msra.mxu0 0
        %623 = vmatprep.subr.bf16.mxu0 0
        %624 = vmatpush1.bf16.msra.mxu0 0
        %625 = vmatprep.subr.bf16.mxu0 0
        %626 = vmatpush1.bf16.msra.mxu0 0
        %627 = vmatprep.subr.bf16.mxu0 0
        %628 = vmatpush1.bf16.msra.mxu0 0
        %629 = vmatprep.subr.bf16.mxu0 0
        %630 = vmatpush1.bf16.msra.mxu0 0
        %631 = vmatprep.subr.bf16.mxu0 0
        %632 = vmatpush1.bf16.msra.mxu0 0
        %633 = vmatprep.subr.bf16.mxu0 0
        %634 = vmatpush1.bf16.msra.mxu0 0
        %635 = vmatprep.subr.bf16.mxu0 0
        %636 = vmatpush1.bf16.msra.mxu0 0
        %637 = vmatprep.subr.bf16.mxu0 0
        %638 = vmatpush1.bf16.msra.mxu0 0
        %639 = vmatprep.mubr.bf16.mxu0 0
        %640 = vmatmul.mubr.bf16.gmra.mrb[0].mxu0 %v584
        %v641 = vpop.f32.mrb[0].mxu0
        %v642 = vadd.f32 %v556, %v641
        %v643 = vpop.f32.mrb[0].mxu0
        %v644 = vpop.f32.mrb[0].mxu0
        %v645 = vadd.f32 %v556, %v644
        %v646 = vpop.f32.mrb[0].mxu0
        %647 = vmatprep.mubr.bf16.mxu0 0
        %648 = vmatmul.mubr.bf16.gmra.mrb[0].mxu0 %v587
        %v649 = vpop.f32.mrb[0].mxu0
        %v650 = vadd.f32 %v556, %v649
        %v651 = vpop.f32.mrb[0].mxu0
        %v652 = vpop.f32.mrb[0].mxu0
        %v653 = vadd.f32 %v556, %v652
        %v654 = vpop.f32.mrb[0].mxu0
        %655 = vmatprep.mubr.bf16.mxu0 0
        %656 = vmatmul.mubr.bf16.gmra.mrb[0].mxu0 %v590
        %v657 = vpop.f32.mrb[0].mxu0
        %v658 = vadd.f32 %v556, %v657
        %v659 = vpop.f32.mrb[0].mxu0
        %v660 = vpop.f32.mrb[0].mxu0
        %v661 = vadd.f32 %v556, %v660
        %v662 = vpop.f32.mrb[0].mxu0
        %663 = vmatprep.mubr.bf16.mxu0 0
        %664 = vmatmul.mubr.bf16.gmra.mrb[0].mxu0 %v593
        %v665 = vpop.f32.mrb[0].mxu0
        %v666 = vadd.f32 %v556, %v665
        %v667 = vpop.f32.mrb[0].mxu0
        %v668 = vpop.f32.mrb[0].mxu0
        %v669 = vadd.f32 %v556, %v668
        %v670 = vpop.f32.mrb[0].mxu0
        %671 = vmatprep.mubr.bf16.mxu0 0
        %672 = vmatmul.mubr.bf16.gmra.mrb[0].mxu0 %v596
        %v673 = vpop.f32.mrb[0].mxu0
        %v674 = vadd.f32 %v556, %v673
        %v675 = vpop.f32.mrb[0].mxu0
        %v676 = vpop.f32.mrb[0].mxu0
        %v677 = vadd.f32 %v556, %v676
        %v678 = vpop.f32.mrb[0].mxu0
        %679 = vmatprep.mubr.bf16.mxu0 0
        %680 = vmatmul.mubr.bf16.gmra.mrb[0].mxu0 %v599
        %v681 = vpop.f32.mrb[0].mxu0
        %v682 = vadd.f32 %v556, %v681
        %v683 = vpop.f32.mrb[0].mxu0
        %v684 = vpop.f32.mrb[0].mxu0
        %v685 = vadd.f32 %v556, %v684
        %v686 = vpop.f32.mrb[0].mxu0
        %687 = vmatprep.mubr.bf16.mxu0 0
        %688 = vmatmul.mubr.bf16.gmra.mrb[0].mxu0 %v602
        %v689 = vpop.f32.mrb[0].mxu0
        %v690 = vadd.f32 %v556, %v689
        %v691 = vpop.f32.mrb[0].mxu0
        %v692 = vpop.f32.mrb[0].mxu0
        %v693 = vadd.f32 %v556, %v692
        %v694 = vpop.f32.mrb[0].mxu0
        %695 = vmatprep.mubr.bf16.mxu0 0
        %696 = vmatmul.mubr.bf16.gmra.mrb[0].mxu0 %v605
        %v697 = vpop.f32.mrb[0].mxu0
        %v698 = vadd.f32 %v556, %v697
        %v699 = vpop.f32.mrb[0].mxu0
        %v700 = vpop.f32.mrb[0].mxu0
        %v701 = vadd.f32 %v556, %v700
        %v702 = vpop.f32.mrb[0].mxu0
        %703 = vdwg.mxu0
        %v704 = vmax.f32 %v642, 0.0
        %v705 = vmax.f32 %v645, 0.0
        %v706 = vmax.f32 %v650, 0.0
        %v707 = vmax.f32 %v653, 0.0
        %v708 = vmax.f32 %v658, 0.0
        %v709 = vmax.f32 %v661, 0.0
        %v710 = vmax.f32 %v666, 0.0
        %v711 = vmax.f32 %v669, 0.0
        %v712 = vmax.f32 %v674, 0.0
        %v713 = vmax.f32 %v677, 0.0
        %v714 = vmax.f32 %v682, 0.0
        %v715 = vmax.f32 %v685, 0.0
        %v716 = vmax.f32 %v690, 0.0
        %v717 = vmax.f32 %v693, 0.0
        %v718 = vmax.f32 %v698, 0.0
        %v719 = vmax.f32 %v701, 0.0
        %v720 = vpack.c.bf16 %v705, %v704
        %v721 = vpack.c.bf16 %v707, %v706
        %v722 = vpack.c.bf16 %v709, %v708
        %v723 = vpack.c.bf16 %v711, %v710
        %v724 = vpack.c.bf16 %v713, %v712
        %v725 = vpack.c.bf16 %v715, %v714
        %v726 = vpack.c.bf16 %v717, %v716
        %v727 = vpack.c.bf16 %v719, %v718
        %v728 = vld [vmem:[%s5] sm:$0xff]
        %v729 = vld [vmem:[%s5 + $0x8] sm:$0xff]
        %v730 = vld [vmem:[%s5 + $0x10] sm:$0xff]
        %v731 = vld [vmem:[%s5 + $0x18] sm:$0xff]
        %v732 = vld [vmem:[%s5 + $0x20] sm:$0xff]
        %v733 = vld [vmem:[%s5 + $0x28] sm:$0xff]
        %v734 = vld [vmem:[%s5 + $0x30] sm:$0xff]
        %v735 = vld [vmem:[%s5 + $0x38] sm:$0xff]
        %v736 = vld [vmem:[%s5 + $0x40] sm:$0xff]
        %v737 = vld [vmem:[%s5 + $0x48] sm:$0xff]
        %v738 = vld [vmem:[%s5 + $0x50] sm:$0xff]
        %v739 = vld [vmem:[%s5 + $0x58] sm:$0xff]
        %v740 = vld [vmem:[%s5 + $0x60] sm:$0xff]
        %v741 = vld [vmem:[%s5 + $0x68] sm:$0xff]
        %v742 = vld [vmem:[%s5 + $0x70] sm:$0xff]
        %v743 = vld [vmem:[%s5 + $0x78] sm:$0xff]
        %v744 = vld [vmem:[%s5 + $0x80] sm:$0xff]
        %v745 = vld [vmem:[%s5 + $0x88] sm:$0xff]
        %v746 = vld [vmem:[%s5 + $0x90] sm:$0xff]
        %v747 = vld [vmem:[%s5 + $0x98] sm:$0xff]
        %v748 = vld [vmem:[%s5 + $0xa0] sm:$0xff]
        %v749 = vld [vmem:[%s5 + $0xa8] sm:$0xff]
        %v750 = vld [vmem:[%s5 + $0xb0] sm:$0xff]
        %v751 = vld [vmem:[%s5 + $0xb8] sm:$0xff]
        %v752 = vld [vmem:[%s5 + $0xc0] sm:$0xff]
        %v753 = vld [vmem:[%s5 + $0xc8] sm:$0xff]
        %v754 = vld [vmem:[%s5 + $0xd0] sm:$0xff]
        %v755 = vld [vmem:[%s5 + $0xd8] sm:$0xff]
        %v756 = vld [vmem:[%s5 + $0xe0] sm:$0xff]
        %v757 = vld [vmem:[%s5 + $0xe8] sm:$0xff]
        %v758 = vld [vmem:[%s5 + $0xf0] sm:$0xff]
        %v759 = vld [vmem:[%s5 + $0xf8] sm:$0xff]
        %v760 = vld [vmem:[%s5 + $0x100] sm:$0xff]
        %v761 = vld [vmem:[%s5 + $0x108] sm:$0xff]
        %v762 = vld [vmem:[%s5 + $0x110] sm:$0xff]
        %v763 = vld [vmem:[%s5 + $0x118] sm:$0xff]
        %v764 = vld [vmem:[%s5 + $0x120] sm:$0xff]
        %v765 = vld [vmem:[%s5 + $0x128] sm:$0xff]
        %v766 = vld [vmem:[%s5 + $0x130] sm:$0xff]
        %v767 = vld [vmem:[%s5 + $0x138] sm:$0xff]
        %v768 = vld [vmem:[%s5 + $0x140] sm:$0xff]
        %v769 = vld [vmem:[%s5 + $0x148] sm:$0xff]
        %v770 = vld [vmem:[%s5 + $0x150] sm:$0xff]
        %v771 = vld [vmem:[%s5 + $0x158] sm:$0xff]
        %v772 = vld [vmem:[%s5 + $0x160] sm:$0xff]
        %v773 = vld [vmem:[%s5 + $0x168] sm:$0xff]
        %v774 = vld [vmem:[%s5 + $0x170] sm:$0xff]
        %v775 = vld [vmem:[%s5 + $0x178] sm:$0xff]
        %v776 = vld [vmem:[%s5 + $0x180] sm:$0xff]
        %v777 = vld [vmem:[%s5 + $0x188] sm:$0xff]
        %v778 = vld [vmem:[%s5 + $0x190] sm:$0xff]
        %v779 = vld [vmem:[%s5 + $0x198] sm:$0xff]
        %v780 = vld [vmem:[%s5 + $0x1a0] sm:$0xff]
        %v781 = vld [vmem:[%s5 + $0x1a8] sm:$0xff]
        %v782 = vld [vmem:[%s5 + $0x1b0] sm:$0xff]
        %v783 = vld [vmem:[%s5 + $0x1b8] sm:$0xff]
        %v784 = vld [vmem:[%s5 + $0x1c0] sm:$0xff]
        %v785 = vld [vmem:[%s5 + $0x1c8] sm:$0xff]
        %v786 = vld [vmem:[%s5 + $0x1d0] sm:$0xff]
        %v787 = vld [vmem:[%s5 + $0x1d8] sm:$0xff]
        %v788 = vld [vmem:[%s5 + $0x1e0] sm:$0xff]
        %v789 = vld [vmem:[%s5 + $0x1e8] sm:$0xff]
        %v790 = vld [vmem:[%s5 + $0x1f0] sm:$0xff]
        %v791 = vld [vmem:[%s5 + $0x1f8] sm:$0xff]
        %v856 = vunpack.c.l.b16 %v728
        %v857 = vunpack.c.h.b16 %v728
        %v858 = vunpack.c.l.b16 %v729
        %v859 = vunpack.c.h.b16 %v729
        %v860 = vunpack.c.l.b16 %v730
        %v861 = vunpack.c.h.b16 %v730
        %v862 = vunpack.c.l.b16 %v731
        %v863 = vunpack.c.h.b16 %v731
        %v864 = vunpack.c.l.b16 %v732
        %v865 = vunpack.c.h.b16 %v732
        %v866 = vunpack.c.l.b16 %v733
        %v867 = vunpack.c.h.b16 %v733
        %v868 = vunpack.c.l.b16 %v734
        %v869 = vunpack.c.h.b16 %v734
        %v870 = vunpack.c.l.b16 %v735
        %v871 = vunpack.c.h.b16 %v735
        %v872 = vunpack.c.l.b16 %v736
        %v873 = vunpack.c.h.b16 %v736
        %v874 = vunpack.c.l.b16 %v737
        %v875 = vunpack.c.h.b16 %v737
        %v876 = vunpack.c.l.b16 %v738
        %v877 = vunpack.c.h.b16 %v738
        %v878 = vunpack.c.l.b16 %v739
        %v879 = vunpack.c.h.b16 %v739
        %v880 = vunpack.c.l.b16 %v740
        %v881 = vunpack.c.h.b16 %v740
        %v882 = vunpack.c.l.b16 %v741
        %v883 = vunpack.c.h.b16 %v741
        %v884 = vunpack.c.l.b16 %v742
        %v885 = vunpack.c.h.b16 %v742
        %v886 = vunpack.c.l.b16 %v743
        %v887 = vunpack.c.h.b16 %v743
        %v888 = vunpack.c.l.b16 %v744
        %v889 = vunpack.c.h.b16 %v744
        %v890 = vunpack.c.l.b16 %v745
        %v891 = vunpack.c.h.b16 %v745
        %v892 = vunpack.c.l.b16 %v746
        %v893 = vunpack.c.h.b16 %v746
        %v894 = vunpack.c.l.b16 %v747
        %v895 = vunpack.c.h.b16 %v747
        %v896 = vunpack.c.l.b16 %v748
        %v897 = vunpack.c.h.b16 %v748
        %v898 = vunpack.c.l.b16 %v749
        %v899 = vunpack.c.h.b16 %v749
        %v900 = vunpack.c.l.b16 %v750
        %v901 = vunpack.c.h.b16 %v750
        %v902 = vunpack.c.l.b16 %v751
        %v903 = vunpack.c.h.b16 %v751
        %v904 = vunpack.c.l.b16 %v752
        %v905 = vunpack.c.h.b16 %v752
        %v906 = vunpack.c.l.b16 %v753
        %v907 = vunpack.c.h.b16 %v753
        %v908 = vunpack.c.l.b16 %v754
        %v909 = vunpack.c.h.b16 %v754
        %v910 = vunpack.c.l.b16 %v755
        %v911 = vunpack.c.h.b16 %v755
        %v912 = vunpack.c.l.b16 %v756
        %v913 = vunpack.c.h.b16 %v756
        %v914 = vunpack.c.l.b16 %v757
        %v915 = vunpack.c.h.b16 %v757
        %v916 = vunpack.c.l.b16 %v758
        %v917 = vunpack.c.h.b16 %v758
        %v918 = vunpack.c.l.b16 %v759
        %v919 = vunpack.c.h.b16 %v759
        %v920 = vunpack.c.l.b16 %v760
        %v921 = vunpack.c.h.b16 %v760
        %v922 = vunpack.c.l.b16 %v761
        %v923 = vunpack.c.h.b16 %v761
        %v924 = vunpack.c.l.b16 %v762
        %v925 = vunpack.c.h.b16 %v762
        %v926 = vunpack.c.l.b16 %v763
        %v927 = vunpack.c.h.b16 %v763
        %v928 = vunpack.c.l.b16 %v764
        %v929 = vunpack.c.h.b16 %v764
        %v930 = vunpack.c.l.b16 %v765
        %v931 = vunpack.c.h.b16 %v765
        %v932 = vunpack.c.l.b16 %v766
        %v933 = vunpack.c.h.b16 %v766
        %v934 = vunpack.c.l.b16 %v767
        %v935 = vunpack.c.h.b16 %v767
        %v936 = vunpack.c.l.b16 %v768
        %v937 = vunpack.c.h.b16 %v768
        %v938 = vunpack.c.l.b16 %v769
        %v939 = vunpack.c.h.b16 %v769
        %v940 = vunpack.c.l.b16 %v770
        %v941 = vunpack.c.h.b16 %v770
        %v942 = vunpack.c.l.b16 %v771
        %v943 = vunpack.c.h.b16 %v771
        %v944 = vunpack.c.l.b16 %v772
        %v945 = vunpack.c.h.b16 %v772
        %v946 = vunpack.c.l.b16 %v773
        %v947 = vunpack.c.h.b16 %v773
        %v948 = vunpack.c.l.b16 %v774
        %v949 = vunpack.c.h.b16 %v774
        %v950 = vunpack.c.l.b16 %v775
        %v951 = vunpack.c.h.b16 %v775
        %v952 = vunpack.c.l.b16 %v776
        %v953 = vunpack.c.h.b16 %v776
        %v954 = vunpack.c.l.b16 %v777
        %v955 = vunpack.c.h.b16 %v777
        %v956 = vunpack.c.l.b16 %v778
        %v957 = vunpack.c.h.b16 %v778
        %v958 = vunpack.c.l.b16 %v779
        %v959 = vunpack.c.h.b16 %v779
        %v960 = vunpack.c.l.b16 %v780
        %v961 = vunpack.c.h.b16 %v780
        %v962 = vunpack.c.l.b16 %v781
        %v963 = vunpack.c.h.b16 %v781
        %v964 = vunpack.c.l.b16 %v782
        %v965 = vunpack.c.h.b16 %v782
        %v966 = vunpack.c.l.b16 %v783
        %v967 = vunpack.c.h.b16 %v783
        %v968 = vunpack.c.l.b16 %v784
        %v969 = vunpack.c.h.b16 %v784
        %v970 = vunpack.c.l.b16 %v785
        %v971 = vunpack.c.h.b16 %v785
        %v972 = vunpack.c.l.b16 %v786
        %v973 = vunpack.c.h.b16 %v786
        %v974 = vunpack.c.l.b16 %v787
        %v975 = vunpack.c.h.b16 %v787
        %v976 = vunpack.c.l.b16 %v788
        %v977 = vunpack.c.h.b16 %v788
        %v978 = vunpack.c.l.b16 %v789
        %v979 = vunpack.c.h.b16 %v789
        %v980 = vunpack.c.l.b16 %v790
        %v981 = vunpack.c.h.b16 %v790
        %v982 = vunpack.c.l.b16 %v791
        %v983 = vunpack.c.h.b16 %v791
        %v984 = vpack.c.b16 %v864, %v856
        %v985 = vpack.c.b16 %v865, %v857
        %v986 = vpack.c.b16 %v866, %v858
        %v987 = vpack.c.b16 %v867, %v859
        %v988 = vpack.c.b16 %v868, %v860
        %v989 = vpack.c.b16 %v869, %v861
        %v990 = vpack.c.b16 %v870, %v862
        %v991 = vpack.c.b16 %v871, %v863
        %v992 = vpack.c.b16 %v880, %v872
        %v993 = vpack.c.b16 %v881, %v873
        %v994 = vpack.c.b16 %v882, %v874
        %v995 = vpack.c.b16 %v883, %v875
        %v996 = vpack.c.b16 %v884, %v876
        %v997 = vpack.c.b16 %v885, %v877
        %v998 = vpack.c.b16 %v886, %v878
        %v999 = vpack.c.b16 %v887, %v879
        %v1000 = vpack.c.b16 %v896, %v888
        %v1001 = vpack.c.b16 %v897, %v889
        %v1002 = vpack.c.b16 %v898, %v890
        %v1003 = vpack.c.b16 %v899, %v891
        %v1004 = vpack.c.b16 %v900, %v892
        %v1005 = vpack.c.b16 %v901, %v893
        %v1006 = vpack.c.b16 %v902, %v894
        %v1007 = vpack.c.b16 %v903, %v895
        %v1008 = vpack.c.b16 %v912, %v904
        %v1009 = vpack.c.b16 %v913, %v905
        %v1010 = vpack.c.b16 %v914, %v906
        %v1011 = vpack.c.b16 %v915, %v907
        %v1012 = vpack.c.b16 %v916, %v908
        %v1013 = vpack.c.b16 %v917, %v909
        %v1014 = vpack.c.b16 %v918, %v910
        %v1015 = vpack.c.b16 %v919, %v911
        %v1016 = vpack.c.b16 %v928, %v920
        %v1017 = vpack.c.b16 %v929, %v921
        %v1018 = vpack.c.b16 %v930, %v922
        %v1019 = vpack.c.b16 %v931, %v923
        %v1020 = vpack.c.b16 %v932, %v924
        %v1021 = vpack.c.b16 %v933, %v925
        %v1022 = vpack.c.b16 %v934, %v926
        %v1023 = vpack.c.b16 %v935, %v927
        %v1024 = vpack.c.b16 %v944, %v936
        %v1025 = vpack.c.b16 %v945, %v937
        %v1026 = vpack.c.b16 %v946, %v938
        %v1027 = vpack.c.b16 %v947, %v939
        %v1028 = vpack.c.b16 %v948, %v940
        %v1029 = vpack.c.b16 %v949, %v941
        %v1030 = vpack.c.b16 %v950, %v942
        %v1031 = vpack.c.b16 %v951, %v943
        %v1032 = vpack.c.b16 %v960, %v952
        %v1033 = vpack.c.b16 %v961, %v953
        %v1034 = vpack.c.b16 %v962, %v954
        %v1035 = vpack.c.b16 %v963, %v955
        %v1036 = vpack.c.b16 %v964, %v956
        %v1037 = vpack.c.b16 %v965, %v957
        %v1038 = vpack.c.b16 %v966, %v958
        %v1039 = vpack.c.b16 %v967, %v959
        %v1040 = vpack.c.b16 %v976, %v968
        %v1041 = vpack.c.b16 %v977, %v969
        %v1042 = vpack.c.b16 %v978, %v970
        %v1043 = vpack.c.b16 %v979, %v971
        %v1044 = vpack.c.b16 %v980, %v972
        %v1045 = vpack.c.b16 %v981, %v973
        %v1046 = vpack.c.b16 %v982, %v974
        %v1047 = vpack.c.b16 %v983, %v975
        %1112 = vmatprep.subr.bf16.mxu0 %v985
        %1113 = vmatpush1.bf16.msra.mxu0 %v984
        %1114 = vmatprep.subr.bf16.mxu0 %v993
        %1115 = vmatpush1.bf16.msra.mxu0 %v992
        %1116 = vmatprep.subr.bf16.mxu0 %v1001
        %1117 = vmatpush1.bf16.msra.mxu0 %v1000
        %1118 = vmatprep.subr.bf16.mxu0 %v1009
        %1119 = vmatpush1.bf16.msra.mxu0 %v1008
        %1120 = vmatprep.subr.bf16.mxu0 %v1017
        %1121 = vmatpush1.bf16.msra.mxu0 %v1016
        %1122 = vmatprep.subr.bf16.mxu0 %v1025
        %1123 = vmatpush1.bf16.msra.mxu0 %v1024
        %1124 = vmatprep.subr.bf16.mxu0 %v1033
        %1125 = vmatpush1.bf16.msra.mxu0 %v1032
        %1126 = vmatprep.subr.bf16.mxu0 %v1041
        %1127 = vmatpush1.bf16.msra.mxu0 %v1040
        %1128 = vmatprep.subr.bf16.mxu0 0
        %1129 = vmatpush1.bf16.msra.mxu0 0
        %1130 = vmatprep.subr.bf16.mxu0 0
        %1131 = vmatpush1.bf16.msra.mxu0 0
        %1132 = vmatprep.subr.bf16.mxu0 0
        %1133 = vmatpush1.bf16.msra.mxu0 0
        %1134 = vmatprep.subr.bf16.mxu0 0
        %1135 = vmatpush1.bf16.msra.mxu0 0
        %1136 = vmatprep.subr.bf16.mxu0 0
        %1137 = vmatpush1.bf16.msra.mxu0 0
        %1138 = vmatprep.subr.bf16.mxu0 0
        %1139 = vmatpush1.bf16.msra.mxu0 0
        %1140 = vmatprep.subr.bf16.mxu0 0
        %1141 = vmatpush1.bf16.msra.mxu0 0
        %1142 = vmatprep.subr.bf16.mxu0 0
        %1143 = vmatpush1.bf16.msra.mxu0 0
        %1144 = vmatprep.mubr.bf16.mxu0 0
        %1145 = vmatmul.mubr.bf16.gmra.mrb[0].mxu0 %v720
        %v1146 = vpop.f32.mrb[0].mxu0
        %v1147 = vadd.f32 0.0, %v1146
        %v1148 = vpop.f32.mrb[0].mxu0
        %v1149 = vadd.f32 0.0, %v1148
        %v1150 = vpop.f32.mrb[0].mxu0
        %v1151 = vadd.f32 0.0, %v1150
        %v1152 = vpop.f32.mrb[0].mxu0
        %v1153 = vadd.f32 0.0, %v1152
        %1154 = vmatprep.mubr.bf16.mxu0 0
        %1155 = vmatmul.mubr.bf16.gmra.mrb[0].mxu0 %v721
        %v1156 = vpop.f32.mrb[0].mxu0
        %v1157 = vadd.f32 0.0, %v1156
        %v1158 = vpop.f32.mrb[0].mxu0
        %v1159 = vadd.f32 0.0, %v1158
        %v1160 = vpop.f32.mrb[0].mxu0
        %v1161 = vadd.f32 0.0, %v1160
        %v1162 = vpop.f32.mrb[0].mxu0
        %v1163 = vadd.f32 0.0, %v1162
        %1164 = vmatprep.mubr.bf16.mxu0 0
        %1165 = vmatmul.mubr.bf16.gmra.mrb[0].mxu0 %v722
        %v1166 = vpop.f32.mrb[0].mxu0
        %v1167 = vadd.f32 0.0, %v1166
        %v1168 = vpop.f32.mrb[0].mxu0
        %v1169 = vadd.f32 0.0, %v1168
        %v1170 = vpop.f32.mrb[0].mxu0
        %v1171 = vadd.f32 0.0, %v1170
        %v1172 = vpop.f32.mrb[0].mxu0
        %v1173 = vadd.f32 0.0, %v1172
        %1174 = vmatprep.mubr.bf16.mxu0 0
        %1175 = vmatmul.mubr.bf16.gmra.mrb[0].mxu0 %v723
        %v1176 = vpop.f32.mrb[0].mxu0
        %v1177 = vadd.f32 0.0, %v1176
        %v1178 = vpop.f32.mrb[0].mxu0
        %v1179 = vadd.f32 0.0, %v1178
        %v1180 = vpop.f32.mrb[0].mxu0
        %v1181 = vadd.f32 0.0, %v1180
        %v1182 = vpop.f32.mrb[0].mxu0
        %v1183 = vadd.f32 0.0, %v1182
        %1184 = vmatprep.mubr.bf16.mxu0 0
        %1185 = vmatmul.mubr.bf16.gmra.mrb[0].mxu0 %v724
        %v1186 = vpop.f32.mrb[0].mxu0
        %v1187 = vadd.f32 0.0, %v1186
        %v1188 = vpop.f32.mrb[0].mxu0
        %v1189 = vadd.f32 0.0, %v1188
        %v1190 = vpop.f32.mrb[0].mxu0
        %v1191 = vadd.f32 0.0, %v1190
        %v1192 = vpop.f32.mrb[0].mxu0
        %v1193 = vadd.f32 0.0, %v1192
        %1194 = vmatprep.mubr.bf16.mxu0 0
        %1195 = vmatmul.mubr.bf16.gmra.mrb[0].mxu0 %v725
        %v1196 = vpop.f32.mrb[0].mxu0
        %v1197 = vadd.f32 0.0, %v1196
        %v1198 = vpop.f32.mrb[0].mxu0
        %v1199 = vadd.f32 0.0, %v1198
        %v1200 = vpop.f32.mrb[0].mxu0
        %v1201 = vadd.f32 0.0, %v1200
        %v1202 = vpop.f32.mrb[0].mxu0
        %v1203 = vadd.f32 0.0, %v1202
        %1204 = vmatprep.mubr.bf16.mxu0 0
        %1205 = vmatmul.mubr.bf16.gmra.mrb[0].mxu0 %v726
        %v1206 = vpop.f32.mrb[0].mxu0
        %v1207 = vadd.f32 0.0, %v1206
        %v1208 = vpop.f32.mrb[0].mxu0
        %v1209 = vadd.f32 0.0, %v1208
        %v1210 = vpop.f32.mrb[0].mxu0
        %v1211 = vadd.f32 0.0, %v1210
        %v1212 = vpop.f32.mrb[0].mxu0
        %v1213 = vadd.f32 0.0, %v1212
        %1214 = vmatprep.mubr.bf16.mxu0 0
        %1215 = vmatmul.mubr.bf16.gmra.mrb[0].mxu0 %v727
        %v1216 = vpop.f32.mrb[0].mxu0
        %v1217 = vadd.f32 0.0, %v1216
        %v1218 = vpop.f32.mrb[0].mxu0
        %v1219 = vadd.f32 0.0, %v1218
        %v1220 = vpop.f32.mrb[0].mxu0
        %v1221 = vadd.f32 0.0, %v1220
        %v1222 = vpop.f32.mrb[0].mxu0
        %v1223 = vadd.f32 0.0, %v1222
        %1224 = vdwg.mxu0
        %1225 = vmatprep.subr.bf16.mxu0 %v987
        %1226 = vmatpush1.bf16.msra.mxu0 %v986
        %1227 = vmatprep.subr.bf16.mxu0 %v995
        %1228 = vmatpush1.bf16.msra.mxu0 %v994
        %1229 = vmatprep.subr.bf16.mxu0 %v1003
        %1230 = vmatpush1.bf16.msra.mxu0 %v1002
        %1231 = vmatprep.subr.bf16.mxu0 %v1011
        %1232 = vmatpush1.bf16.msra.mxu0 %v1010
        %1233 = vmatprep.subr.bf16.mxu0 %v1019
        %1234 = vmatpush1.bf16.msra.mxu0 %v1018
        %1235 = vmatprep.subr.bf16.mxu0 %v1027
        %1236 = vmatpush1.bf16.msra.mxu0 %v1026
        %1237 = vmatprep.subr.bf16.mxu0 %v1035
        %1238 = vmatpush1.bf16.msra.mxu0 %v1034
        %1239 = vmatprep.subr.bf16.mxu0 %v1043
        %1240 = vmatpush1.bf16.msra.mxu0 %v1042
        %1241 = vmatprep.subr.bf16.mxu0 0
        %1242 = vmatpush1.bf16.msra.mxu0 0
        %1243 = vmatprep.subr.bf16.mxu0 0
        %1244 = vmatpush1.bf16.msra.mxu0 0
        %1245 = vmatprep.subr.bf16.mxu0 0
        %1246 = vmatpush1.bf16.msra.mxu0 0
        %1247 = vmatprep.subr.bf16.mxu0 0
        %1248 = vmatpush1.bf16.msra.mxu0 0
        %1249 = vmatprep.subr.bf16.mxu0 0
        %1250 = vmatpush1.bf16.msra.mxu0 0
        %1251 = vmatprep.subr.bf16.mxu0 0
        %1252 = vmatpush1.bf16.msra.mxu0 0
        %1253 = vmatprep.subr.bf16.mxu0 0
        %1254 = vmatpush1.bf16.msra.mxu0 0
        %1255 = vmatprep.subr.bf16.mxu0 0
        %1256 = vmatpush1.bf16.msra.mxu0 0
        %1257 = vmatprep.mubr.bf16.mxu0 0
        %1258 = vmatmul.mubr.bf16.gmra.mrb[0].mxu0 %v720
        %v1259 = vpop.f32.mrb[0].mxu0
        %v1260 = vadd.f32 0.0, %v1259
        %v1261 = vpop.f32.mrb[0].mxu0
        %v1262 = vadd.f32 0.0, %v1261
        %v1263 = vpop.f32.mrb[0].mxu0
        %v1264 = vadd.f32 0.0, %v1263
        %v1265 = vpop.f32.mrb[0].mxu0
        %v1266 = vadd.f32 0.0, %v1265
        %1267 = vmatprep.mubr.bf16.mxu0 0
        %1268 = vmatmul.mubr.bf16.gmra.mrb[0].mxu0 %v721
        %v1269 = vpop.f32.mrb[0].mxu0
        %v1270 = vadd.f32 0.0, %v1269
        %v1271 = vpop.f32.mrb[0].mxu0
        %v1272 = vadd.f32 0.0, %v1271
        %v1273 = vpop.f32.mrb[0].mxu0
        %v1274 = vadd.f32 0.0, %v1273
        %v1275 = vpop.f32.mrb[0].mxu0
        %v1276 = vadd.f32 0.0, %v1275
        %1277 = vmatprep.mubr.bf16.mxu0 0
        %1278 = vmatmul.mubr.bf16.gmra.mrb[0].mxu0 %v722
        %v1279 = vpop.f32.mrb[0].mxu0
        %v1280 = vadd.f32 0.0, %v1279
        %v1281 = vpop.f32.mrb[0].mxu0
        %v1282 = vadd.f32 0.0, %v1281
        %v1283 = vpop.f32.mrb[0].mxu0
        %v1284 = vadd.f32 0.0, %v1283
        %v1285 = vpop.f32.mrb[0].mxu0
        %v1286 = vadd.f32 0.0, %v1285
        %1287 = vmatprep.mubr.bf16.mxu0 0
        %1288 = vmatmul.mubr.bf16.gmra.mrb[0].mxu0 %v723
        %v1289 = vpop.f32.mrb[0].mxu0
        %v1290 = vadd.f32 0.0, %v1289
        %v1291 = vpop.f32.mrb[0].mxu0
        %v1292 = vadd.f32 0.0, %v1291
        %v1293 = vpop.f32.mrb[0].mxu0
        %v1294 = vadd.f32 0.0, %v1293
        %v1295 = vpop.f32.mrb[0].mxu0
        %v1296 = vadd.f32 0.0, %v1295
        %1297 = vmatprep.mubr.bf16.mxu0 0
        %1298 = vmatmul.mubr.bf16.gmra.mrb[0].mxu0 %v724
        %v1299 = vpop.f32.mrb[0].mxu0
        %v1300 = vadd.f32 0.0, %v1299
        %v1301 = vpop.f32.mrb[0].mxu0
        %v1302 = vadd.f32 0.0, %v1301
        %v1303 = vpop.f32.mrb[0].mxu0
        %v1304 = vadd.f32 0.0, %v1303
        %v1305 = vpop.f32.mrb[0].mxu0
        %v1306 = vadd.f32 0.0, %v1305
        %1307 = vmatprep.mubr.bf16.mxu0 0
        %1308 = vmatmul.mubr.bf16.gmra.mrb[0].mxu0 %v725
        %v1309 = vpop.f32.mrb[0].mxu0
        %v1310 = vadd.f32 0.0, %v1309
        %v1311 = vpop.f32.mrb[0].mxu0
        %v1312 = vadd.f32 0.0, %v1311
        %v1313 = vpop.f32.mrb[0].mxu0
        %v1314 = vadd.f32 0.0, %v1313
        %v1315 = vpop.f32.mrb[0].mxu0
        %v1316 = vadd.f32 0.0, %v1315
        %1317 = vmatprep.mubr.bf16.mxu0 0
        %1318 = vmatmul.mubr.bf16.gmra.mrb[0].mxu0 %v726
        %v1319 = vpop.f32.mrb[0].mxu0
        %v1320 = vadd.f32 0.0, %v1319
        %v1321 = vpop.f32.mrb[0].mxu0
        %v1322 = vadd.f32 0.0, %v1321
        %v1323 = vpop.f32.mrb[0].mxu0
        %v1324 = vadd.f32 0.0, %v1323
        %v1325 = vpop.f32.mrb[0].mxu0
        %v1326 = vadd.f32 0.0, %v1325
        %1327 = vmatprep.mubr.bf16.mxu0 0
        %1328 = vmatmul.mubr.bf16.gmra.mrb[0].mxu0 %v727
        %v1329 = vpop.f32.mrb[0].mxu0
        %v1330 = vadd.f32 0.0, %v1329
        %v1331 = vpop.f32.mrb[0].mxu0
        %v1332 = vadd.f32 0.0, %v1331
        %v1333 = vpop.f32.mrb[0].mxu0
        %v1334 = vadd.f32 0.0, %v1333
        %v1335 = vpop.f32.mrb[0].mxu0
        %v1336 = vadd.f32 0.0, %v1335
        %1337 = vdwg.mxu0
        %1338 = vmatprep.subr.bf16.mxu0 %v989
        %1339 = vmatpush1.bf16.msra.mxu0 %v988
        %1340 = vmatprep.subr.bf16.mxu0 %v997
        %1341 = vmatpush1.bf16.msra.mxu0 %v996
        %1342 = vmatprep.subr.bf16.mxu0 %v1005
        %1343 = vmatpush1.bf16.msra.mxu0 %v1004
        %1344 = vmatprep.subr.bf16.mxu0 %v1013
        %1345 = vmatpush1.bf16.msra.mxu0 %v1012
        %1346 = vmatprep.subr.bf16.mxu0 %v1021
        %1347 = vmatpush1.bf16.msra.mxu0 %v1020
        %1348 = vmatprep.subr.bf16.mxu0 %v1029
        %1349 = vmatpush1.bf16.msra.mxu0 %v1028
        %1350 = vmatprep.subr.bf16.mxu0 %v1037
        %1351 = vmatpush1.bf16.msra.mxu0 %v1036
        %1352 = vmatprep.subr.bf16.mxu0 %v1045
        %1353 = vmatpush1.bf16.msra.mxu0 %v1044
        %1354 = vmatprep.subr.bf16.mxu0 0
        %1355 = vmatpush1.bf16.msra.mxu0 0
        %1356 = vmatprep.subr.bf16.mxu0 0
        %1357 = vmatpush1.bf16.msra.mxu0 0
        %1358 = vmatprep.subr.bf16.mxu0 0
        %1359 = vmatpush1.bf16.msra.mxu0 0
        %1360 = vmatprep.subr.bf16.mxu0 0
        %1361 = vmatpush1.bf16.msra.mxu0 0
        %1362 = vmatprep.subr.bf16.mxu0 0
        %1363 = vmatpush1.bf16.msra.mxu0 0
        %1364 = vmatprep.subr.bf16.mxu0 0
        %1365 = vmatpush1.bf16.msra.mxu0 0
        %1366 = vmatprep.subr.bf16.mxu0 0
        %1367 = vmatpush1.bf16.msra.mxu0 0
        %1368 = vmatprep.subr.bf16.mxu0 0
        %1369 = vmatpush1.bf16.msra.mxu0 0
        %1370 = vmatprep.mubr.bf16.mxu0 0
        %1371 = vmatmul.mubr.bf16.gmra.mrb[0].mxu0 %v720
        %v1372 = vpop.f32.mrb[0].mxu0
        %v1373 = vadd.f32 0.0, %v1372
        %v1374 = vpop.f32.mrb[0].mxu0
        %v1375 = vadd.f32 0.0, %v1374
        %v1376 = vpop.f32.mrb[0].mxu0
        %v1377 = vadd.f32 0.0, %v1376
        %v1378 = vpop.f32.mrb[0].mxu0
        %v1379 = vadd.f32 0.0, %v1378
        %1380 = vmatprep.mubr.bf16.mxu0 0
        %1381 = vmatmul.mubr.bf16.gmra.mrb[0].mxu0 %v721
        %v1382 = vpop.f32.mrb[0].mxu0
        %v1383 = vadd.f32 0.0, %v1382
        %v1384 = vpop.f32.mrb[0].mxu0
        %v1385 = vadd.f32 0.0, %v1384
        %v1386 = vpop.f32.mrb[0].mxu0
        %v1387 = vadd.f32 0.0, %v1386
        %v1388 = vpop.f32.mrb[0].mxu0
        %v1389 = vadd.f32 0.0, %v1388
        %1390 = vmatprep.mubr.bf16.mxu0 0
        %1391 = vmatmul.mubr.bf16.gmra.mrb[0].mxu0 %v722
        %v1392 = vpop.f32.mrb[0].mxu0
        %v1393 = vadd.f32 0.0, %v1392
        %v1394 = vpop.f32.mrb[0].mxu0
        %v1395 = vadd.f32 0.0, %v1394
        %v1396 = vpop.f32.mrb[0].mxu0
        %v1397 = vadd.f32 0.0, %v1396
        %v1398 = vpop.f32.mrb[0].mxu0
        %v1399 = vadd.f32 0.0, %v1398
        %1400 = vmatprep.mubr.bf16.mxu0 0
        %1401 = vmatmul.mubr.bf16.gmra.mrb[0].mxu0 %v723
        %v1402 = vpop.f32.mrb[0].mxu0
        %v1403 = vadd.f32 0.0, %v1402
        %v1404 = vpop.f32.mrb[0].mxu0
        %v1405 = vadd.f32 0.0, %v1404
        %v1406 = vpop.f32.mrb[0].mxu0
        %v1407 = vadd.f32 0.0, %v1406
        %v1408 = vpop.f32.mrb[0].mxu0
        %v1409 = vadd.f32 0.0, %v1408
        %1410 = vmatprep.mubr.bf16.mxu0 0
        %1411 = vmatmul.mubr.bf16.gmra.mrb[0].mxu0 %v724
        %v1412 = vpop.f32.mrb[0].mxu0
        %v1413 = vadd.f32 0.0, %v1412
        %v1414 = vpop.f32.mrb[0].mxu0
        %v1415 = vadd.f32 0.0, %v1414
        %v1416 = vpop.f32.mrb[0].mxu0
        %v1417 = vadd.f32 0.0, %v1416
        %v1418 = vpop.f32.mrb[0].mxu0
        %v1419 = vadd.f32 0.0, %v1418
        %1420 = vmatprep.mubr.bf16.mxu0 0
        %1421 = vmatmul.mubr.bf16.gmra.mrb[0].mxu0 %v725
        %v1422 = vpop.f32.mrb[0].mxu0
        %v1423 = vadd.f32 0.0, %v1422
        %v1424 = vpop.f32.mrb[0].mxu0
        %v1425 = vadd.f32 0.0, %v1424
        %v1426 = vpop.f32.mrb[0].mxu0
        %v1427 = vadd.f32 0.0, %v1426
        %v1428 = vpop.f32.mrb[0].mxu0
        %v1429 = vadd.f32 0.0, %v1428
        %1430 = vmatprep.mubr.bf16.mxu0 0
        %1431 = vmatmul.mubr.bf16.gmra.mrb[0].mxu0 %v726
        %v1432 = vpop.f32.mrb[0].mxu0
        %v1433 = vadd.f32 0.0, %v1432
        %v1434 = vpop.f32.mrb[0].mxu0
        %v1435 = vadd.f32 0.0, %v1434
        %v1436 = vpop.f32.mrb[0].mxu0
        %v1437 = vadd.f32 0.0, %v1436
        %v1438 = vpop.f32.mrb[0].mxu0
        %v1439 = vadd.f32 0.0, %v1438
        %1440 = vmatprep.mubr.bf16.mxu0 0
        %1441 = vmatmul.mubr.bf16.gmra.mrb[0].mxu0 %v727
        %v1442 = vpop.f32.mrb[0].mxu0
        %v1443 = vadd.f32 0.0, %v1442
        %v1444 = vpop.f32.mrb[0].mxu0
        %v1445 = vadd.f32 0.0, %v1444
        %v1446 = vpop.f32.mrb[0].mxu0
        %v1447 = vadd.f32 0.0, %v1446
        %v1448 = vpop.f32.mrb[0].mxu0
        %v1449 = vadd.f32 0.0, %v1448
        %1450 = vdwg.mxu0
        %1451 = vmatprep.subr.bf16.mxu0 %v991
        %1452 = vmatpush1.bf16.msra.mxu0 %v990
        %1453 = vmatprep.subr.bf16.mxu0 %v999
        %1454 = vmatpush1.bf16.msra.mxu0 %v998
        %1455 = vmatprep.subr.bf16.mxu0 %v1007
        %1456 = vmatpush1.bf16.msra.mxu0 %v1006
        %1457 = vmatprep.subr.bf16.mxu0 %v1015
        %1458 = vmatpush1.bf16.msra.mxu0 %v1014
        %1459 = vmatprep.subr.bf16.mxu0 %v1023
        %1460 = vmatpush1.bf16.msra.mxu0 %v1022
        %1461 = vmatprep.subr.bf16.mxu0 %v1031
        %1462 = vmatpush1.bf16.msra.mxu0 %v1030
        %1463 = vmatprep.subr.bf16.mxu0 %v1039
        %1464 = vmatpush1.bf16.msra.mxu0 %v1038
        %1465 = vmatprep.subr.bf16.mxu0 %v1047
        %1466 = vmatpush1.bf16.msra.mxu0 %v1046
        %1467 = vmatprep.subr.bf16.mxu0 0
        %1468 = vmatpush1.bf16.msra.mxu0 0
        %1469 = vmatprep.subr.bf16.mxu0 0
        %1470 = vmatpush1.bf16.msra.mxu0 0
        %1471 = vmatprep.subr.bf16.mxu0 0
        %1472 = vmatpush1.bf16.msra.mxu0 0
        %1473 = vmatprep.subr.bf16.mxu0 0
        %1474 = vmatpush1.bf16.msra.mxu0 0
        %1475 = vmatprep.subr.bf16.mxu0 0
        %1476 = vmatpush1.bf16.msra.mxu0 0
        %1477 = vmatprep.subr.bf16.mxu0 0
        %1478 = vmatpush1.bf16.msra.mxu0 0
        %1479 = vmatprep.subr.bf16.mxu0 0
        %1480 = vmatpush1.bf16.msra.mxu0 0
        %1481 = vmatprep.subr.bf16.mxu0 0
        %1482 = vmatpush1.bf16.msra.mxu0 0
        %1483 = vmatprep.mubr.bf16.mxu0 0
        %1484 = vmatmul.mubr.bf16.gmra.mrb[0].mxu0 %v720
        %v1485 = vpop.f32.mrb[0].mxu0
        %v1486 = vadd.f32 0.0, %v1485
        %v1487 = vpop.f32.mrb[0].mxu0
        %v1488 = vadd.f32 0.0, %v1487
        %v1489 = vpop.f32.mrb[0].mxu0
        %v1490 = vadd.f32 0.0, %v1489
        %v1491 = vpop.f32.mrb[0].mxu0
        %v1492 = vadd.f32 0.0, %v1491
        %1493 = vmatprep.mubr.bf16.mxu0 0
        %1494 = vmatmul.mubr.bf16.gmra.mrb[0].mxu0 %v721
        %v1495 = vpop.f32.mrb[0].mxu0
        %v1496 = vadd.f32 0.0, %v1495
        %v1497 = vpop.f32.mrb[0].mxu0
        %v1498 = vadd.f32 0.0, %v1497
        %v1499 = vpop.f32.mrb[0].mxu0
        %v1500 = vadd.f32 0.0, %v1499
        %v1501 = vpop.f32.mrb[0].mxu0
        %v1502 = vadd.f32 0.0, %v1501
        %1503 = vmatprep.mubr.bf16.mxu0 0
        %1504 = vmatmul.mubr.bf16.gmra.mrb[0].mxu0 %v722
        %v1505 = vpop.f32.mrb[0].mxu0
        %v1506 = vadd.f32 0.0, %v1505
        %v1507 = vpop.f32.mrb[0].mxu0
        %v1508 = vadd.f32 0.0, %v1507
        %v1509 = vpop.f32.mrb[0].mxu0
        %v1510 = vadd.f32 0.0, %v1509
        %v1511 = vpop.f32.mrb[0].mxu0
        %v1512 = vadd.f32 0.0, %v1511
        %1513 = vmatprep.mubr.bf16.mxu0 0
        %1514 = vmatmul.mubr.bf16.gmra.mrb[0].mxu0 %v723
        %v1515 = vpop.f32.mrb[0].mxu0
        %v1516 = vadd.f32 0.0, %v1515
        %v1517 = vpop.f32.mrb[0].mxu0
        %v1518 = vadd.f32 0.0, %v1517
        %v1519 = vpop.f32.mrb[0].mxu0
        %v1520 = vadd.f32 0.0, %v1519
        %v1521 = vpop.f32.mrb[0].mxu0
        %v1522 = vadd.f32 0.0, %v1521
        %1523 = vmatprep.mubr.bf16.mxu0 0
        %1524 = vmatmul.mubr.bf16.gmra.mrb[0].mxu0 %v724
        %v1525 = vpop.f32.mrb[0].mxu0
        %v1526 = vadd.f32 0.0, %v1525
        %v1527 = vpop.f32.mrb[0].mxu0
        %v1528 = vadd.f32 0.0, %v1527
        %v1529 = vpop.f32.mrb[0].mxu0
        %v1530 = vadd.f32 0.0, %v1529
        %v1531 = vpop.f32.mrb[0].mxu0
        %v1532 = vadd.f32 0.0, %v1531
        %1533 = vmatprep.mubr.bf16.mxu0 0
        %1534 = vmatmul.mubr.bf16.gmra.mrb[0].mxu0 %v725
        %v1535 = vpop.f32.mrb[0].mxu0
        %v1536 = vadd.f32 0.0, %v1535
        %v1537 = vpop.f32.mrb[0].mxu0
        %v1538 = vadd.f32 0.0, %v1537
        %v1539 = vpop.f32.mrb[0].mxu0
        %v1540 = vadd.f32 0.0, %v1539
        %v1541 = vpop.f32.mrb[0].mxu0
        %v1542 = vadd.f32 0.0, %v1541
        %1543 = vmatprep.mubr.bf16.mxu0 0
        %1544 = vmatmul.mubr.bf16.gmra.mrb[0].mxu0 %v726
        %v1545 = vpop.f32.mrb[0].mxu0
        %v1546 = vadd.f32 0.0, %v1545
        %v1547 = vpop.f32.mrb[0].mxu0
        %v1548 = vadd.f32 0.0, %v1547
        %v1549 = vpop.f32.mrb[0].mxu0
        %v1550 = vadd.f32 0.0, %v1549
        %v1551 = vpop.f32.mrb[0].mxu0
        %v1552 = vadd.f32 0.0, %v1551
        %1553 = vmatprep.mubr.bf16.mxu0 0
        %1554 = vmatmul.mubr.bf16.gmra.mrb[0].mxu0 %v727
        %v1555 = vpop.f32.mrb[0].mxu0
        %v1556 = vadd.f32 0.0, %v1555
        %v1557 = vpop.f32.mrb[0].mxu0
        %v1558 = vadd.f32 0.0, %v1557
        %v1559 = vpop.f32.mrb[0].mxu0
        %v1560 = vadd.f32 0.0, %v1559
        %v1561 = vpop.f32.mrb[0].mxu0
        %v1562 = vadd.f32 0.0, %v1561
        %1563 = vdwg.mxu0
        %s1564 = sadd.s32 %s25, %s26
        %s1565 = smul.u32 %s1564, 128
        %v1566 = vlaneseq
        %v1567 = vshrl.u32 %v1566, 7
        %v1568 = vadd.s32 %v1567, 8
        %v1569 = vadd.s32 %v1567, 16
        %v1570 = vadd.s32 %v1567, 24
        %v1571 = vadd.s32 %v1567, 32
        %v1572 = vadd.s32 %v1567, 40
        %v1573 = vadd.s32 %v1567, 48
        %v1574 = vadd.s32 %v1567, 56
        %v1575 = vadd.s32 %v1567, 64
        %v1576 = vadd.s32 %v1567, 72
        %v1577 = vadd.s32 %v1567, 80
        %v1578 = vadd.s32 %v1567, 88
        %v1579 = vadd.s32 %v1567, 96
        %v1580 = vadd.s32 %v1567, 104
        %v1581 = vadd.s32 %v1567, 112
        %v1582 = vadd.s32 %v1567, 120
        %v1583 = vstv %s1565
        %v1584 = vadd.s32 %v1583, %v1567
        %v1585 = vadd.s32 %v1583, %v1568
        %v1586 = vadd.s32 %v1583, %v1569
        %v1587 = vadd.s32 %v1583, %v1570
        %v1588 = vadd.s32 %v1583, %v1571
        %v1589 = vadd.s32 %v1583, %v1572
        %v1590 = vadd.s32 %v1583, %v1573
        %v1591 = vadd.s32 %v1583, %v1574
        %v1592 = vadd.s32 %v1583, %v1575
        %v1593 = vadd.s32 %v1583, %v1576
        %v1594 = vadd.s32 %v1583, %v1577
        %v1595 = vadd.s32 %v1583, %v1578
        %v1596 = vadd.s32 %v1583, %v1579
        %v1597 = vadd.s32 %v1583, %v1580
        %v1598 = vadd.s32 %v1583, %v1581
        %v1599 = vadd.s32 %v1583, %v1582
        %vm1600 = vcmp.lt.s32.totalorder %v1584, 128
        %vm1601 = vcmp.lt.s32.totalorder %v1585, 128
        %vm1602 = vcmp.lt.s32.totalorder %v1586, 128
        %vm1603 = vcmp.lt.s32.totalorder %v1587, 128
        %vm1604 = vcmp.lt.s32.totalorder %v1588, 128
        %vm1605 = vcmp.lt.s32.totalorder %v1589, 128
        %vm1606 = vcmp.lt.s32.totalorder %v1590, 128
        %vm1607 = vcmp.lt.s32.totalorder %v1591, 128
        %vm1608 = vcmp.lt.s32.totalorder %v1592, 128
        %vm1609 = vcmp.lt.s32.totalorder %v1593, 128
        %vm1610 = vcmp.lt.s32.totalorder %v1594, 128
        %vm1611 = vcmp.lt.s32.totalorder %v1595, 128
        %vm1612 = vcmp.lt.s32.totalorder %v1596, 128
        %vm1613 = vcmp.lt.s32.totalorder %v1597, 128
        %vm1614 = vcmp.lt.s32.totalorder %v1598, 128
        %vm1615 = vcmp.lt.s32.totalorder %v1599, 128
        %v1616 = vsel %vm1600, 1, 0
        %v1617 = vsel %vm1601, 1, 0
        %v1618 = vsel %vm1602, 1, 0
        %v1619 = vsel %vm1603, 1, 0
        %v1620 = vsel %vm1604, 1, 0
        %v1621 = vsel %vm1605, 1, 0
        %v1622 = vsel %vm1606, 1, 0
        %v1623 = vsel %vm1607, 1, 0
        %v1624 = vsel %vm1608, 1, 0
        %v1625 = vsel %vm1609, 1, 0
        %v1626 = vsel %vm1610, 1, 0
        %v1627 = vsel %vm1611, 1, 0
        %v1628 = vsel %vm1612, 1, 0
        %v1629 = vsel %vm1613, 1, 0
        %v1630 = vsel %vm1614, 1, 0
        %v1631 = vsel %vm1615, 1, 0
        %vm1632 = vcmp.eq.s32.totalorder %v1616, 1
        %vm1633 = vcmp.eq.s32.totalorder %v1617, 1
        %vm1634 = vcmp.eq.s32.totalorder %v1618, 1
        %vm1635 = vcmp.eq.s32.totalorder %v1619, 1
        %vm1636 = vcmp.eq.s32.totalorder %v1620, 1
        %vm1637 = vcmp.eq.s32.totalorder %v1621, 1
        %vm1638 = vcmp.eq.s32.totalorder %v1622, 1
        %vm1639 = vcmp.eq.s32.totalorder %v1623, 1
        %vm1640 = vcmp.eq.s32.totalorder %v1624, 1
        %vm1641 = vcmp.eq.s32.totalorder %v1625, 1
        %vm1642 = vcmp.eq.s32.totalorder %v1626, 1
        %vm1643 = vcmp.eq.s32.totalorder %v1627, 1
        %vm1644 = vcmp.eq.s32.totalorder %v1628, 1
        %vm1645 = vcmp.eq.s32.totalorder %v1629, 1
        %vm1646 = vcmp.eq.s32.totalorder %v1630, 1
        %vm1647 = vcmp.eq.s32.totalorder %v1631, 1
        %v1648 = vsel %vm1632, %v1147, -inf
        %v1649 = vsel %vm1632, %v1149, -inf
        %v1650 = vsel %vm1632, %v1260, -inf
        %v1651 = vsel %vm1632, %v1262, -inf
        %v1652 = vsel %vm1632, %v1373, -inf
        %v1653 = vsel %vm1632, %v1375, -inf
        %v1654 = vsel %vm1632, %v1486, -inf
        %v1655 = vsel %vm1632, %v1488, -inf
        %v1656 = vsel %vm1633, %v1151, -inf
        %v1657 = vsel %vm1633, %v1153, -inf
        %v1658 = vsel %vm1633, %v1264, -inf
        %v1659 = vsel %vm1633, %v1266, -inf
        %v1660 = vsel %vm1633, %v1377, -inf
        %v1661 = vsel %vm1633, %v1379, -inf
        %v1662 = vsel %vm1633, %v1490, -inf
        %v1663 = vsel %vm1633, %v1492, -inf
        %v1664 = vsel %vm1634, %v1157, -inf
        %v1665 = vsel %vm1634, %v1159, -inf
        %v1666 = vsel %vm1634, %v1270, -inf
        %v1667 = vsel %vm1634, %v1272, -inf
        %v1668 = vsel %vm1634, %v1383, -inf
        %v1669 = vsel %vm1634, %v1385, -inf
        %v1670 = vsel %vm1634, %v1496, -inf
        %v1671 = vsel %vm1634, %v1498, -inf
        %v1672 = vsel %vm1635, %v1161, -inf
        %v1673 = vsel %vm1635, %v1163, -inf
        %v1674 = vsel %vm1635, %v1274, -inf
        %v1675 = vsel %vm1635, %v1276, -inf
        %v1676 = vsel %vm1635, %v1387, -inf
        %v1677 = vsel %vm1635, %v1389, -inf
        %v1678 = vsel %vm1635, %v1500, -inf
        %v1679 = vsel %vm1635, %v1502, -inf
        %v1680 = vsel %vm1636, %v1167, -inf
        %v1681 = vsel %vm1636, %v1169, -inf
        %v1682 = vsel %vm1636, %v1280, -inf
        %v1683 = vsel %vm1636, %v1282, -inf
        %v1684 = vsel %vm1636, %v1393, -inf
        %v1685 = vsel %vm1636, %v1395, -inf
        %v1686 = vsel %vm1636, %v1506, -inf
        %v1687 = vsel %vm1636, %v1508, -inf
        %v1688 = vsel %vm1637, %v1171, -inf
        %v1689 = vsel %vm1637, %v1173, -inf
        %v1690 = vsel %vm1637, %v1284, -inf
        %v1691 = vsel %vm1637, %v1286, -inf
        %v1692 = vsel %vm1637, %v1397, -inf
        %v1693 = vsel %vm1637, %v1399, -inf
        %v1694 = vsel %vm1637, %v1510, -inf
        %v1695 = vsel %vm1637, %v1512, -inf
        %v1696 = vsel %vm1638, %v1177, -inf
        %v1697 = vsel %vm1638, %v1179, -inf
        %v1698 = vsel %vm1638, %v1290, -inf
        %v1699 = vsel %vm1638, %v1292, -inf
        %v1700 = vsel %vm1638, %v1403, -inf
        %v1701 = vsel %vm1638, %v1405, -inf
        %v1702 = vsel %vm1638, %v1516, -inf
        %v1703 = vsel %vm1638, %v1518, -inf
        %v1704 = vsel %vm1639, %v1181, -inf
        %v1705 = vsel %vm1639, %v1183, -inf
        %v1706 = vsel %vm1639, %v1294, -inf
        %v1707 = vsel %vm1639, %v1296, -inf
        %v1708 = vsel %vm1639, %v1407, -inf
        %v1709 = vsel %vm1639, %v1409, -inf
        %v1710 = vsel %vm1639, %v1520, -inf
        %v1711 = vsel %vm1639, %v1522, -inf
        %v1712 = vsel %vm1640, %v1187, -inf
        %v1713 = vsel %vm1640, %v1189, -inf
        %v1714 = vsel %vm1640, %v1300, -inf
        %v1715 = vsel %vm1640, %v1302, -inf
        %v1716 = vsel %vm1640, %v1413, -inf
        %v1717 = vsel %vm1640, %v1415, -inf
        %v1718 = vsel %vm1640, %v1526, -inf
        %v1719 = vsel %vm1640, %v1528, -inf
        %v1720 = vsel %vm1641, %v1191, -inf
        %v1721 = vsel %vm1641, %v1193, -inf
        %v1722 = vsel %vm1641, %v1304, -inf
        %v1723 = vsel %vm1641, %v1306, -inf
        %v1724 = vsel %vm1641, %v1417, -inf
        %v1725 = vsel %vm1641, %v1419, -inf
        %v1726 = vsel %vm1641, %v1530, -inf
        %v1727 = vsel %vm1641, %v1532, -inf
        %v1728 = vsel %vm1642, %v1197, -inf
        %v1729 = vsel %vm1642, %v1199, -inf
        %v1730 = vsel %vm1642, %v1310, -inf
        %v1731 = vsel %vm1642, %v1312, -inf
        %v1732 = vsel %vm1642, %v1423, -inf
        %v1733 = vsel %vm1642, %v1425, -inf
        %v1734 = vsel %vm1642, %v1536, -inf
        %v1735 = vsel %vm1642, %v1538, -inf
        %v1736 = vsel %vm1643, %v1201, -inf
        %v1737 = vsel %vm1643, %v1203, -inf
        %v1738 = vsel %vm1643, %v1314, -inf
        %v1739 = vsel %vm1643, %v1316, -inf
        %v1740 = vsel %vm1643, %v1427, -inf
        %v1741 = vsel %vm1643, %v1429, -inf
        %v1742 = vsel %vm1643, %v1540, -inf
        %v1743 = vsel %vm1643, %v1542, -inf
        %v1744 = vsel %vm1644, %v1207, -inf
        %v1745 = vsel %vm1644, %v1209, -inf
        %v1746 = vsel %vm1644, %v1320, -inf
        %v1747 = vsel %vm1644, %v1322, -inf
        %v1748 = vsel %vm1644, %v1433, -inf
        %v1749 = vsel %vm1644, %v1435, -inf
        %v1750 = vsel %vm1644, %v1546, -inf
        %v1751 = vsel %vm1644, %v1548, -inf
        %v1752 = vsel %vm1645, %v1211, -inf
        %v1753 = vsel %vm1645, %v1213, -inf
        %v1754 = vsel %vm1645, %v1324, -inf
        %v1755 = vsel %vm1645, %v1326, -inf
        %v1756 = vsel %vm1645, %v1437, -inf
        %v1757 = vsel %vm1645, %v1439, -inf
        %v1758 = vsel %vm1645, %v1550, -inf
        %v1759 = vsel %vm1645, %v1552, -inf
        %v1760 = vsel %vm1646, %v1217, -inf
        %v1761 = vsel %vm1646, %v1219, -inf
        %v1762 = vsel %vm1646, %v1330, -inf
        %v1763 = vsel %vm1646, %v1332, -inf
        %v1764 = vsel %vm1646, %v1443, -inf
        %v1765 = vsel %vm1646, %v1445, -inf
        %v1766 = vsel %vm1646, %v1556, -inf
        %v1767 = vsel %vm1646, %v1558, -inf
        %v1768 = vsel %vm1647, %v1221, -inf
        %v1769 = vsel %vm1647, %v1223, -inf
        %v1770 = vsel %vm1647, %v1334, -inf
        %v1771 = vsel %vm1647, %v1336, -inf
        %v1772 = vsel %vm1647, %v1447, -inf
        %v1773 = vsel %vm1647, %v1449, -inf
        %v1774 = vsel %vm1647, %v1560, -inf
        %v1775 = vsel %vm1647, %v1562, -inf
        %v1776 = vmax.f32 %v1648, %v1656
        %v1777 = vmax.f32 %v1776, %v1664
        %v1778 = vmax.f32 %v1777, %v1672
        %v1779 = vmax.f32 %v1778, %v1680
        %v1780 = vmax.f32 %v1779, %v1688
        %v1781 = vmax.f32 %v1780, %v1696
        %v1782 = vmax.f32 %v1781, %v1704
        %v1783 = vmax.f32 %v1782, %v1712
        %v1784 = vmax.f32 %v1783, %v1720
        %v1785 = vmax.f32 %v1784, %v1728
        %v1786 = vmax.f32 %v1785, %v1736
        %v1787 = vmax.f32 %v1786, %v1744
        %v1788 = vmax.f32 %v1787, %v1752
        %v1789 = vmax.f32 %v1788, %v1760
        %v1790 = vmax.f32 %v1789, %v1768
        %v1791 = vrot.slane %v1790, 4
        %v1792 = vmax.f32 %v1790, %v1791
        %v1793 = vrot.slane %v1792, 2
        %v1794 = vmax.f32 %v1792, %v1793
        %v1795 = vrot.slane %v1794, 1
        %v1796 = vmax.f32 %v1794, %v1795
        %v1797 = vmax.f32 %v1649, %v1657
        %v1798 = vmax.f32 %v1797, %v1665
        %v1799 = vmax.f32 %v1798, %v1673
        %v1800 = vmax.f32 %v1799, %v1681
        %v1801 = vmax.f32 %v1800, %v1689
        %v1802 = vmax.f32 %v1801, %v1697
        %v1803 = vmax.f32 %v1802, %v1705
        %v1804 = vmax.f32 %v1803, %v1713
        %v1805 = vmax.f32 %v1804, %v1721
        %v1806 = vmax.f32 %v1805, %v1729
        %v1807 = vmax.f32 %v1806, %v1737
        %v1808 = vmax.f32 %v1807, %v1745
        %v1809 = vmax.f32 %v1808, %v1753
        %v1810 = vmax.f32 %v1809, %v1761
        %v1811 = vmax.f32 %v1810, %v1769
        %v1812 = vrot.slane %v1811, 4
        %v1813 = vmax.f32 %v1811, %v1812
        %v1814 = vrot.slane %v1813, 2
        %v1815 = vmax.f32 %v1813, %v1814
        %v1816 = vrot.slane %v1815, 1
        %v1817 = vmax.f32 %v1815, %v1816
        %v1818 = vmax.f32 %v1650, %v1658
        %v1819 = vmax.f32 %v1818, %v1666
        %v1820 = vmax.f32 %v1819, %v1674
        %v1821 = vmax.f32 %v1820, %v1682
        %v1822 = vmax.f32 %v1821, %v1690
        %v1823 = vmax.f32 %v1822, %v1698
        %v1824 = vmax.f32 %v1823, %v1706
        %v1825 = vmax.f32 %v1824, %v1714
        %v1826 = vmax.f32 %v1825, %v1722
        %v1827 = vmax.f32 %v1826, %v1730
        %v1828 = vmax.f32 %v1827, %v1738
        %v1829 = vmax.f32 %v1828, %v1746
        %v1830 = vmax.f32 %v1829, %v1754
        %v1831 = vmax.f32 %v1830, %v1762
        %v1832 = vmax.f32 %v1831, %v1770
        %v1833 = vrot.slane %v1832, 4
        %v1834 = vmax.f32 %v1832, %v1833
        %v1835 = vrot.slane %v1834, 2
        %v1836 = vmax.f32 %v1834, %v1835
        %v1837 = vrot.slane %v1836, 1
        %v1838 = vmax.f32 %v1836, %v1837
        %v1839 = vmax.f32 %v1651, %v1659
        %v1840 = vmax.f32 %v1839, %v1667
        %v1841 = vmax.f32 %v1840, %v1675
        %v1842 = vmax.f32 %v1841, %v1683
        %v1843 = vmax.f32 %v1842, %v1691
        %v1844 = vmax.f32 %v1843, %v1699
        %v1845 = vmax.f32 %v1844, %v1707
        %v1846 = vmax.f32 %v1845, %v1715
        %v1847 = vmax.f32 %v1846, %v1723
        %v1848 = vmax.f32 %v1847, %v1731
        %v1849 = vmax.f32 %v1848, %v1739
        %v1850 = vmax.f32 %v1849, %v1747
        %v1851 = vmax.f32 %v1850, %v1755
        %v1852 = vmax.f32 %v1851, %v1763
        %v1853 = vmax.f32 %v1852, %v1771
        %v1854 = vrot.slane %v1853, 4
        %v1855 = vmax.f32 %v1853, %v1854
        %v1856 = vrot.slane %v1855, 2
        %v1857 = vmax.f32 %v1855, %v1856
        %v1858 = vrot.slane %v1857, 1
        %v1859 = vmax.f32 %v1857, %v1858
        %v1860 = vmax.f32 %v1652, %v1660
        %v1861 = vmax.f32 %v1860, %v1668
        %v1862 = vmax.f32 %v1861, %v1676
        %v1863 = vmax.f32 %v1862, %v1684
        %v1864 = vmax.f32 %v1863, %v1692
        %v1865 = vmax.f32 %v1864, %v1700
        %v1866 = vmax.f32 %v1865, %v1708
        %v1867 = vmax.f32 %v1866, %v1716
        %v1868 = vmax.f32 %v1867, %v1724
        %v1869 = vmax.f32 %v1868, %v1732
        %v1870 = vmax.f32 %v1869, %v1740
        %v1871 = vmax.f32 %v1870, %v1748
        %v1872 = vmax.f32 %v1871, %v1756
        %v1873 = vmax.f32 %v1872, %v1764
        %v1874 = vmax.f32 %v1873, %v1772
        %v1875 = vrot.slane %v1874, 4
        %v1876 = vmax.f32 %v1874, %v1875
        %v1877 = vrot.slane %v1876, 2
        %v1878 = vmax.f32 %v1876, %v1877
        %v1879 = vrot.slane %v1878, 1
        %v1880 = vmax.f32 %v1878, %v1879
        %v1881 = vmax.f32 %v1653, %v1661
        %v1882 = vmax.f32 %v1881, %v1669
        %v1883 = vmax.f32 %v1882, %v1677
        %v1884 = vmax.f32 %v1883, %v1685
        %v1885 = vmax.f32 %v1884, %v1693
        %v1886 = vmax.f32 %v1885, %v1701
        %v1887 = vmax.f32 %v1886, %v1709
        %v1888 = vmax.f32 %v1887, %v1717
        %v1889 = vmax.f32 %v1888, %v1725
        %v1890 = vmax.f32 %v1889, %v1733
        %v1891 = vmax.f32 %v1890, %v1741
        %v1892 = vmax.f32 %v1891, %v1749
        %v1893 = vmax.f32 %v1892, %v1757
        %v1894 = vmax.f32 %v1893, %v1765
        %v1895 = vmax.f32 %v1894, %v1773
        %v1896 = vrot.slane %v1895, 4
        %v1897 = vmax.f32 %v1895, %v1896
        %v1898 = vrot.slane %v1897, 2
        %v1899 = vmax.f32 %v1897, %v1898
        %v1900 = vrot.slane %v1899, 1
        %v1901 = vmax.f32 %v1899, %v1900
        %v1902 = vmax.f32 %v1654, %v1662
        %v1903 = vmax.f32 %v1902, %v1670
        %v1904 = vmax.f32 %v1903, %v1678
        %v1905 = vmax.f32 %v1904, %v1686
        %v1906 = vmax.f32 %v1905, %v1694
        %v1907 = vmax.f32 %v1906, %v1702
        %v1908 = vmax.f32 %v1907, %v1710
        %v1909 = vmax.f32 %v1908, %v1718
        %v1910 = vmax.f32 %v1909, %v1726
        %v1911 = vmax.f32 %v1910, %v1734
        %v1912 = vmax.f32 %v1911, %v1742
        %v1913 = vmax.f32 %v1912, %v1750
        %v1914 = vmax.f32 %v1913, %v1758
        %v1915 = vmax.f32 %v1914, %v1766
        %v1916 = vmax.f32 %v1915, %v1774
        %v1917 = vrot.slane %v1916, 4
        %v1918 = vmax.f32 %v1916, %v1917
        %v1919 = vrot.slane %v1918, 2
        %v1920 = vmax.f32 %v1918, %v1919
        %v1921 = vrot.slane %v1920, 1
        %v1922 = vmax.f32 %v1920, %v1921
        %v1923 = vmax.f32 %v1655, %v1663
        %v1924 = vmax.f32 %v1923, %v1671
        %v1925 = vmax.f32 %v1924, %v1679
        %v1926 = vmax.f32 %v1925, %v1687
        %v1927 = vmax.f32 %v1926, %v1695
        %v1928 = vmax.f32 %v1927, %v1703
        %v1929 = vmax.f32 %v1928, %v1711
        %v1930 = vmax.f32 %v1929, %v1719
        %v1931 = vmax.f32 %v1930, %v1727
        %v1932 = vmax.f32 %v1931, %v1735
        %v1933 = vmax.f32 %v1932, %v1743
        %v1934 = vmax.f32 %v1933, %v1751
        %v1935 = vmax.f32 %v1934, %v1759
        %v1936 = vmax.f32 %v1935, %v1767
        %v1937 = vmax.f32 %v1936, %v1775
        %v1938 = vrot.slane %v1937, 4
        %v1939 = vmax.f32 %v1937, %v1938
        %v1940 = vrot.slane %v1939, 2
        %v1941 = vmax.f32 %v1939, %v1940
        %v1942 = vrot.slane %v1941, 1
        %v1943 = vmax.f32 %v1941, %v1942
        %p1944 = scmp.eq.s32.totalorder %s26, 0
        // Predicated region
        $region53: #{_lambda_.3} parent=43 // pred_check
          %p1945 = pneg %p1944
        $region54: #{_lambda_.3} parent=43 // pred_check_branch
          %1947 = sbr.rel (%p1945) target = $region56
        $region55: #{_lambda_.3} parent=43 // pred_region
          %1948 = vst [vmem:[%s327] sm:$0xff] -inf
        $region56: #{_lambda_.3} parent=43 // pred_fallthru
          _
        %v1949 = vld [vmem:[%s327] sm:$0xff]
        %v1958 = vcombine.low %v1796, %v1817
        %v1959 = vcombine.low %v1838, %v1859
        %v1960 = vcombine.low %v1880, %v1901
        %v1961 = vcombine.low %v1922, %v1943
        %v1963 = vunpack.c.l.s4 1966171168
        %v1964 = vunpack.c.0.s8 %v1963
        %v1965 = vlaneseq
        %v1966 = vshrl.u32 %v1965, 7
        %v1967 = vsub.s32 %v1964, %v1966
        %v1968 = vrot.slane %v1958, %v1967
        %v1970 = vunpack.c.l.s4 1966171168
        %v1971 = vunpack.c.0.s8 %v1970
        %v1972 = vlaneseq
        %v1973 = vshrl.u32 %v1972, 7
        %v1974 = vsub.s32 %v1971, %v1973
        %v1975 = vrot.slane %v1959, %v1974
        %v1977 = vunpack.c.l.s4 1966171168
        %v1978 = vunpack.c.0.s8 %v1977
        %v1979 = vlaneseq
        %v1980 = vshrl.u32 %v1979, 7
        %v1981 = vsub.s32 %v1978, %v1980
        %v1982 = vrot.slane %v1960, %v1981
        %v1984 = vunpack.c.l.s4 1966171168
        %v1985 = vunpack.c.0.s8 %v1984
        %v1986 = vlaneseq
        %v1987 = vshrl.u32 %v1986, 7
        %v1988 = vsub.s32 %v1985, %v1987
        %v1989 = vrot.slane %v1961, %v1988
        %v1990 = vcombine.low %v1968, %v1975
        %v1991 = vcombine.low %v1982, %v1989
        %v1993 = vunpack.c.l.s4 1966171168
        %v1994 = vunpack.c.0.s8 %v1993
        %v1995 = vlaneseq
        %v1996 = vshrl.u32 %v1995, 7
        %v1997 = vsub.s32 %v1994, %v1996
        %v1998 = vrot.slane %v1990, %v1997
        %v2000 = vunpack.c.l.s4 1966171168
        %v2001 = vunpack.c.0.s8 %v2000
        %v2002 = vlaneseq
        %v2003 = vshrl.u32 %v2002, 7
        %v2004 = vsub.s32 %v2001, %v2003
        %v2005 = vrot.slane %v1991, %v2004
        %v2006 = vcombine.low %v1998, %v2005
        %v2008 = vmax.f32 %v1949, %v2006
        %2009 = vst [vmem:[%s327] sm:$0xff] %v2008
        %p2010 = scmp.lt.s32.totalorder %s25, 1
        %s2011 = scalar_select %p2010, %s25, 1
        %p2012 = scmp.lt.s32.totalorder %s24, 1
        %s2013 = scalar_select %p2012, %s24, 1
        %s2014 = smul.addr %s2013, 8
        %s2015 = smul.addr %s2011, 16
        %s2016 = sadd.s32 %s2014, %s2015
        %s2017 = scalar_lea.vmem %s6, %s2016
        // Predicated region
        $region57: #{_lambda_.3} parent=43 // pred_check
          %p2018 = pneg %p193
        $region58: #{_lambda_.3} parent=43 // pred_check_branch
          %2020 = sbr.rel (%p2018) target = $region60
        $region59: #{_lambda_.3} parent=43 // pred_region
          _
        $region60: #{_lambda_.3} parent=43 // pred_fallthru
          _
      $region44: #{_lambda_.3} parent=5 // pred_fallthru
        _
      %p2021 = scmp.le.s32.totalorder 2, %s14
      // Predicated region
      $region61: #{_lambda_.3} parent=5 // pred_check
        %p2022 = pneg %p2021
      $region62: #{_lambda_.3} parent=5 // pred_check_branch
        %2024 = sbr.rel (%p2022) target = $region64
      $region63: #{_lambda_.3} parent=5 // pred_region
        %s2025 = ssub.s32 %s14, 2
        // Predicated region
        $region65: #{_lambda_.3} parent=63 // pred_check
          %p2026 = pneg %p199
        $region66: #{_lambda_.3} parent=63 // pred_check_branch
          %2028 = sbr.rel (%p2026) target = $region68
        $region67: #{_lambda_.3} parent=63 // pred_region
          %p2029 = scmp.lt.s32.totalorder %s28, 1
          %s2030 = scalar_select %p2029, %s28, 1
          %p2031 = scmp.lt.s32.totalorder %s27, 1
          %s2032 = scalar_select %p2031, %s27, 1
          %s2033 = smul.addr %s2032, 8
          %s2034 = smul.addr %s2030, 16
          %s2035 = sadd.s32 %s2033, %s2034
          %s2036 = scalar_lea.vmem %s6, %s2035
        $region68: #{_lambda_.3} parent=63 // pred_fallthru
          _
      $region64: #{_lambda_.3} parent=5 // pred_fallthru
        _
    $region6: #{_lambda_.3} parent=1 // loop_footer
      %s18 = sadd.s32 1, %s14
    $region7: #{_lambda_.3} parent=1 // loop_footer_branch
      %13 = sbr.rel target = $region3
    $region8: #{_lambda_.3} parent=1 // loop_exit
      _
    %2037 = vsyncpa [#allocation3], 1
    %s2038 = scalar_lea.sflag [#allocation3], 1
    %2039 = vsyncpa %s2038, 1
    %2040 = vsyncpa [#allocation5], 1

// kernel: _lambda_.4
$region0: #{_lambda_.4}
  #allocation0 [shape = 'u32[]', space=smem, size = 0x4, offset = 0x4, fixed_abs, tag = 'smem constant byte address 0x4 - core index']
  #allocation1 [shape = 'u32[144,128]{1,0:T(1,128)}', space=vmem, size = 0x12000, scoped, tag = 'internal scratch']
  %s0 = inlined_call_operand.vmem [shape: bf16[2,256,8], index: 0, kind: input, shape index: {}]
  %s1 = inlined_call_operand.vmem [shape: bf16[2,8,64], index: 1, kind: input, shape index: {}]
  %s2 = inlined_call_operand.vmem [shape: f32[1,64], index: 2, kind: input, shape index: {}]
  %s3 = inlined_call_operand.vmem [shape: bf16[64,128], index: 3, kind: input, shape index: {}]
  %s4 = inlined_call_operand.vmem [shape: f32[1,128], index: 4, kind: input, shape index: {}]
  %s5 = inlined_call_operand.vmem [shape: bf16[128,1024], index: 5, kind: input, shape index: {}]
  %s6 = inlined_call_operand.vmem [shape: f32[2,2,1,1024], index: 6, kind: output, shape index: {}]
  %s7 = sld [smem:[#allocation0]]
  $region61: #{_lambda_.4} parent=0
    _
  %s9 = ssub.s32 1, %s7
  %s10 = scalar_select 0, %s9, %s7
  loop: start=0, step=1, limit=6
  $region2: #{_lambda_.4} parent=0 // loop_pre_header
    _
  $region3: #{_lambda_.4} parent=0 // loop_header
    %s12 = sphi 0, %s16
    %p13 = scmp.ge.s32.totalorder %s12, 6
    %s19 = sphi 0, %s38
    %s20 = sphi 0, %s34
    %s21 = sphi 0, %s30
    %s22 = sphi 0, %s19
    %s23 = sphi 0, %s20
    %s24 = sphi 0, %s21
    %s25 = sphi 0, %s22
    %s26 = sphi 0, %s23
    %s27 = sphi 0, %s24
    %s45 = sphi 0, %s47
    %s48 = sphi 0, %s45
    %s49 = sphi 0, %s48
    %s65 = sphi 0, %s49
    %s71 = sphi 0, %s73
    %s74 = sphi 0, %s71
    %s75 = sphi 0, %s74
    %s91 = sphi 0, %s75
    %s95 = sphi 0, %s95
    %s97 = sphi 0, %s95
    %s98 = sphi 0, %s97
    %s112 = sphi 0, %s98
    %s116 = sphi 0, %s116
    %s118 = sphi 0, %s116
    %s119 = sphi 0, %s118
    %s133 = sphi 0, %s119
    %s137 = sphi 0, %s137
    %s139 = sphi 0, %s137
    %s140 = sphi 0, %s139
    %s154 = sphi 0, %s140
    %s158 = sphi 0, %s158
    %s160 = sphi 0, %s158
    %s161 = sphi 0, %s160
    %s175 = sphi 0, %s161
    %s183 = sphi 0, %s185
    %s186 = sphi 0, %s183
    %s187 = sphi 0, %s186
    %s203 = sphi 0, %s187
  $region4: #{_lambda_.4} parent=0 // loop_header_branch
    %15 = sbr.rel (%p13) target = $region8
  $region5: #{_lambda_.4} parent=0 // loop_body
    %s17 = ssub.s32 %s12, 1
    %s18 = ssub.s32 %s12, 2
    %s28 = sadd.s32 1, %s21
    %p29 = scmp.ge.s32.totalorder %s28, 1
    %s30 = scalar_select %p29, 0, %s28
    %s31 = sadd.s32 1, %s20
    %s32 = scalar_select %p29, %s31, %s20
    %p33 = scmp.ge.s32.totalorder %s32, 2
    %s34 = scalar_select %p33, 0, %s32
    %s35 = sadd.s32 1, %s19
    %s36 = scalar_select %p33, %s35, %s19
    %p37 = scmp.ge.s32.totalorder %s36, 2
    %s38 = scalar_select %p37, 0, %s36
    %s39 = sadd.s32 %s20, %s21
    %s40 = sadd.s32 %s34, %s30
    %s41 = ssub.s32 %s19, %s38
    %s42 = ssub.s32 %s39, %s40
    %s43 = sor.u32 %s41, %s42
    %p44 = scmp.eq.s32.totalorder %s43, 0
    %s46 = sadd.s32 %s45, 1
    %s47 = scalar_select %p44, %s45, %s46
    %p50 = pneg %p44
    %p51 = scmp.eq.s32.totalorder %s12, 3
    %p52 = por %p50, %p51
    %p53 = scmp.ne.s32.totalorder %s45, %s48
    %p54 = scmp.eq.s32.totalorder %s12, 0
    %p55 = por %p53, %p54
    %p56 = scmp.ne.s32.totalorder %s45, %s48
    %p57 = scmp.eq.s32.totalorder %s17, 3
    %p58 = por %p56, %p57
    %p59 = scmp.ne.s32.totalorder %s48, %s49
    %p60 = scmp.eq.s32.totalorder %s17, 0
    %p61 = por %p59, %p60
    %p62 = scmp.ne.s32.totalorder %s48, %s49
    %p63 = scmp.eq.s32.totalorder %s18, 3
    %p64 = por %p62, %p63
    %p66 = scmp.ne.s32.totalorder %s49, %s65
    %p67 = scmp.eq.s32.totalorder %s18, 0
    %p68 = por %p66, %p67
    %s69 = ssub.s32 %s19, %s38
    %p70 = scmp.eq.s32.totalorder %s69, 0
    %s72 = sadd.s32 %s71, 1
    %s73 = scalar_select %p70, %s71, %s72
    %p76 = pneg %p70
    %p77 = scmp.eq.s32.totalorder %s12, 3
    %p78 = por %p76, %p77
    %p79 = scmp.ne.s32.totalorder %s71, %s74
    %p80 = scmp.eq.s32.totalorder %s12, 0
    %p81 = por %p79, %p80
    %p82 = scmp.ne.s32.totalorder %s71, %s74
    %p83 = scmp.eq.s32.totalorder %s17, 3
    %p84 = por %p82, %p83
    %p85 = scmp.ne.s32.totalorder %s74, %s75
    %p86 = scmp.eq.s32.totalorder %s17, 0
    %p87 = por %p85, %p86
    %p88 = scmp.ne.s32.totalorder %s74, %s75
    %p89 = scmp.eq.s32.totalorder %s18, 3
    %p90 = por %p88, %p89
    %p92 = scmp.ne.s32.totalorder %s75, %s91
    %p93 = scmp.eq.s32.totalorder %s18, 0
    %p94 = por %p92, %p93
    %s96 = sadd.s32 %s95, 1
    %p99 = scmp.eq.s32.totalorder %s12, 3
    %p100 = scmp.ne.s32.totalorder %s95, %s97
    %p101 = scmp.eq.s32.totalorder %s12, 0
    %p102 = por %p100, %p101
    %p103 = scmp.ne.s32.totalorder %s95, %s97
    %p104 = scmp.eq.s32.totalorder %s17, 3
    %p105 = por %p103, %p104
    %p106 = scmp.ne.s32.totalorder %s97, %s98
    %p107 = scmp.eq.s32.totalorder %s17, 0
    %p108 = por %p106, %p107
    %p109 = scmp.ne.s32.totalorder %s97, %s98
    %p110 = scmp.eq.s32.totalorder %s18, 3
    %p111 = por %p109, %p110
    %p113 = scmp.ne.s32.totalorder %s98, %s112
    %p114 = scmp.eq.s32.totalorder %s18, 0
    %p115 = por %p113, %p114
    %s117 = sadd.s32 %s116, 1
    %p120 = scmp.eq.s32.totalorder %s12, 3
    %p121 = scmp.ne.s32.totalorder %s116, %s118
    %p122 = scmp.eq.s32.totalorder %s12, 0
    %p123 = por %p121, %p122
    %p124 = scmp.ne.s32.totalorder %s116, %s118
    %p125 = scmp.eq.s32.totalorder %s17, 3
    %p126 = por %p124, %p125
    %p127 = scmp.ne.s32.totalorder %s118, %s119
    %p128 = scmp.eq.s32.totalorder %s17, 0
    %p129 = por %p127, %p128
    %p130 = scmp.ne.s32.totalorder %s118, %s119
    %p131 = scmp.eq.s32.totalorder %s18, 3
    %p132 = por %p130, %p131
    %p134 = scmp.ne.s32.totalorder %s119, %s133
    %p135 = scmp.eq.s32.totalorder %s18, 0
    %p136 = por %p134, %p135
    %s138 = sadd.s32 %s137, 1
    %p141 = scmp.eq.s32.totalorder %s12, 3
    %p142 = scmp.ne.s32.totalorder %s137, %s139
    %p143 = scmp.eq.s32.totalorder %s12, 0
    %p144 = por %p142, %p143
    %p145 = scmp.ne.s32.totalorder %s137, %s139
    %p146 = scmp.eq.s32.totalorder %s17, 3
    %p147 = por %p145, %p146
    %p148 = scmp.ne.s32.totalorder %s139, %s140
    %p149 = scmp.eq.s32.totalorder %s17, 0
    %p150 = por %p148, %p149
    %p151 = scmp.ne.s32.totalorder %s139, %s140
    %p152 = scmp.eq.s32.totalorder %s18, 3
    %p153 = por %p151, %p152
    %p155 = scmp.ne.s32.totalorder %s140, %s154
    %p156 = scmp.eq.s32.totalorder %s18, 0
    %p157 = por %p155, %p156
    %s159 = sadd.s32 %s158, 1
    %p162 = scmp.eq.s32.totalorder %s12, 3
    %p163 = scmp.ne.s32.totalorder %s158, %s160
    %p164 = scmp.eq.s32.totalorder %s12, 0
    %p165 = por %p163, %p164
    %p166 = scmp.ne.s32.totalorder %s158, %s160
    %p167 = scmp.eq.s32.totalorder %s17, 3
    %p168 = por %p166, %p167
    %p169 = scmp.ne.s32.totalorder %s160, %s161
    %p170 = scmp.eq.s32.totalorder %s17, 0
    %p171 = por %p169, %p170
    %p172 = scmp.ne.s32.totalorder %s160, %s161
    %p173 = scmp.eq.s32.totalorder %s18, 3
    %p174 = por %p172, %p173
    %p176 = scmp.ne.s32.totalorder %s161, %s175
    %p177 = scmp.eq.s32.totalorder %s18, 0
    %p178 = por %p176, %p177
    %s179 = ssub.s32 %s20, %s34
    %s180 = ssub.s32 %s19, %s38
    %s181 = sor.u32 %s179, %s180
    %p182 = scmp.eq.s32.totalorder %s181, 0
    %s184 = sadd.s32 %s183, 1
    %s185 = scalar_select %p182, %s183, %s184
    %p188 = pneg %p182
    %p189 = scmp.eq.s32.totalorder %s12, 3
    %p190 = por %p188, %p189
    %p191 = scmp.ne.s32.totalorder %s183, %s186
    %p192 = scmp.eq.s32.totalorder %s12, 0
    %p193 = por %p191, %p192
    %p194 = scmp.ne.s32.totalorder %s183, %s186
    %p195 = scmp.eq.s32.totalorder %s17, 3
    %p196 = por %p194, %p195
    %p197 = scmp.ne.s32.totalorder %s186, %s187
    %p198 = scmp.eq.s32.totalorder %s17, 0
    %p199 = por %p197, %p198
    %p200 = scmp.ne.s32.totalorder %s186, %s187
    %p201 = scmp.eq.s32.totalorder %s18, 3
    %p202 = por %p200, %p201
    %p204 = scmp.ne.s32.totalorder %s187, %s203
    %p205 = scmp.eq.s32.totalorder %s18, 0
    %p206 = por %p204, %p205
    %p207 = scmp.le.s32.totalorder 1, %s12
    %p208 = scmp.lt.s32.totalorder %s12, 5
    %p209 = pnand %p207, %p208
    %p210 = pneg %p209
    // Predicated region
    $region9: #{_lambda_.4} parent=5 // pred_check
      _
    $region10: #{_lambda_.4} parent=5 // pred_check_branch
      %212 = sbr.rel (%p209) target = $region12
    $region11: #{_lambda_.4} parent=5 // pred_region
      %s213 = ssub.s32 %s12, 1
      // Predicated region
      $region13: #{_lambda_.4} parent=11 // pred_check
        %p214 = pneg %p108
      $region14: #{_lambda_.4} parent=11 // pred_check_branch
        %216 = sbr.rel (%p214) target = $region16
      $region15: #{_lambda_.4} parent=11 // pred_region
        _
      $region16: #{_lambda_.4} parent=11 // pred_fallthru
        _
      // Predicated region
      $region17: #{_lambda_.4} parent=11 // pred_check
        %p217 = pneg %p129
      $region18: #{_lambda_.4} parent=11 // pred_check_branch
        %219 = sbr.rel (%p217) target = $region20
      $region19: #{_lambda_.4} parent=11 // pred_region
        _
      $region20: #{_lambda_.4} parent=11 // pred_fallthru
        _
      // Predicated region
      $region21: #{_lambda_.4} parent=11 // pred_check
        %p220 = pneg %p150
      $region22: #{_lambda_.4} parent=11 // pred_check_branch
        %222 = sbr.rel (%p220) target = $region24
      $region23: #{_lambda_.4} parent=11 // pred_region
        _
      $region24: #{_lambda_.4} parent=11 // pred_fallthru
        _
      // Predicated region
      $region25: #{_lambda_.4} parent=11 // pred_check
        %p223 = pneg %p171
      $region26: #{_lambda_.4} parent=11 // pred_check_branch
        %225 = sbr.rel (%p223) target = $region28
      $region27: #{_lambda_.4} parent=11 // pred_region
        _
      $region28: #{_lambda_.4} parent=11 // pred_fallthru
        _
    $region12: #{_lambda_.4} parent=5 // pred_fallthru
      _
    %p226 = scmp.lt.s32.totalorder %s12, 4
    // Predicated region
    $region29: #{_lambda_.4} parent=5 // pred_check
      %p227 = pneg %p226
    $region30: #{_lambda_.4} parent=5 // pred_check_branch
      %229 = sbr.rel (%p227) target = $region32
    $region31: #{_lambda_.4} parent=5 // pred_region
      // Predicated region
      $region33: #{_lambda_.4} parent=31 // pred_check
        %p230 = pneg %p55
      $region34: #{_lambda_.4} parent=31 // pred_check_branch
        %232 = sbr.rel (%p230) target = $region36
      $region35: #{_lambda_.4} parent=31 // pred_region
        %s233 = sadd.s32 %s20, %s21
        %s234 = smul.u32 16, %s233
        %p235 = scmp.lt.s32.totalorder %s19, 1
        %s236 = scalar_select %p235, %s19, 1
        %p237 = scmp.lt.s32.totalorder %s234, 31
        %s238 = scalar_select %p237, %s234, 31
        %s239 = smul.addr %s236, 32
        %s240 = sadd.s32 %s238, %s239
        %s241 = smul.addr %s240, 4
        %s242 = scalar_lea.vmem %s0, %s241
        %s243 = sadd.s32 %s20, %s21
        %s244 = smul.u32 16, %s243
      $region36: #{_lambda_.4} parent=31 // pred_fallthru
        _
      // Predicated region
      $region37: #{_lambda_.4} parent=31 // pred_check
        %p245 = pneg %p81
      $region38: #{_lambda_.4} parent=31 // pred_check_branch
        %247 = sbr.rel (%p245) target = $region40
      $region39: #{_lambda_.4} parent=31 // pred_region
        %p248 = scmp.lt.s32.totalorder %s19, 1
        %s249 = scalar_select %p248, %s19, 1
        %s250 = smul.addr %s249, 4
        %s251 = scalar_lea.vmem %s1, %s250
      $region40: #{_lambda_.4} parent=31 // pred_fallthru
        _
    $region32: #{_lambda_.4} parent=5 // pred_fallthru
      _
    %p252 = scmp.le.s32.totalorder 1, %s12
    %p253 = scmp.lt.s32.totalorder %s12, 5
    %p254 = pnand %p252, %p253
    %p255 = pneg %p254
    // Predicated region
    $region41: #{_lambda_.4} parent=5 // pred_check
      _
    $region42: #{_lambda_.4} parent=5 // pred_check_branch
      %257 = sbr.rel (%p254) target = $region44
    $region43: #{_lambda_.4} parent=5 // pred_region
      %s258 = ssub.s32 %s12, 1
      %s259 = sadd.s32 %s23, %s24
      %s260 = smul.u32 16, %s259
      %p261 = scmp.lt.s32.totalorder %s22, 1
      %s262 = scalar_select %p261, %s22, 1
      %p263 = scmp.lt.s32.totalorder %s260, 31
      %s264 = scalar_select %p263, %s260, 31
      %s265 = smul.addr %s262, 32
      %s266 = sadd.s32 %s264, %s265
      %s267 = smul.addr %s266, 4
      %s268 = scalar_lea.vmem %s0, %s267
      %p269 = pneg %p61
      %p270 = pneg %p58
      %p271 = scmp.lt.s32.totalorder %s22, 1
      %s272 = scalar_select %p271, %s22, 1
      %s273 = smul.addr %s272, 4
      %s274 = scalar_lea.vmem %s1, %s273
      %p275 = pneg %p87
      %p276 = pneg %p84
      %p277 = pneg %p108
      %p278 = pneg %p105
      %p279 = pneg %p129
      %p280 = pneg %p126
      %p281 = pneg %p150
      %p282 = pneg %p147
      %p283 = pneg %p171
      %p284 = pneg %p168
      %p285 = pneg %p199
      %p286 = pneg %p196
      %p287 = scmp.lt.s32.totalorder %s23, 1
      %s288 = scalar_select %p287, %s23, 1
      %p289 = scmp.lt.s32.totalorder %s22, 1
      %s290 = scalar_select %p289, %s22, 1
      %s291 = smul.addr %s290, 8
      %s292 = smul.addr %s288, 16
      %s293 = sadd.s32 %s291, %s292
      %s294 = scalar_lea.vmem %s6, %s293
      %s295 = sadd.s32 %s23, %s24
      %s296 = smul.u32 16, %s295
      %p297 = scmp.lt.s32.totalorder %s22, 1
      %s298 = scalar_select %p297, %s22, 1
      %p299 = scmp.lt.s32.totalorder %s296, 31
      %s300 = scalar_select %p299, %s296, 31
      %s301 = smul.addr %s298, 32
      %s302 = sadd.s32 %s300, %s301
      %s303 = smul.addr %s302, 4
      %s304 = scalar_lea.vmem %s0, %s303
      %s305 = sadd.s32 %s23, %s24
      %s306 = smul.u32 16, %s305
      %p307 = scmp.lt.s32.totalorder %s22, 1
      %s308 = scalar_select %p307, %s22, 1
      %s309 = smul.addr %s308, 4
      %s310 = scalar_lea.vmem %s1, %s309
      %p311 = scmp.lt.s32.totalorder %s23, 1
      %s312 = scalar_select %p311, %s23, 1
      %p313 = scmp.lt.s32.totalorder %s22, 1
      %s314 = scalar_select %p313, %s22, 1
      %s315 = smul.addr %s314, 8
      %s316 = smul.addr %s312, 16
      %s317 = sadd.s32 %s315, %s316
      %s318 = scalar_lea.vmem %s6, %s317
      %v320 = vld [vmem:[%s304] sm:$0xf]
      %v321 = vld [vmem:[%s304 + $0x4] sm:$0xf]
      %v322 = vld [vmem:[%s304 + $0x8] sm:$0xf]
      %v323 = vld [vmem:[%s304 + $0xc] sm:$0xf]
      %v324 = vld [vmem:[%s304 + $0x10] sm:$0xf]
      %v325 = vld [vmem:[%s304 + $0x14] sm:$0xf]
      %v326 = vld [vmem:[%s304 + $0x18] sm:$0xf]
      %v327 = vld [vmem:[%s304 + $0x1c] sm:$0xf]
      %v328 = vld [vmem:[%s304 + $0x20] sm:$0xf]
      %v329 = vld [vmem:[%s304 + $0x24] sm:$0xf]
      %v330 = vld [vmem:[%s304 + $0x28] sm:$0xf]
      %v331 = vld [vmem:[%s304 + $0x2c] sm:$0xf]
      %v332 = vld [vmem:[%s304 + $0x30] sm:$0xf]
      %v333 = vld [vmem:[%s304 + $0x34] sm:$0xf]
      %v334 = vld [vmem:[%s304 + $0x38] sm:$0xf]
      %v335 = vld [vmem:[%s304 + $0x3c] sm:$0xf]
      %v336 = vld [vmem:[%s310] sm:$0xf]
      %v337 = vld [vmem:[%s2] sm:$0x1]
      %v339 = vlaneseq
      %v340 = vshrl.u32 %v339, 7
      %v341 = vsub.s32 0, %v340
      %v342 = vrot.slane %v337, %v341
      %v360 = vunpack.c.l.b16 %v320
      %v361 = vunpack.c.l.b16 %v321
      %v362 = vunpack.c.l.b16 %v322
      %v363 = vunpack.c.l.b16 %v323
      %v364 = vunpack.c.l.b16 %v324
      %v365 = vunpack.c.l.b16 %v325
      %v366 = vunpack.c.l.b16 %v326
      %v367 = vunpack.c.l.b16 %v327
      %v368 = vunpack.c.l.b16 %v328
      %v369 = vunpack.c.l.b16 %v329
      %v370 = vunpack.c.l.b16 %v330
      %v371 = vunpack.c.l.b16 %v331
      %v372 = vunpack.c.l.b16 %v332
      %v373 = vunpack.c.l.b16 %v333
      %v374 = vunpack.c.l.b16 %v334
      %v375 = vunpack.c.l.b16 %v335
      %v376 = vpack.c.b16 %v361, %v360
      %v377 = vpack.c.b16 %v363, %v362
      %v378 = vpack.c.b16 %v365, %v364
      %v379 = vpack.c.b16 %v367, %v366
      %v380 = vpack.c.b16 %v369, %v368
      %v381 = vpack.c.b16 %v371, %v370
      %v382 = vpack.c.b16 %v373, %v372
      %v383 = vpack.c.b16 %v375, %v374
      %vm384 = vcmask 64512
      %v386 = vsel %vm384, %v376, 0
      %v389 = vsel %vm384, %v377, 0
      %v392 = vsel %vm384, %v378, 0
      %v395 = vsel %vm384, %v379, 0
      %v398 = vsel %vm384, %v380, 0
      %v401 = vsel %vm384, %v381, 0
      %v404 = vsel %vm384, %v382, 0
      %v407 = vsel %vm384, %v383, 0
      %vm409 = vcmask 1043456
      %v411 = vsel %vm409, %v336, 0
      %413 = vmatprep.subr.bf16.mxu0 0
      %414 = vmatpush1.bf16.msra.mxu0 %v411
      %415 = vmatprep.subr.bf16.mxu0 0
      %416 = vmatpush1.bf16.msra.mxu0 0
      %417 = vmatprep.subr.bf16.mxu0 0
      %418 = vmatpush1.bf16.msra.mxu0 0
      %419 = vmatprep.subr.bf16.mxu0 0
      %420 = vmatpush1.bf16.msra.mxu0 0
      %421 = vmatprep.subr.bf16.mxu0 0
      %422 = vmatpush1.bf16.msra.mxu0 0
      %423 = vmatprep.subr.bf16.mxu0 0
      %424 = vmatpush1.bf16.msra.mxu0 0
      %425 = vmatprep.subr.bf16.mxu0 0
      %426 = vmatpush1.bf16.msra.mxu0 0
      %427 = vmatprep.subr.bf16.mxu0 0
      %428 = vmatpush1.bf16.msra.mxu0 0
      %429 = vmatprep.subr.bf16.mxu0 0
      %430 = vmatpush1.bf16.msra.mxu0 0
      %431 = vmatprep.subr.bf16.mxu0 0
      %432 = vmatpush1.bf16.msra.mxu0 0
      %433 = vmatprep.subr.bf16.mxu0 0
      %434 = vmatpush1.bf16.msra.mxu0 0
      %435 = vmatprep.subr.bf16.mxu0 0
      %436 = vmatpush1.bf16.msra.mxu0 0
      %437 = vmatprep.subr.bf16.mxu0 0
      %438 = vmatpush1.bf16.msra.mxu0 0
      %439 = vmatprep.subr.bf16.mxu0 0
      %440 = vmatpush1.bf16.msra.mxu0 0
      %441 = vmatprep.subr.bf16.mxu0 0
      %442 = vmatpush1.bf16.msra.mxu0 0
      %443 = vmatprep.subr.bf16.mxu0 0
      %444 = vmatpush1.bf16.msra.mxu0 0
      %445 = vmatprep.mubr.bf16.mxu0 0
      %446 = vmatmul.mubr.bf16.gmra.mrb[0].mxu0 %v386
      %v447 = vpop.f32.mrb[0].mxu0
      %v448 = vadd.f32 %v342, %v447
      %v449 = vpop.f32.mrb[0].mxu0
      %v450 = vpop.f32.mrb[0].mxu0
      %v451 = vadd.f32 %v342, %v450
      %v452 = vpop.f32.mrb[0].mxu0
      %453 = vmatprep.mubr.bf16.mxu0 0
      %454 = vmatmul.mubr.bf16.gmra.mrb[0].mxu0 %v389
      %v455 = vpop.f32.mrb[0].mxu0
      %v456 = vadd.f32 %v342, %v455
      %v457 = vpop.f32.mrb[0].mxu0
      %v458 = vpop.f32.mrb[0].mxu0
      %v459 = vadd.f32 %v342, %v458
      %v460 = vpop.f32.mrb[0].mxu0
      %461 = vmatprep.mubr.bf16.mxu0 0
      %462 = vmatmul.mubr.bf16.gmra.mrb[0].mxu0 %v392
      %v463 = vpop.f32.mrb[0].mxu0
      %v464 = vadd.f32 %v342, %v463
      %v465 = vpop.f32.mrb[0].mxu0
      %v466 = vpop.f32.mrb[0].mxu0
      %v467 = vadd.f32 %v342, %v466
      %v468 = vpop.f32.mrb[0].mxu0
      %469 = vmatprep.mubr.bf16.mxu0 0
      %470 = vmatmul.mubr.bf16.gmra.mrb[0].mxu0 %v395
      %v471 = vpop.f32.mrb[0].mxu0
      %v472 = vadd.f32 %v342, %v471
      %v473 = vpop.f32.mrb[0].mxu0
      %v474 = vpop.f32.mrb[0].mxu0
      %v475 = vadd.f32 %v342, %v474
      %v476 = vpop.f32.mrb[0].mxu0
      %477 = vmatprep.mubr.bf16.mxu0 0
      %478 = vmatmul.mubr.bf16.gmra.mrb[0].mxu0 %v398
      %v479 = vpop.f32.mrb[0].mxu0
      %v480 = vadd.f32 %v342, %v479
      %v481 = vpop.f32.mrb[0].mxu0
      %v482 = vpop.f32.mrb[0].mxu0
      %v483 = vadd.f32 %v342, %v482
      %v484 = vpop.f32.mrb[0].mxu0
      %485 = vmatprep.mubr.bf16.mxu0 0
      %486 = vmatmul.mubr.bf16.gmra.mrb[0].mxu0 %v401
      %v487 = vpop.f32.mrb[0].mxu0
      %v488 = vadd.f32 %v342, %v487
      %v489 = vpop.f32.mrb[0].mxu0
      %v490 = vpop.f32.mrb[0].mxu0
      %v491 = vadd.f32 %v342, %v490
      %v492 = vpop.f32.mrb[0].mxu0
      %493 = vmatprep.mubr.bf16.mxu0 0
      %494 = vmatmul.mubr.bf16.gmra.mrb[0].mxu0 %v404
      %v495 = vpop.f32.mrb[0].mxu0
      %v496 = vadd.f32 %v342, %v495
      %v497 = vpop.f32.mrb[0].mxu0
      %v498 = vpop.f32.mrb[0].mxu0
      %v499 = vadd.f32 %v342, %v498
      %v500 = vpop.f32.mrb[0].mxu0
      %501 = vmatprep.mubr.bf16.mxu0 0
      %502 = vmatmul.mubr.bf16.gmra.mrb[0].mxu0 %v407
      %v503 = vpop.f32.mrb[0].mxu0
      %v504 = vadd.f32 %v342, %v503
      %v505 = vpop.f32.mrb[0].mxu0
      %v506 = vpop.f32.mrb[0].mxu0
      %v507 = vadd.f32 %v342, %v506
      %v508 = vpop.f32.mrb[0].mxu0
      %509 = vdwg.mxu0
      %v510 = vmax.f32 %v448, 0.0
      %v511 = vmax.f32 %v451, 0.0
      %v512 = vmax.f32 %v456, 0.0
      %v513 = vmax.f32 %v459, 0.0
      %v514 = vmax.f32 %v464, 0.0
      %v515 = vmax.f32 %v467, 0.0
      %v516 = vmax.f32 %v472, 0.0
      %v517 = vmax.f32 %v475, 0.0
      %v518 = vmax.f32 %v480, 0.0
      %v519 = vmax.f32 %v483, 0.0
      %v520 = vmax.f32 %v488, 0.0
      %v521 = vmax.f32 %v491, 0.0
      %v522 = vmax.f32 %v496, 0.0
      %v523 = vmax.f32 %v499, 0.0
      %v524 = vmax.f32 %v504, 0.0
      %v525 = vmax.f32 %v507, 0.0
      %v526 = vpack.c.bf16 %v511, %v510
      %v527 = vpack.c.bf16 %v513, %v512
      %v528 = vpack.c.bf16 %v515, %v514
      %v529 = vpack.c.bf16 %v517, %v516
      %v530 = vpack.c.bf16 %v519, %v518
      %v531 = vpack.c.bf16 %v521, %v520
      %v532 = vpack.c.bf16 %v523, %v522
      %v533 = vpack.c.bf16 %v525, %v524
      %v534 = vld [vmem:[%s3] sm:$0xf]
      %v535 = vld [vmem:[%s3 + $0x4] sm:$0xf]
      %v536 = vld [vmem:[%s3 + $0x8] sm:$0xf]
      %v537 = vld [vmem:[%s3 + $0xc] sm:$0xf]
      %v538 = vld [vmem:[%s3 + $0x10] sm:$0xf]
      %v539 = vld [vmem:[%s3 + $0x14] sm:$0xf]
      %v540 = vld [vmem:[%s3 + $0x18] sm:$0xf]
      %v541 = vld [vmem:[%s3 + $0x1c] sm:$0xf]
      %v542 = vld [vmem:[%s4] sm:$0x1]
      %v544 = vlaneseq
      %v545 = vshrl.u32 %v544, 7
      %v546 = vsub.s32 0, %v545
      %v547 = vrot.slane %v542, %v546
      %v557 = vunpack.c.l.b16 %v534
      %v558 = vunpack.c.l.b16 %v535
      %v559 = vunpack.c.l.b16 %v536
      %v560 = vunpack.c.l.b16 %v537
      %v561 = vunpack.c.l.b16 %v538
      %v562 = vunpack.c.l.b16 %v539
      %v563 = vunpack.c.l.b16 %v540
      %v564 = vunpack.c.l.b16 %v541
      %v565 = vpack.c.b16 %v558, %v557
      %v566 = vpack.c.b16 %v560, %v559
      %v567 = vpack.c.b16 %v562, %v561
      %v568 = vpack.c.b16 %v564, %v563
      %vm573 = vcmask 523264
      %v575 = vsel %vm573, %v526, 0
      %v578 = vsel %vm573, %v527, 0
      %v581 = vsel %vm573, %v528, 0
      %v584 = vsel %vm573, %v529, 0
      %v587 = vsel %vm573, %v530, 0
      %v590 = vsel %vm573, %v531, 0
      %v593 = vsel %vm573, %v532, 0
      %v596 = vsel %vm573, %v533, 0
      %598 = vmatprep.subr.bf16.mxu0 0
      %599 = vmatpush1.bf16.msra.mxu0 %v565
      %600 = vmatprep.subr.bf16.mxu0 0
      %601 = vmatpush1.bf16.msra.mxu0 %v566
      %602 = vmatprep.subr.bf16.mxu0 0
      %603 = vmatpush1.bf16.msra.mxu0 %v567
      %604 = vmatprep.subr.bf16.mxu0 0
      %605 = vmatpush1.bf16.msra.mxu0 %v568
      %606 = vmatprep.subr.bf16.mxu0 0
      %607 = vmatpush1.bf16.msra.mxu0 0
      %608 = vmatprep.subr.bf16.mxu0 0
      %609 = vmatpush1.bf16.msra.mxu0 0
      %610 = vmatprep.subr.bf16.mxu0 0
      %611 = vmatpush1.bf16.msra.mxu0 0
      %612 = vmatprep.subr.bf16.mxu0 0
      %613 = vmatpush1.bf16.msra.mxu0 0
      %614 = vmatprep.subr.bf16.mxu0 0
      %615 = vmatpush1.bf16.msra.mxu0 0
      %616 = vmatprep.subr.bf16.mxu0 0
      %617 = vmatpush1.bf16.msra.mxu0 0
      %618 = vmatprep.subr.bf16.mxu0 0
      %619 = vmatpush1.bf16.msra.mxu0 0
      %620 = vmatprep.subr.bf16.mxu0 0
      %621 = vmatpush1.bf16.msra.mxu0 0
      %622 = vmatprep.subr.bf16.mxu0 0
      %623 = vmatpush1.bf16.msra.mxu0 0
      %624 = vmatprep.subr.bf16.mxu0 0
      %625 = vmatpush1.bf16.msra.mxu0 0
      %626 = vmatprep.subr.bf16.mxu0 0
      %627 = vmatpush1.bf16.msra.mxu0 0
      %628 = vmatprep.subr.bf16.mxu0 0
      %629 = vmatpush1.bf16.msra.mxu0 0
      %630 = vmatprep.mubr.bf16.mxu0 0
      %631 = vmatmul.mubr.bf16.gmra.mrb[0].mxu0 %v575
      %v632 = vpop.f32.mrb[0].mxu0
      %v633 = vadd.f32 %v547, %v632
      %v634 = vpop.f32.mrb[0].mxu0
      %v635 = vpop.f32.mrb[0].mxu0
      %v636 = vadd.f32 %v547, %v635
      %v637 = vpop.f32.mrb[0].mxu0
      %638 = vmatprep.mubr.bf16.mxu0 0
      %639 = vmatmul.mubr.bf16.gmra.mrb[0].mxu0 %v578
      %v640 = vpop.f32.mrb[0].mxu0
      %v641 = vadd.f32 %v547, %v640
      %v642 = vpop.f32.mrb[0].mxu0
      %v643 = vpop.f32.mrb[0].mxu0
      %v644 = vadd.f32 %v547, %v643
      %v645 = vpop.f32.mrb[0].mxu0
      %646 = vmatprep.mubr.bf16.mxu0 0
      %647 = vmatmul.mubr.bf16.gmra.mrb[0].mxu0 %v581
      %v648 = vpop.f32.mrb[0].mxu0
      %v649 = vadd.f32 %v547, %v648
      %v650 = vpop.f32.mrb[0].mxu0
      %v651 = vpop.f32.mrb[0].mxu0
      %v652 = vadd.f32 %v547, %v651
      %v653 = vpop.f32.mrb[0].mxu0
      %654 = vmatprep.mubr.bf16.mxu0 0
      %655 = vmatmul.mubr.bf16.gmra.mrb[0].mxu0 %v584
      %v656 = vpop.f32.mrb[0].mxu0
      %v657 = vadd.f32 %v547, %v656
      %v658 = vpop.f32.mrb[0].mxu0
      %v659 = vpop.f32.mrb[0].mxu0
      %v660 = vadd.f32 %v547, %v659
      %v661 = vpop.f32.mrb[0].mxu0
      %662 = vmatprep.mubr.bf16.mxu0 0
      %663 = vmatmul.mubr.bf16.gmra.mrb[0].mxu0 %v587
      %v664 = vpop.f32.mrb[0].mxu0
      %v665 = vadd.f32 %v547, %v664
      %v666 = vpop.f32.mrb[0].mxu0
      %v667 = vpop.f32.mrb[0].mxu0
      %v668 = vadd.f32 %v547, %v667
      %v669 = vpop.f32.mrb[0].mxu0
      %670 = vmatprep.mubr.bf16.mxu0 0
      %671 = vmatmul.mubr.bf16.gmra.mrb[0].mxu0 %v590
      %v672 = vpop.f32.mrb[0].mxu0
      %v673 = vadd.f32 %v547, %v672
      %v674 = vpop.f32.mrb[0].mxu0
      %v675 = vpop.f32.mrb[0].mxu0
      %v676 = vadd.f32 %v547, %v675
      %v677 = vpop.f32.mrb[0].mxu0
      %678 = vmatprep.mubr.bf16.mxu0 0
      %679 = vmatmul.mubr.bf16.gmra.mrb[0].mxu0 %v593
      %v680 = vpop.f32.mrb[0].mxu0
      %v681 = vadd.f32 %v547, %v680
      %v682 = vpop.f32.mrb[0].mxu0
      %v683 = vpop.f32.mrb[0].mxu0
      %v684 = vadd.f32 %v547, %v683
      %v685 = vpop.f32.mrb[0].mxu0
      %686 = vmatprep.mubr.bf16.mxu0 0
      %687 = vmatmul.mubr.bf16.gmra.mrb[0].mxu0 %v596
      %v688 = vpop.f32.mrb[0].mxu0
      %v689 = vadd.f32 %v547, %v688
      %v690 = vpop.f32.mrb[0].mxu0
      %v691 = vpop.f32.mrb[0].mxu0
      %v692 = vadd.f32 %v547, %v691
      %v693 = vpop.f32.mrb[0].mxu0
      %694 = vdwg.mxu0
      %v695 = vmax.f32 %v633, 0.0
      %v696 = vmax.f32 %v636, 0.0
      %v697 = vmax.f32 %v641, 0.0
      %v698 = vmax.f32 %v644, 0.0
      %v699 = vmax.f32 %v649, 0.0
      %v700 = vmax.f32 %v652, 0.0
      %v701 = vmax.f32 %v657, 0.0
      %v702 = vmax.f32 %v660, 0.0
      %v703 = vmax.f32 %v665, 0.0
      %v704 = vmax.f32 %v668, 0.0
      %v705 = vmax.f32 %v673, 0.0
      %v706 = vmax.f32 %v676, 0.0
      %v707 = vmax.f32 %v681, 0.0
      %v708 = vmax.f32 %v684, 0.0
      %v709 = vmax.f32 %v689, 0.0
      %v710 = vmax.f32 %v692, 0.0
      %v711 = vpack.c.bf16 %v696, %v695
      %v712 = vpack.c.bf16 %v698, %v697
      %v713 = vpack.c.bf16 %v700, %v699
      %v714 = vpack.c.bf16 %v702, %v701
      %v715 = vpack.c.bf16 %v704, %v703
      %v716 = vpack.c.bf16 %v706, %v705
      %v717 = vpack.c.bf16 %v708, %v707
      %v718 = vpack.c.bf16 %v710, %v709
      %v719 = vld [vmem:[%s5] sm:$0xff]
      %v720 = vld [vmem:[%s5 + $0x8] sm:$0xff]
      %v721 = vld [vmem:[%s5 + $0x10] sm:$0xff]
      %v722 = vld [vmem:[%s5 + $0x18] sm:$0xff]
      %v723 = vld [vmem:[%s5 + $0x20] sm:$0xff]
      %v724 = vld [vmem:[%s5 + $0x28] sm:$0xff]
      %v725 = vld [vmem:[%s5 + $0x30] sm:$0xff]
      %v726 = vld [vmem:[%s5 + $0x38] sm:$0xff]
      %v727 = vld [vmem:[%s5 + $0x40] sm:$0xff]
      %v728 = vld [vmem:[%s5 + $0x48] sm:$0xff]
      %v729 = vld [vmem:[%s5 + $0x50] sm:$0xff]
      %v730 = vld [vmem:[%s5 + $0x58] sm:$0xff]
      %v731 = vld [vmem:[%s5 + $0x60] sm:$0xff]
      %v732 = vld [vmem:[%s5 + $0x68] sm:$0xff]
      %v733 = vld [vmem:[%s5 + $0x70] sm:$0xff]
      %v734 = vld [vmem:[%s5 + $0x78] sm:$0xff]
      %v735 = vld [vmem:[%s5 + $0x80] sm:$0xff]
      %v736 = vld [vmem:[%s5 + $0x88] sm:$0xff]
      %v737 = vld [vmem:[%s5 + $0x90] sm:$0xff]
      %v738 = vld [vmem:[%s5 + $0x98] sm:$0xff]
      %v739 = vld [vmem:[%s5 + $0xa0] sm:$0xff]
      %v740 = vld [vmem:[%s5 + $0xa8] sm:$0xff]
      %v741 = vld [vmem:[%s5 + $0xb0] sm:$0xff]
      %v742 = vld [vmem:[%s5 + $0xb8] sm:$0xff]
      %v743 = vld [vmem:[%s5 + $0xc0] sm:$0xff]
      %v744 = vld [vmem:[%s5 + $0xc8] sm:$0xff]
      %v745 = vld [vmem:[%s5 + $0xd0] sm:$0xff]
      %v746 = vld [vmem:[%s5 + $0xd8] sm:$0xff]
      %v747 = vld [vmem:[%s5 + $0xe0] sm:$0xff]
      %v748 = vld [vmem:[%s5 + $0xe8] sm:$0xff]
      %v749 = vld [vmem:[%s5 + $0xf0] sm:$0xff]
      %v750 = vld [vmem:[%s5 + $0xf8] sm:$0xff]
      %v751 = vld [vmem:[%s5 + $0x100] sm:$0xff]
      %v752 = vld [vmem:[%s5 + $0x108] sm:$0xff]
      %v753 = vld [vmem:[%s5 + $0x110] sm:$0xff]
      %v754 = vld [vmem:[%s5 + $0x118] sm:$0xff]
      %v755 = vld [vmem:[%s5 + $0x120] sm:$0xff]
      %v756 = vld [vmem:[%s5 + $0x128] sm:$0xff]
      %v757 = vld [vmem:[%s5 + $0x130] sm:$0xff]
      %v758 = vld [vmem:[%s5 + $0x138] sm:$0xff]
      %v759 = vld [vmem:[%s5 + $0x140] sm:$0xff]
      %v760 = vld [vmem:[%s5 + $0x148] sm:$0xff]
      %v761 = vld [vmem:[%s5 + $0x150] sm:$0xff]
      %v762 = vld [vmem:[%s5 + $0x158] sm:$0xff]
      %v763 = vld [vmem:[%s5 + $0x160] sm:$0xff]
      %v764 = vld [vmem:[%s5 + $0x168] sm:$0xff]
      %v765 = vld [vmem:[%s5 + $0x170] sm:$0xff]
      %v766 = vld [vmem:[%s5 + $0x178] sm:$0xff]
      %v767 = vld [vmem:[%s5 + $0x180] sm:$0xff]
      %v768 = vld [vmem:[%s5 + $0x188] sm:$0xff]
      %v769 = vld [vmem:[%s5 + $0x190] sm:$0xff]
      %v770 = vld [vmem:[%s5 + $0x198] sm:$0xff]
      %v771 = vld [vmem:[%s5 + $0x1a0] sm:$0xff]
      %v772 = vld [vmem:[%s5 + $0x1a8] sm:$0xff]
      %v773 = vld [vmem:[%s5 + $0x1b0] sm:$0xff]
      %v774 = vld [vmem:[%s5 + $0x1b8] sm:$0xff]
      %v775 = vld [vmem:[%s5 + $0x1c0] sm:$0xff]
      %v776 = vld [vmem:[%s5 + $0x1c8] sm:$0xff]
      %v777 = vld [vmem:[%s5 + $0x1d0] sm:$0xff]
      %v778 = vld [vmem:[%s5 + $0x1d8] sm:$0xff]
      %v779 = vld [vmem:[%s5 + $0x1e0] sm:$0xff]
      %v780 = vld [vmem:[%s5 + $0x1e8] sm:$0xff]
      %v781 = vld [vmem:[%s5 + $0x1f0] sm:$0xff]
      %v782 = vld [vmem:[%s5 + $0x1f8] sm:$0xff]
      %v847 = vunpack.c.l.b16 %v719
      %v848 = vunpack.c.h.b16 %v719
      %v849 = vunpack.c.l.b16 %v720
      %v850 = vunpack.c.h.b16 %v720
      %v851 = vunpack.c.l.b16 %v721
      %v852 = vunpack.c.h.b16 %v721
      %v853 = vunpack.c.l.b16 %v722
      %v854 = vunpack.c.h.b16 %v722
      %v855 = vunpack.c.l.b16 %v723
      %v856 = vunpack.c.h.b16 %v723
      %v857 = vunpack.c.l.b16 %v724
      %v858 = vunpack.c.h.b16 %v724
      %v859 = vunpack.c.l.b16 %v725
      %v860 = vunpack.c.h.b16 %v725
      %v861 = vunpack.c.l.b16 %v726
      %v862 = vunpack.c.h.b16 %v726
      %v863 = vunpack.c.l.b16 %v727
      %v864 = vunpack.c.h.b16 %v727
      %v865 = vunpack.c.l.b16 %v728
      %v866 = vunpack.c.h.b16 %v728
      %v867 = vunpack.c.l.b16 %v729
      %v868 = vunpack.c.h.b16 %v729
      %v869 = vunpack.c.l.b16 %v730
      %v870 = vunpack.c.h.b16 %v730
      %v871 = vunpack.c.l.b16 %v731
      %v872 = vunpack.c.h.b16 %v731
      %v873 = vunpack.c.l.b16 %v732
      %v874 = vunpack.c.h.b16 %v732
      %v875 = vunpack.c.l.b16 %v733
      %v876 = vunpack.c.h.b16 %v733
      %v877 = vunpack.c.l.b16 %v734
      %v878 = vunpack.c.h.b16 %v734
      %v879 = vunpack.c.l.b16 %v735
      %v880 = vunpack.c.h.b16 %v735
      %v881 = vunpack.c.l.b16 %v736
      %v882 = vunpack.c.h.b16 %v736
      %v883 = vunpack.c.l.b16 %v737
      %v884 = vunpack.c.h.b16 %v737
      %v885 = vunpack.c.l.b16 %v738
      %v886 = vunpack.c.h.b16 %v738
      %v887 = vunpack.c.l.b16 %v739
      %v888 = vunpack.c.h.b16 %v739
      %v889 = vunpack.c.l.b16 %v740
      %v890 = vunpack.c.h.b16 %v740
      %v891 = vunpack.c.l.b16 %v741
      %v892 = vunpack.c.h.b16 %v741
      %v893 = vunpack.c.l.b16 %v742
      %v894 = vunpack.c.h.b16 %v742
      %v895 = vunpack.c.l.b16 %v743
      %v896 = vunpack.c.h.b16 %v743
      %v897 = vunpack.c.l.b16 %v744
      %v898 = vunpack.c.h.b16 %v744
      %v899 = vunpack.c.l.b16 %v745
      %v900 = vunpack.c.h.b16 %v745
      %v901 = vunpack.c.l.b16 %v746
      %v902 = vunpack.c.h.b16 %v746
      %v903 = vunpack.c.l.b16 %v747
      %v904 = vunpack.c.h.b16 %v747
      %v905 = vunpack.c.l.b16 %v748
      %v906 = vunpack.c.h.b16 %v748
      %v907 = vunpack.c.l.b16 %v749
      %v908 = vunpack.c.h.b16 %v749
      %v909 = vunpack.c.l.b16 %v750
      %v910 = vunpack.c.h.b16 %v750
      %v911 = vunpack.c.l.b16 %v751
      %v912 = vunpack.c.h.b16 %v751
      %v913 = vunpack.c.l.b16 %v752
      %v914 = vunpack.c.h.b16 %v752
      %v915 = vunpack.c.l.b16 %v753
      %v916 = vunpack.c.h.b16 %v753
      %v917 = vunpack.c.l.b16 %v754
      %v918 = vunpack.c.h.b16 %v754
      %v919 = vunpack.c.l.b16 %v755
      %v920 = vunpack.c.h.b16 %v755
      %v921 = vunpack.c.l.b16 %v756
      %v922 = vunpack.c.h.b16 %v756
      %v923 = vunpack.c.l.b16 %v757
      %v924 = vunpack.c.h.b16 %v757
      %v925 = vunpack.c.l.b16 %v758
      %v926 = vunpack.c.h.b16 %v758
      %v927 = vunpack.c.l.b16 %v759
      %v928 = vunpack.c.h.b16 %v759
      %v929 = vunpack.c.l.b16 %v760
      %v930 = vunpack.c.h.b16 %v760
      %v931 = vunpack.c.l.b16 %v761
      %v932 = vunpack.c.h.b16 %v761
      %v933 = vunpack.c.l.b16 %v762
      %v934 = vunpack.c.h.b16 %v762
      %v935 = vunpack.c.l.b16 %v763
      %v936 = vunpack.c.h.b16 %v763
      %v937 = vunpack.c.l.b16 %v764
      %v938 = vunpack.c.h.b16 %v764
      %v939 = vunpack.c.l.b16 %v765
      %v940 = vunpack.c.h.b16 %v765
      %v941 = vunpack.c.l.b16 %v766
      %v942 = vunpack.c.h.b16 %v766
      %v943 = vunpack.c.l.b16 %v767
      %v944 = vunpack.c.h.b16 %v767
      %v945 = vunpack.c.l.b16 %v768
      %v946 = vunpack.c.h.b16 %v768
      %v947 = vunpack.c.l.b16 %v769
      %v948 = vunpack.c.h.b16 %v769
      %v949 = vunpack.c.l.b16 %v770
      %v950 = vunpack.c.h.b16 %v770
      %v951 = vunpack.c.l.b16 %v771
      %v952 = vunpack.c.h.b16 %v771
      %v953 = vunpack.c.l.b16 %v772
      %v954 = vunpack.c.h.b16 %v772
      %v955 = vunpack.c.l.b16 %v773
      %v956 = vunpack.c.h.b16 %v773
      %v957 = vunpack.c.l.b16 %v774
      %v958 = vunpack.c.h.b16 %v774
      %v959 = vunpack.c.l.b16 %v775
      %v960 = vunpack.c.h.b16 %v775
      %v961 = vunpack.c.l.b16 %v776
      %v962 = vunpack.c.h.b16 %v776
      %v963 = vunpack.c.l.b16 %v777
      %v964 = vunpack.c.h.b16 %v777
      %v965 = vunpack.c.l.b16 %v778
      %v966 = vunpack.c.h.b16 %v778
      %v967 = vunpack.c.l.b16 %v779
      %v968 = vunpack.c.h.b16 %v779
      %v969 = vunpack.c.l.b16 %v780
      %v970 = vunpack.c.h.b16 %v780
      %v971 = vunpack.c.l.b16 %v781
      %v972 = vunpack.c.h.b16 %v781
      %v973 = vunpack.c.l.b16 %v782
      %v974 = vunpack.c.h.b16 %v782
      %v975 = vpack.c.b16 %v855, %v847
      %v976 = vpack.c.b16 %v856, %v848
      %v977 = vpack.c.b16 %v857, %v849
      %v978 = vpack.c.b16 %v858, %v850
      %v979 = vpack.c.b16 %v859, %v851
      %v980 = vpack.c.b16 %v860, %v852
      %v981 = vpack.c.b16 %v861, %v853
      %v982 = vpack.c.b16 %v862, %v854
      %v983 = vpack.c.b16 %v871, %v863
      %v984 = vpack.c.b16 %v872, %v864
      %v985 = vpack.c.b16 %v873, %v865
      %v986 = vpack.c.b16 %v874, %v866
      %v987 = vpack.c.b16 %v875, %v867
      %v988 = vpack.c.b16 %v876, %v868
      %v989 = vpack.c.b16 %v877, %v869
      %v990 = vpack.c.b16 %v878, %v870
      %v991 = vpack.c.b16 %v887, %v879
      %v992 = vpack.c.b16 %v888, %v880
      %v993 = vpack.c.b16 %v889, %v881
      %v994 = vpack.c.b16 %v890, %v882
      %v995 = vpack.c.b16 %v891, %v883
      %v996 = vpack.c.b16 %v892, %v884
      %v997 = vpack.c.b16 %v893, %v885
      %v998 = vpack.c.b16 %v894, %v886
      %v999 = vpack.c.b16 %v903, %v895
      %v1000 = vpack.c.b16 %v904, %v896
      %v1001 = vpack.c.b16 %v905, %v897
      %v1002 = vpack.c.b16 %v906, %v898
      %v1003 = vpack.c.b16 %v907, %v899
      %v1004 = vpack.c.b16 %v908, %v900
      %v1005 = vpack.c.b16 %v909, %v901
      %v1006 = vpack.c.b16 %v910, %v902
      %v1007 = vpack.c.b16 %v919, %v911
      %v1008 = vpack.c.b16 %v920, %v912
      %v1009 = vpack.c.b16 %v921, %v913
      %v1010 = vpack.c.b16 %v922, %v914
      %v1011 = vpack.c.b16 %v923, %v915
      %v1012 = vpack.c.b16 %v924, %v916
      %v1013 = vpack.c.b16 %v925, %v917
      %v1014 = vpack.c.b16 %v926, %v918
      %v1015 = vpack.c.b16 %v935, %v927
      %v1016 = vpack.c.b16 %v936, %v928
      %v1017 = vpack.c.b16 %v937, %v929
      %v1018 = vpack.c.b16 %v938, %v930
      %v1019 = vpack.c.b16 %v939, %v931
      %v1020 = vpack.c.b16 %v940, %v932
      %v1021 = vpack.c.b16 %v941, %v933
      %v1022 = vpack.c.b16 %v942, %v934
      %v1023 = vpack.c.b16 %v951, %v943
      %v1024 = vpack.c.b16 %v952, %v944
      %v1025 = vpack.c.b16 %v953, %v945
      %v1026 = vpack.c.b16 %v954, %v946
      %v1027 = vpack.c.b16 %v955, %v947
      %v1028 = vpack.c.b16 %v956, %v948
      %v1029 = vpack.c.b16 %v957, %v949
      %v1030 = vpack.c.b16 %v958, %v950
      %v1031 = vpack.c.b16 %v967, %v959
      %v1032 = vpack.c.b16 %v968, %v960
      %v1033 = vpack.c.b16 %v969, %v961
      %v1034 = vpack.c.b16 %v970, %v962
      %v1035 = vpack.c.b16 %v971, %v963
      %v1036 = vpack.c.b16 %v972, %v964
      %v1037 = vpack.c.b16 %v973, %v965
      %v1038 = vpack.c.b16 %v974, %v966
      %1103 = vmatprep.subr.bf16.mxu0 %v976
      %1104 = vmatpush1.bf16.msra.mxu0 %v975
      %1105 = vmatprep.subr.bf16.mxu0 %v984
      %1106 = vmatpush1.bf16.msra.mxu0 %v983
      %1107 = vmatprep.subr.bf16.mxu0 %v992
      %1108 = vmatpush1.bf16.msra.mxu0 %v991
      %1109 = vmatprep.subr.bf16.mxu0 %v1000
      %1110 = vmatpush1.bf16.msra.mxu0 %v999
      %1111 = vmatprep.subr.bf16.mxu0 %v1008
      %1112 = vmatpush1.bf16.msra.mxu0 %v1007
      %1113 = vmatprep.subr.bf16.mxu0 %v1016
      %1114 = vmatpush1.bf16.msra.mxu0 %v1015
      %1115 = vmatprep.subr.bf16.mxu0 %v1024
      %1116 = vmatpush1.bf16.msra.mxu0 %v1023
      %1117 = vmatprep.subr.bf16.mxu0 %v1032
      %1118 = vmatpush1.bf16.msra.mxu0 %v1031
      %1119 = vmatprep.subr.bf16.mxu0 0
      %1120 = vmatpush1.bf16.msra.mxu0 0
      %1121 = vmatprep.subr.bf16.mxu0 0
      %1122 = vmatpush1.bf16.msra.mxu0 0
      %1123 = vmatprep.subr.bf16.mxu0 0
      %1124 = vmatpush1.bf16.msra.mxu0 0
      %1125 = vmatprep.subr.bf16.mxu0 0
      %1126 = vmatpush1.bf16.msra.mxu0 0
      %1127 = vmatprep.subr.bf16.mxu0 0
      %1128 = vmatpush1.bf16.msra.mxu0 0
      %1129 = vmatprep.subr.bf16.mxu0 0
      %1130 = vmatpush1.bf16.msra.mxu0 0
      %1131 = vmatprep.subr.bf16.mxu0 0
      %1132 = vmatpush1.bf16.msra.mxu0 0
      %1133 = vmatprep.subr.bf16.mxu0 0
      %1134 = vmatpush1.bf16.msra.mxu0 0
      %1135 = vmatprep.mubr.bf16.mxu0 0
      %1136 = vmatmul.mubr.bf16.gmra.mrb[0].mxu0 %v711
      %v1137 = vpop.f32.mrb[0].mxu0
      %v1138 = vadd.f32 0.0, %v1137
      %v1139 = vpop.f32.mrb[0].mxu0
      %v1140 = vadd.f32 0.0, %v1139
      %v1141 = vpop.f32.mrb[0].mxu0
      %v1142 = vadd.f32 0.0, %v1141
      %v1143 = vpop.f32.mrb[0].mxu0
      %v1144 = vadd.f32 0.0, %v1143
      %1145 = vmatprep.mubr.bf16.mxu0 0
      %1146 = vmatmul.mubr.bf16.gmra.mrb[0].mxu0 %v712
      %v1147 = vpop.f32.mrb[0].mxu0
      %v1148 = vadd.f32 0.0, %v1147
      %v1149 = vpop.f32.mrb[0].mxu0
      %v1150 = vadd.f32 0.0, %v1149
      %v1151 = vpop.f32.mrb[0].mxu0
      %v1152 = vadd.f32 0.0, %v1151
      %v1153 = vpop.f32.mrb[0].mxu0
      %v1154 = vadd.f32 0.0, %v1153
      %1155 = vmatprep.mubr.bf16.mxu0 0
      %1156 = vmatmul.mubr.bf16.gmra.mrb[0].mxu0 %v713
      %v1157 = vpop.f32.mrb[0].mxu0
      %v1158 = vadd.f32 0.0, %v1157
      %v1159 = vpop.f32.mrb[0].mxu0
      %v1160 = vadd.f32 0.0, %v1159
      %v1161 = vpop.f32.mrb[0].mxu0
      %v1162 = vadd.f32 0.0, %v1161
      %v1163 = vpop.f32.mrb[0].mxu0
      %v1164 = vadd.f32 0.0, %v1163
      %1165 = vmatprep.mubr.bf16.mxu0 0
      %1166 = vmatmul.mubr.bf16.gmra.mrb[0].mxu0 %v714
      %v1167 = vpop.f32.mrb[0].mxu0
      %v1168 = vadd.f32 0.0, %v1167
      %v1169 = vpop.f32.mrb[0].mxu0
      %v1170 = vadd.f32 0.0, %v1169
      %v1171 = vpop.f32.mrb[0].mxu0
      %v1172 = vadd.f32 0.0, %v1171
      %v1173 = vpop.f32.mrb[0].mxu0
      %v1174 = vadd.f32 0.0, %v1173
      %1175 = vmatprep.mubr.bf16.mxu0 0
      %1176 = vmatmul.mubr.bf16.gmra.mrb[0].mxu0 %v715
      %v1177 = vpop.f32.mrb[0].mxu0
      %v1178 = vadd.f32 0.0, %v1177
      %v1179 = vpop.f32.mrb[0].mxu0
      %v1180 = vadd.f32 0.0, %v1179
      %v1181 = vpop.f32.mrb[0].mxu0
      %v1182 = vadd.f32 0.0, %v1181
      %v1183 = vpop.f32.mrb[0].mxu0
      %v1184 = vadd.f32 0.0, %v1183
      %1185 = vmatprep.mubr.bf16.mxu0 0
      %1186 = vmatmul.mubr.bf16.gmra.mrb[0].mxu0 %v716
      %v1187 = vpop.f32.mrb[0].mxu0
      %v1188 = vadd.f32 0.0, %v1187
      %v1189 = vpop.f32.mrb[0].mxu0
      %v1190 = vadd.f32 0.0, %v1189
      %v1191 = vpop.f32.mrb[0].mxu0
      %v1192 = vadd.f32 0.0, %v1191
      %v1193 = vpop.f32.mrb[0].mxu0
      %v1194 = vadd.f32 0.0, %v1193
      %1195 = vmatprep.mubr.bf16.mxu0 0
      %1196 = vmatmul.mubr.bf16.gmra.mrb[0].mxu0 %v717
      %v1197 = vpop.f32.mrb[0].mxu0
      %v1198 = vadd.f32 0.0, %v1197
      %v1199 = vpop.f32.mrb[0].mxu0
      %v1200 = vadd.f32 0.0, %v1199
      %v1201 = vpop.f32.mrb[0].mxu0
      %v1202 = vadd.f32 0.0, %v1201
      %v1203 = vpop.f32.mrb[0].mxu0
      %v1204 = vadd.f32 0.0, %v1203
      %1205 = vmatprep.mubr.bf16.mxu0 0
      %1206 = vmatmul.mubr.bf16.gmra.mrb[0].mxu0 %v718
      %v1207 = vpop.f32.mrb[0].mxu0
      %v1208 = vadd.f32 0.0, %v1207
      %v1209 = vpop.f32.mrb[0].mxu0
      %v1210 = vadd.f32 0.0, %v1209
      %v1211 = vpop.f32.mrb[0].mxu0
      %v1212 = vadd.f32 0.0, %v1211
      %v1213 = vpop.f32.mrb[0].mxu0
      %v1214 = vadd.f32 0.0, %v1213
      %1215 = vdwg.mxu0
      %1216 = vmatprep.subr.bf16.mxu0 %v978
      %1217 = vmatpush1.bf16.msra.mxu0 %v977
      %1218 = vmatprep.subr.bf16.mxu0 %v986
      %1219 = vmatpush1.bf16.msra.mxu0 %v985
      %1220 = vmatprep.subr.bf16.mxu0 %v994
      %1221 = vmatpush1.bf16.msra.mxu0 %v993
      %1222 = vmatprep.subr.bf16.mxu0 %v1002
      %1223 = vmatpush1.bf16.msra.mxu0 %v1001
      %1224 = vmatprep.subr.bf16.mxu0 %v1010
      %1225 = vmatpush1.bf16.msra.mxu0 %v1009
      %1226 = vmatprep.subr.bf16.mxu0 %v1018
      %1227 = vmatpush1.bf16.msra.mxu0 %v1017
      %1228 = vmatprep.subr.bf16.mxu0 %v1026
      %1229 = vmatpush1.bf16.msra.mxu0 %v1025
      %1230 = vmatprep.subr.bf16.mxu0 %v1034
      %1231 = vmatpush1.bf16.msra.mxu0 %v1033
      %1232 = vmatprep.subr.bf16.mxu0 0
      %1233 = vmatpush1.bf16.msra.mxu0 0
      %1234 = vmatprep.subr.bf16.mxu0 0
      %1235 = vmatpush1.bf16.msra.mxu0 0
      %1236 = vmatprep.subr.bf16.mxu0 0
      %1237 = vmatpush1.bf16.msra.mxu0 0
      %1238 = vmatprep.subr.bf16.mxu0 0
      %1239 = vmatpush1.bf16.msra.mxu0 0
      %1240 = vmatprep.subr.bf16.mxu0 0
      %1241 = vmatpush1.bf16.msra.mxu0 0
      %1242 = vmatprep.subr.bf16.mxu0 0
      %1243 = vmatpush1.bf16.msra.mxu0 0
      %1244 = vmatprep.subr.bf16.mxu0 0
      %1245 = vmatpush1.bf16.msra.mxu0 0
      %1246 = vmatprep.subr.bf16.mxu0 0
      %1247 = vmatpush1.bf16.msra.mxu0 0
      %1248 = vmatprep.mubr.bf16.mxu0 0
      %1249 = vmatmul.mubr.bf16.gmra.mrb[0].mxu0 %v711
      %v1250 = vpop.f32.mrb[0].mxu0
      %v1251 = vadd.f32 0.0, %v1250
      %v1252 = vpop.f32.mrb[0].mxu0
      %v1253 = vadd.f32 0.0, %v1252
      %v1254 = vpop.f32.mrb[0].mxu0
      %v1255 = vadd.f32 0.0, %v1254
      %v1256 = vpop.f32.mrb[0].mxu0
      %v1257 = vadd.f32 0.0, %v1256
      %1258 = vmatprep.mubr.bf16.mxu0 0
      %1259 = vmatmul.mubr.bf16.gmra.mrb[0].mxu0 %v712
      %v1260 = vpop.f32.mrb[0].mxu0
      %v1261 = vadd.f32 0.0, %v1260
      %v1262 = vpop.f32.mrb[0].mxu0
      %v1263 = vadd.f32 0.0, %v1262
      %v1264 = vpop.f32.mrb[0].mxu0
      %v1265 = vadd.f32 0.0, %v1264
      %v1266 = vpop.f32.mrb[0].mxu0
      %v1267 = vadd.f32 0.0, %v1266
      %1268 = vmatprep.mubr.bf16.mxu0 0
      %1269 = vmatmul.mubr.bf16.gmra.mrb[0].mxu0 %v713
      %v1270 = vpop.f32.mrb[0].mxu0
      %v1271 = vadd.f32 0.0, %v1270
      %v1272 = vpop.f32.mrb[0].mxu0
      %v1273 = vadd.f32 0.0, %v1272
      %v1274 = vpop.f32.mrb[0].mxu0
      %v1275 = vadd.f32 0.0, %v1274
      %v1276 = vpop.f32.mrb[0].mxu0
      %v1277 = vadd.f32 0.0, %v1276
      %1278 = vmatprep.mubr.bf16.mxu0 0
      %1279 = vmatmul.mubr.bf16.gmra.mrb[0].mxu0 %v714
      %v1280 = vpop.f32.mrb[0].mxu0
      %v1281 = vadd.f32 0.0, %v1280
      %v1282 = vpop.f32.mrb[0].mxu0
      %v1283 = vadd.f32 0.0, %v1282
      %v1284 = vpop.f32.mrb[0].mxu0
      %v1285 = vadd.f32 0.0, %v1284
      %v1286 = vpop.f32.mrb[0].mxu0
      %v1287 = vadd.f32 0.0, %v1286
      %1288 = vmatprep.mubr.bf16.mxu0 0
      %1289 = vmatmul.mubr.bf16.gmra.mrb[0].mxu0 %v715
      %v1290 = vpop.f32.mrb[0].mxu0
      %v1291 = vadd.f32 0.0, %v1290
      %v1292 = vpop.f32.mrb[0].mxu0
      %v1293 = vadd.f32 0.0, %v1292
      %v1294 = vpop.f32.mrb[0].mxu0
      %v1295 = vadd.f32 0.0, %v1294
      %v1296 = vpop.f32.mrb[0].mxu0
      %v1297 = vadd.f32 0.0, %v1296
      %1298 = vmatprep.mubr.bf16.mxu0 0
      %1299 = vmatmul.mubr.bf16.gmra.mrb[0].mxu0 %v716
      %v1300 = vpop.f32.mrb[0].mxu0
      %v1301 = vadd.f32 0.0, %v1300
      %v1302 = vpop.f32.mrb[0].mxu0
      %v1303 = vadd.f32 0.0, %v1302
      %v1304 = vpop.f32.mrb[0].mxu0
      %v1305 = vadd.f32 0.0, %v1304
      %v1306 = vpop.f32.mrb[0].mxu0
      %v1307 = vadd.f32 0.0, %v1306
      %1308 = vmatprep.mubr.bf16.mxu0 0
      %1309 = vmatmul.mubr.bf16.gmra.mrb[0].mxu0 %v717
      %v1310 = vpop.f32.mrb[0].mxu0
      %v1311 = vadd.f32 0.0, %v1310
      %v1312 = vpop.f32.mrb[0].mxu0
      %v1313 = vadd.f32 0.0, %v1312
      %v1314 = vpop.f32.mrb[0].mxu0
      %v1315 = vadd.f32 0.0, %v1314
      %v1316 = vpop.f32.mrb[0].mxu0
      %v1317 = vadd.f32 0.0, %v1316
      %1318 = vmatprep.mubr.bf16.mxu0 0
      %1319 = vmatmul.mubr.bf16.gmra.mrb[0].mxu0 %v718
      %v1320 = vpop.f32.mrb[0].mxu0
      %v1321 = vadd.f32 0.0, %v1320
      %v1322 = vpop.f32.mrb[0].mxu0
      %v1323 = vadd.f32 0.0, %v1322
      %v1324 = vpop.f32.mrb[0].mxu0
      %v1325 = vadd.f32 0.0, %v1324
      %v1326 = vpop.f32.mrb[0].mxu0
      %v1327 = vadd.f32 0.0, %v1326
      %1328 = vdwg.mxu0
      %1329 = vmatprep.subr.bf16.mxu0 %v980
      %1330 = vmatpush1.bf16.msra.mxu0 %v979
      %1331 = vmatprep.subr.bf16.mxu0 %v988
      %1332 = vmatpush1.bf16.msra.mxu0 %v987
      %1333 = vmatprep.subr.bf16.mxu0 %v996
      %1334 = vmatpush1.bf16.msra.mxu0 %v995
      %1335 = vmatprep.subr.bf16.mxu0 %v1004
      %1336 = vmatpush1.bf16.msra.mxu0 %v1003
      %1337 = vmatprep.subr.bf16.mxu0 %v1012
      %1338 = vmatpush1.bf16.msra.mxu0 %v1011
      %1339 = vmatprep.subr.bf16.mxu0 %v1020
      %1340 = vmatpush1.bf16.msra.mxu0 %v1019
      %1341 = vmatprep.subr.bf16.mxu0 %v1028
      %1342 = vmatpush1.bf16.msra.mxu0 %v1027
      %1343 = vmatprep.subr.bf16.mxu0 %v1036
      %1344 = vmatpush1.bf16.msra.mxu0 %v1035
      %1345 = vmatprep.subr.bf16.mxu0 0
      %1346 = vmatpush1.bf16.msra.mxu0 0
      %1347 = vmatprep.subr.bf16.mxu0 0
      %1348 = vmatpush1.bf16.msra.mxu0 0
      %1349 = vmatprep.subr.bf16.mxu0 0
      %1350 = vmatpush1.bf16.msra.mxu0 0
      %1351 = vmatprep.subr.bf16.mxu0 0
      %1352 = vmatpush1.bf16.msra.mxu0 0
      %1353 = vmatprep.subr.bf16.mxu0 0
      %1354 = vmatpush1.bf16.msra.mxu0 0
      %1355 = vmatprep.subr.bf16.mxu0 0
      %1356 = vmatpush1.bf16.msra.mxu0 0
      %1357 = vmatprep.subr.bf16.mxu0 0
      %1358 = vmatpush1.bf16.msra.mxu0 0
      %1359 = vmatprep.subr.bf16.mxu0 0
      %1360 = vmatpush1.bf16.msra.mxu0 0
      %1361 = vmatprep.mubr.bf16.mxu0 0
      %1362 = vmatmul.mubr.bf16.gmra.mrb[0].mxu0 %v711
      %v1363 = vpop.f32.mrb[0].mxu0
      %v1364 = vadd.f32 0.0, %v1363
      %v1365 = vpop.f32.mrb[0].mxu0
      %v1366 = vadd.f32 0.0, %v1365
      %v1367 = vpop.f32.mrb[0].mxu0
      %v1368 = vadd.f32 0.0, %v1367
      %v1369 = vpop.f32.mrb[0].mxu0
      %v1370 = vadd.f32 0.0, %v1369
      %1371 = vmatprep.mubr.bf16.mxu0 0
      %1372 = vmatmul.mubr.bf16.gmra.mrb[0].mxu0 %v712
      %v1373 = vpop.f32.mrb[0].mxu0
      %v1374 = vadd.f32 0.0, %v1373
      %v1375 = vpop.f32.mrb[0].mxu0
      %v1376 = vadd.f32 0.0, %v1375
      %v1377 = vpop.f32.mrb[0].mxu0
      %v1378 = vadd.f32 0.0, %v1377
      %v1379 = vpop.f32.mrb[0].mxu0
      %v1380 = vadd.f32 0.0, %v1379
      %1381 = vmatprep.mubr.bf16.mxu0 0
      %1382 = vmatmul.mubr.bf16.gmra.mrb[0].mxu0 %v713
      %v1383 = vpop.f32.mrb[0].mxu0
      %v1384 = vadd.f32 0.0, %v1383
      %v1385 = vpop.f32.mrb[0].mxu0
      %v1386 = vadd.f32 0.0, %v1385
      %v1387 = vpop.f32.mrb[0].mxu0
      %v1388 = vadd.f32 0.0, %v1387
      %v1389 = vpop.f32.mrb[0].mxu0
      %v1390 = vadd.f32 0.0, %v1389
      %1391 = vmatprep.mubr.bf16.mxu0 0
      %1392 = vmatmul.mubr.bf16.gmra.mrb[0].mxu0 %v714
      %v1393 = vpop.f32.mrb[0].mxu0
      %v1394 = vadd.f32 0.0, %v1393
      %v1395 = vpop.f32.mrb[0].mxu0
      %v1396 = vadd.f32 0.0, %v1395
      %v1397 = vpop.f32.mrb[0].mxu0
      %v1398 = vadd.f32 0.0, %v1397
      %v1399 = vpop.f32.mrb[0].mxu0
      %v1400 = vadd.f32 0.0, %v1399
      %1401 = vmatprep.mubr.bf16.mxu0 0
      %1402 = vmatmul.mubr.bf16.gmra.mrb[0].mxu0 %v715
      %v1403 = vpop.f32.mrb[0].mxu0
      %v1404 = vadd.f32 0.0, %v1403
      %v1405 = vpop.f32.mrb[0].mxu0
      %v1406 = vadd.f32 0.0, %v1405
      %v1407 = vpop.f32.mrb[0].mxu0
      %v1408 = vadd.f32 0.0, %v1407
      %v1409 = vpop.f32.mrb[0].mxu0
      %v1410 = vadd.f32 0.0, %v1409
      %1411 = vmatprep.mubr.bf16.mxu0 0
      %1412 = vmatmul.mubr.bf16.gmra.mrb[0].mxu0 %v716
      %v1413 = vpop.f32.mrb[0].mxu0
      %v1414 = vadd.f32 0.0, %v1413
      %v1415 = vpop.f32.mrb[0].mxu0
      %v1416 = vadd.f32 0.0, %v1415
      %v1417 = vpop.f32.mrb[0].mxu0
      %v1418 = vadd.f32 0.0, %v1417
      %v1419 = vpop.f32.mrb[0].mxu0
      %v1420 = vadd.f32 0.0, %v1419
      %1421 = vmatprep.mubr.bf16.mxu0 0
      %1422 = vmatmul.mubr.bf16.gmra.mrb[0].mxu0 %v717
      %v1423 = vpop.f32.mrb[0].mxu0
      %v1424 = vadd.f32 0.0, %v1423
      %v1425 = vpop.f32.mrb[0].mxu0
      %v1426 = vadd.f32 0.0, %v1425
      %v1427 = vpop.f32.mrb[0].mxu0
      %v1428 = vadd.f32 0.0, %v1427
      %v1429 = vpop.f32.mrb[0].mxu0
      %v1430 = vadd.f32 0.0, %v1429
      %1431 = vmatprep.mubr.bf16.mxu0 0
      %1432 = vmatmul.mubr.bf16.gmra.mrb[0].mxu0 %v718
      %v1433 = vpop.f32.mrb[0].mxu0
      %v1434 = vadd.f32 0.0, %v1433
      %v1435 = vpop.f32.mrb[0].mxu0
      %v1436 = vadd.f32 0.0, %v1435
      %v1437 = vpop.f32.mrb[0].mxu0
      %v1438 = vadd.f32 0.0, %v1437
      %v1439 = vpop.f32.mrb[0].mxu0
      %v1440 = vadd.f32 0.0, %v1439
      %1441 = vdwg.mxu0
      %1442 = vmatprep.subr.bf16.mxu0 %v982
      %1443 = vmatpush1.bf16.msra.mxu0 %v981
      %1444 = vmatprep.subr.bf16.mxu0 %v990
      %1445 = vmatpush1.bf16.msra.mxu0 %v989
      %1446 = vmatprep.subr.bf16.mxu0 %v998
      %1447 = vmatpush1.bf16.msra.mxu0 %v997
      %1448 = vmatprep.subr.bf16.mxu0 %v1006
      %1449 = vmatpush1.bf16.msra.mxu0 %v1005
      %1450 = vmatprep.subr.bf16.mxu0 %v1014
      %1451 = vmatpush1.bf16.msra.mxu0 %v1013
      %1452 = vmatprep.subr.bf16.mxu0 %v1022
      %1453 = vmatpush1.bf16.msra.mxu0 %v1021
      %1454 = vmatprep.subr.bf16.mxu0 %v1030
      %1455 = vmatpush1.bf16.msra.mxu0 %v1029
      %1456 = vmatprep.subr.bf16.mxu0 %v1038
      %1457 = vmatpush1.bf16.msra.mxu0 %v1037
      %1458 = vmatprep.subr.bf16.mxu0 0
      %1459 = vmatpush1.bf16.msra.mxu0 0
      %1460 = vmatprep.subr.bf16.mxu0 0
      %1461 = vmatpush1.bf16.msra.mxu0 0
      %1462 = vmatprep.subr.bf16.mxu0 0
      %1463 = vmatpush1.bf16.msra.mxu0 0
      %1464 = vmatprep.subr.bf16.mxu0 0
      %1465 = vmatpush1.bf16.msra.mxu0 0
      %1466 = vmatprep.subr.bf16.mxu0 0
      %1467 = vmatpush1.bf16.msra.mxu0 0
      %1468 = vmatprep.subr.bf16.mxu0 0
      %1469 = vmatpush1.bf16.msra.mxu0 0
      %1470 = vmatprep.subr.bf16.mxu0 0
      %1471 = vmatpush1.bf16.msra.mxu0 0
      %1472 = vmatprep.subr.bf16.mxu0 0
      %1473 = vmatpush1.bf16.msra.mxu0 0
      %1474 = vmatprep.mubr.bf16.mxu0 0
      %1475 = vmatmul.mubr.bf16.gmra.mrb[0].mxu0 %v711
      %v1476 = vpop.f32.mrb[0].mxu0
      %v1477 = vadd.f32 0.0, %v1476
      %v1478 = vpop.f32.mrb[0].mxu0
      %v1479 = vadd.f32 0.0, %v1478
      %v1480 = vpop.f32.mrb[0].mxu0
      %v1481 = vadd.f32 0.0, %v1480
      %v1482 = vpop.f32.mrb[0].mxu0
      %v1483 = vadd.f32 0.0, %v1482
      %1484 = vmatprep.mubr.bf16.mxu0 0
      %1485 = vmatmul.mubr.bf16.gmra.mrb[0].mxu0 %v712
      %v1486 = vpop.f32.mrb[0].mxu0
      %v1487 = vadd.f32 0.0, %v1486
      %v1488 = vpop.f32.mrb[0].mxu0
      %v1489 = vadd.f32 0.0, %v1488
      %v1490 = vpop.f32.mrb[0].mxu0
      %v1491 = vadd.f32 0.0, %v1490
      %v1492 = vpop.f32.mrb[0].mxu0
      %v1493 = vadd.f32 0.0, %v1492
      %1494 = vmatprep.mubr.bf16.mxu0 0
      %1495 = vmatmul.mubr.bf16.gmra.mrb[0].mxu0 %v713
      %v1496 = vpop.f32.mrb[0].mxu0
      %v1497 = vadd.f32 0.0, %v1496
      %v1498 = vpop.f32.mrb[0].mxu0
      %v1499 = vadd.f32 0.0, %v1498
      %v1500 = vpop.f32.mrb[0].mxu0
      %v1501 = vadd.f32 0.0, %v1500
      %v1502 = vpop.f32.mrb[0].mxu0
      %v1503 = vadd.f32 0.0, %v1502
      %1504 = vmatprep.mubr.bf16.mxu0 0
      %1505 = vmatmul.mubr.bf16.gmra.mrb[0].mxu0 %v714
      %v1506 = vpop.f32.mrb[0].mxu0
      %v1507 = vadd.f32 0.0, %v1506
      %v1508 = vpop.f32.mrb[0].mxu0
      %v1509 = vadd.f32 0.0, %v1508
      %v1510 = vpop.f32.mrb[0].mxu0
      %v1511 = vadd.f32 0.0, %v1510
      %v1512 = vpop.f32.mrb[0].mxu0
      %v1513 = vadd.f32 0.0, %v1512
      %1514 = vmatprep.mubr.bf16.mxu0 0
      %1515 = vmatmul.mubr.bf16.gmra.mrb[0].mxu0 %v715
      %v1516 = vpop.f32.mrb[0].mxu0
      %v1517 = vadd.f32 0.0, %v1516
      %v1518 = vpop.f32.mrb[0].mxu0
      %v1519 = vadd.f32 0.0, %v1518
      %v1520 = vpop.f32.mrb[0].mxu0
      %v1521 = vadd.f32 0.0, %v1520
      %v1522 = vpop.f32.mrb[0].mxu0
      %v1523 = vadd.f32 0.0, %v1522
      %1524 = vmatprep.mubr.bf16.mxu0 0
      %1525 = vmatmul.mubr.bf16.gmra.mrb[0].mxu0 %v716
      %v1526 = vpop.f32.mrb[0].mxu0
      %v1527 = vadd.f32 0.0, %v1526
      %v1528 = vpop.f32.mrb[0].mxu0
      %v1529 = vadd.f32 0.0, %v1528
      %v1530 = vpop.f32.mrb[0].mxu0
      %v1531 = vadd.f32 0.0, %v1530
      %v1532 = vpop.f32.mrb[0].mxu0
      %v1533 = vadd.f32 0.0, %v1532
      %1534 = vmatprep.mubr.bf16.mxu0 0
      %1535 = vmatmul.mubr.bf16.gmra.mrb[0].mxu0 %v717
      %v1536 = vpop.f32.mrb[0].mxu0
      %v1537 = vadd.f32 0.0, %v1536
      %v1538 = vpop.f32.mrb[0].mxu0
      %v1539 = vadd.f32 0.0, %v1538
      %v1540 = vpop.f32.mrb[0].mxu0
      %v1541 = vadd.f32 0.0, %v1540
      %v1542 = vpop.f32.mrb[0].mxu0
      %v1543 = vadd.f32 0.0, %v1542
      %1544 = vmatprep.mubr.bf16.mxu0 0
      %1545 = vmatmul.mubr.bf16.gmra.mrb[0].mxu0 %v718
      %v1546 = vpop.f32.mrb[0].mxu0
      %v1547 = vadd.f32 0.0, %v1546
      %v1548 = vpop.f32.mrb[0].mxu0
      %v1549 = vadd.f32 0.0, %v1548
      %v1550 = vpop.f32.mrb[0].mxu0
      %v1551 = vadd.f32 0.0, %v1550
      %v1552 = vpop.f32.mrb[0].mxu0
      %v1553 = vadd.f32 0.0, %v1552
      %1554 = vdwg.mxu0
      %s1555 = sadd.s32 %s23, %s24
      %s1556 = smul.u32 %s1555, 128
      %v1557 = vlaneseq
      %v1558 = vshrl.u32 %v1557, 7
      %v1559 = vadd.s32 %v1558, 8
      %v1560 = vadd.s32 %v1558, 16
      %v1561 = vadd.s32 %v1558, 24
      %v1562 = vadd.s32 %v1558, 32
      %v1563 = vadd.s32 %v1558, 40
      %v1564 = vadd.s32 %v1558, 48
      %v1565 = vadd.s32 %v1558, 56
      %v1566 = vadd.s32 %v1558, 64
      %v1567 = vadd.s32 %v1558, 72
      %v1568 = vadd.s32 %v1558, 80
      %v1569 = vadd.s32 %v1558, 88
      %v1570 = vadd.s32 %v1558, 96
      %v1571 = vadd.s32 %v1558, 104
      %v1572 = vadd.s32 %v1558, 112
      %v1573 = vadd.s32 %v1558, 120
      %v1574 = vstv %s1556
      %v1575 = vadd.s32 %v1574, %v1558
      %v1576 = vadd.s32 %v1574, %v1559
      %v1577 = vadd.s32 %v1574, %v1560
      %v1578 = vadd.s32 %v1574, %v1561
      %v1579 = vadd.s32 %v1574, %v1562
      %v1580 = vadd.s32 %v1574, %v1563
      %v1581 = vadd.s32 %v1574, %v1564
      %v1582 = vadd.s32 %v1574, %v1565
      %v1583 = vadd.s32 %v1574, %v1566
      %v1584 = vadd.s32 %v1574, %v1567
      %v1585 = vadd.s32 %v1574, %v1568
      %v1586 = vadd.s32 %v1574, %v1569
      %v1587 = vadd.s32 %v1574, %v1570
      %v1588 = vadd.s32 %v1574, %v1571
      %v1589 = vadd.s32 %v1574, %v1572
      %v1590 = vadd.s32 %v1574, %v1573
      %vm1591 = vcmp.lt.s32.totalorder %v1575, 128
      %vm1592 = vcmp.lt.s32.totalorder %v1576, 128
      %vm1593 = vcmp.lt.s32.totalorder %v1577, 128
      %vm1594 = vcmp.lt.s32.totalorder %v1578, 128
      %vm1595 = vcmp.lt.s32.totalorder %v1579, 128
      %vm1596 = vcmp.lt.s32.totalorder %v1580, 128
      %vm1597 = vcmp.lt.s32.totalorder %v1581, 128
      %vm1598 = vcmp.lt.s32.totalorder %v1582, 128
      %vm1599 = vcmp.lt.s32.totalorder %v1583, 128
      %vm1600 = vcmp.lt.s32.totalorder %v1584, 128
      %vm1601 = vcmp.lt.s32.totalorder %v1585, 128
      %vm1602 = vcmp.lt.s32.totalorder %v1586, 128
      %vm1603 = vcmp.lt.s32.totalorder %v1587, 128
      %vm1604 = vcmp.lt.s32.totalorder %v1588, 128
      %vm1605 = vcmp.lt.s32.totalorder %v1589, 128
      %vm1606 = vcmp.lt.s32.totalorder %v1590, 128
      %v1607 = vsel %vm1591, 1, 0
      %v1608 = vsel %vm1592, 1, 0
      %v1609 = vsel %vm1593, 1, 0
      %v1610 = vsel %vm1594, 1, 0
      %v1611 = vsel %vm1595, 1, 0
      %v1612 = vsel %vm1596, 1, 0
      %v1613 = vsel %vm1597, 1, 0
      %v1614 = vsel %vm1598, 1, 0
      %v1615 = vsel %vm1599, 1, 0
      %v1616 = vsel %vm1600, 1, 0
      %v1617 = vsel %vm1601, 1, 0
      %v1618 = vsel %vm1602, 1, 0
      %v1619 = vsel %vm1603, 1, 0
      %v1620 = vsel %vm1604, 1, 0
      %v1621 = vsel %vm1605, 1, 0
      %v1622 = vsel %vm1606, 1, 0
      %vm1623 = vcmp.eq.s32.totalorder %v1607, 1
      %vm1624 = vcmp.eq.s32.totalorder %v1608, 1
      %vm1625 = vcmp.eq.s32.totalorder %v1609, 1
      %vm1626 = vcmp.eq.s32.totalorder %v1610, 1
      %vm1627 = vcmp.eq.s32.totalorder %v1611, 1
      %vm1628 = vcmp.eq.s32.totalorder %v1612, 1
      %vm1629 = vcmp.eq.s32.totalorder %v1613, 1
      %vm1630 = vcmp.eq.s32.totalorder %v1614, 1
      %vm1631 = vcmp.eq.s32.totalorder %v1615, 1
      %vm1632 = vcmp.eq.s32.totalorder %v1616, 1
      %vm1633 = vcmp.eq.s32.totalorder %v1617, 1
      %vm1634 = vcmp.eq.s32.totalorder %v1618, 1
      %vm1635 = vcmp.eq.s32.totalorder %v1619, 1
      %vm1636 = vcmp.eq.s32.totalorder %v1620, 1
      %vm1637 = vcmp.eq.s32.totalorder %v1621, 1
      %vm1638 = vcmp.eq.s32.totalorder %v1622, 1
      %v1639 = vsel %vm1623, %v1138, -inf
      %v1640 = vsel %vm1623, %v1140, -inf
      %v1641 = vsel %vm1623, %v1251, -inf
      %v1642 = vsel %vm1623, %v1253, -inf
      %v1643 = vsel %vm1623, %v1364, -inf
      %v1644 = vsel %vm1623, %v1366, -inf
      %v1645 = vsel %vm1623, %v1477, -inf
      %v1646 = vsel %vm1623, %v1479, -inf
      %v1647 = vsel %vm1624, %v1142, -inf
      %v1648 = vsel %vm1624, %v1144, -inf
      %v1649 = vsel %vm1624, %v1255, -inf
      %v1650 = vsel %vm1624, %v1257, -inf
      %v1651 = vsel %vm1624, %v1368, -inf
      %v1652 = vsel %vm1624, %v1370, -inf
      %v1653 = vsel %vm1624, %v1481, -inf
      %v1654 = vsel %vm1624, %v1483, -inf
      %v1655 = vsel %vm1625, %v1148, -inf
      %v1656 = vsel %vm1625, %v1150, -inf
      %v1657 = vsel %vm1625, %v1261, -inf
      %v1658 = vsel %vm1625, %v1263, -inf
      %v1659 = vsel %vm1625, %v1374, -inf
      %v1660 = vsel %vm1625, %v1376, -inf
      %v1661 = vsel %vm1625, %v1487, -inf
      %v1662 = vsel %vm1625, %v1489, -inf
      %v1663 = vsel %vm1626, %v1152, -inf
      %v1664 = vsel %vm1626, %v1154, -inf
      %v1665 = vsel %vm1626, %v1265, -inf
      %v1666 = vsel %vm1626, %v1267, -inf
      %v1667 = vsel %vm1626, %v1378, -inf
      %v1668 = vsel %vm1626, %v1380, -inf
      %v1669 = vsel %vm1626, %v1491, -inf
      %v1670 = vsel %vm1626, %v1493, -inf
      %v1671 = vsel %vm1627, %v1158, -inf
      %v1672 = vsel %vm1627, %v1160, -inf
      %v1673 = vsel %vm1627, %v1271, -inf
      %v1674 = vsel %vm1627, %v1273, -inf
      %v1675 = vsel %vm1627, %v1384, -inf
      %v1676 = vsel %vm1627, %v1386, -inf
      %v1677 = vsel %vm1627, %v1497, -inf
      %v1678 = vsel %vm1627, %v1499, -inf
      %v1679 = vsel %vm1628, %v1162, -inf
      %v1680 = vsel %vm1628, %v1164, -inf
      %v1681 = vsel %vm1628, %v1275, -inf
      %v1682 = vsel %vm1628, %v1277, -inf
      %v1683 = vsel %vm1628, %v1388, -inf
      %v1684 = vsel %vm1628, %v1390, -inf
      %v1685 = vsel %vm1628, %v1501, -inf
      %v1686 = vsel %vm1628, %v1503, -inf
      %v1687 = vsel %vm1629, %v1168, -inf
      %v1688 = vsel %vm1629, %v1170, -inf
      %v1689 = vsel %vm1629, %v1281, -inf
      %v1690 = vsel %vm1629, %v1283, -inf
      %v1691 = vsel %vm1629, %v1394, -inf
      %v1692 = vsel %vm1629, %v1396, -inf
      %v1693 = vsel %vm1629, %v1507, -inf
      %v1694 = vsel %vm1629, %v1509, -inf
      %v1695 = vsel %vm1630, %v1172, -inf
      %v1696 = vsel %vm1630, %v1174, -inf
      %v1697 = vsel %vm1630, %v1285, -inf
      %v1698 = vsel %vm1630, %v1287, -inf
      %v1699 = vsel %vm1630, %v1398, -inf
      %v1700 = vsel %vm1630, %v1400, -inf
      %v1701 = vsel %vm1630, %v1511, -inf
      %v1702 = vsel %vm1630, %v1513, -inf
      %v1703 = vsel %vm1631, %v1178, -inf
      %v1704 = vsel %vm1631, %v1180, -inf
      %v1705 = vsel %vm1631, %v1291, -inf
      %v1706 = vsel %vm1631, %v1293, -inf
      %v1707 = vsel %vm1631, %v1404, -inf
      %v1708 = vsel %vm1631, %v1406, -inf
      %v1709 = vsel %vm1631, %v1517, -inf
      %v1710 = vsel %vm1631, %v1519, -inf
      %v1711 = vsel %vm1632, %v1182, -inf
      %v1712 = vsel %vm1632, %v1184, -inf
      %v1713 = vsel %vm1632, %v1295, -inf
      %v1714 = vsel %vm1632, %v1297, -inf
      %v1715 = vsel %vm1632, %v1408, -inf
      %v1716 = vsel %vm1632, %v1410, -inf
      %v1717 = vsel %vm1632, %v1521, -inf
      %v1718 = vsel %vm1632, %v1523, -inf
      %v1719 = vsel %vm1633, %v1188, -inf
      %v1720 = vsel %vm1633, %v1190, -inf
      %v1721 = vsel %vm1633, %v1301, -inf
      %v1722 = vsel %vm1633, %v1303, -inf
      %v1723 = vsel %vm1633, %v1414, -inf
      %v1724 = vsel %vm1633, %v1416, -inf
      %v1725 = vsel %vm1633, %v1527, -inf
      %v1726 = vsel %vm1633, %v1529, -inf
      %v1727 = vsel %vm1634, %v1192, -inf
      %v1728 = vsel %vm1634, %v1194, -inf
      %v1729 = vsel %vm1634, %v1305, -inf
      %v1730 = vsel %vm1634, %v1307, -inf
      %v1731 = vsel %vm1634, %v1418, -inf
      %v1732 = vsel %vm1634, %v1420, -inf
      %v1733 = vsel %vm1634, %v1531, -inf
      %v1734 = vsel %vm1634, %v1533, -inf
      %v1735 = vsel %vm1635, %v1198, -inf
      %v1736 = vsel %vm1635, %v1200, -inf
      %v1737 = vsel %vm1635, %v1311, -inf
      %v1738 = vsel %vm1635, %v1313, -inf
      %v1739 = vsel %vm1635, %v1424, -inf
      %v1740 = vsel %vm1635, %v1426, -inf
      %v1741 = vsel %vm1635, %v1537, -inf
      %v1742 = vsel %vm1635, %v1539, -inf
      %v1743 = vsel %vm1636, %v1202, -inf
      %v1744 = vsel %vm1636, %v1204, -inf
      %v1745 = vsel %vm1636, %v1315, -inf
      %v1746 = vsel %vm1636, %v1317, -inf
      %v1747 = vsel %vm1636, %v1428, -inf
      %v1748 = vsel %vm1636, %v1430, -inf
      %v1749 = vsel %vm1636, %v1541, -inf
      %v1750 = vsel %vm1636, %v1543, -inf
      %v1751 = vsel %vm1637, %v1208, -inf
      %v1752 = vsel %vm1637, %v1210, -inf
      %v1753 = vsel %vm1637, %v1321, -inf
      %v1754 = vsel %vm1637, %v1323, -inf
      %v1755 = vsel %vm1637, %v1434, -inf
      %v1756 = vsel %vm1637, %v1436, -inf
      %v1757 = vsel %vm1637, %v1547, -inf
      %v1758 = vsel %vm1637, %v1549, -inf
      %v1759 = vsel %vm1638, %v1212, -inf
      %v1760 = vsel %vm1638, %v1214, -inf
      %v1761 = vsel %vm1638, %v1325, -inf
      %v1762 = vsel %vm1638, %v1327, -inf
      %v1763 = vsel %vm1638, %v1438, -inf
      %v1764 = vsel %vm1638, %v1440, -inf
      %v1765 = vsel %vm1638, %v1551, -inf
      %v1766 = vsel %vm1638, %v1553, -inf
      %v1767 = vmax.f32 %v1639, %v1647
      %v1768 = vmax.f32 %v1767, %v1655
      %v1769 = vmax.f32 %v1768, %v1663
      %v1770 = vmax.f32 %v1769, %v1671
      %v1771 = vmax.f32 %v1770, %v1679
      %v1772 = vmax.f32 %v1771, %v1687
      %v1773 = vmax.f32 %v1772, %v1695
      %v1774 = vmax.f32 %v1773, %v1703
      %v1775 = vmax.f32 %v1774, %v1711
      %v1776 = vmax.f32 %v1775, %v1719
      %v1777 = vmax.f32 %v1776, %v1727
      %v1778 = vmax.f32 %v1777, %v1735
      %v1779 = vmax.f32 %v1778, %v1743
      %v1780 = vmax.f32 %v1779, %v1751
      %v1781 = vmax.f32 %v1780, %v1759
      %v1782 = vrot.slane %v1781, 4
      %v1783 = vmax.f32 %v1781, %v1782
      %v1784 = vrot.slane %v1783, 2
      %v1785 = vmax.f32 %v1783, %v1784
      %v1786 = vrot.slane %v1785, 1
      %v1787 = vmax.f32 %v1785, %v1786
      %v1788 = vmax.f32 %v1640, %v1648
      %v1789 = vmax.f32 %v1788, %v1656
      %v1790 = vmax.f32 %v1789, %v1664
      %v1791 = vmax.f32 %v1790, %v1672
      %v1792 = vmax.f32 %v1791, %v1680
      %v1793 = vmax.f32 %v1792, %v1688
      %v1794 = vmax.f32 %v1793, %v1696
      %v1795 = vmax.f32 %v1794, %v1704
      %v1796 = vmax.f32 %v1795, %v1712
      %v1797 = vmax.f32 %v1796, %v1720
      %v1798 = vmax.f32 %v1797, %v1728
      %v1799 = vmax.f32 %v1798, %v1736
      %v1800 = vmax.f32 %v1799, %v1744
      %v1801 = vmax.f32 %v1800, %v1752
      %v1802 = vmax.f32 %v1801, %v1760
      %v1803 = vrot.slane %v1802, 4
      %v1804 = vmax.f32 %v1802, %v1803
      %v1805 = vrot.slane %v1804, 2
      %v1806 = vmax.f32 %v1804, %v1805
      %v1807 = vrot.slane %v1806, 1
      %v1808 = vmax.f32 %v1806, %v1807
      %v1809 = vmax.f32 %v1641, %v1649
      %v1810 = vmax.f32 %v1809, %v1657
      %v1811 = vmax.f32 %v1810, %v1665
      %v1812 = vmax.f32 %v1811, %v1673
      %v1813 = vmax.f32 %v1812, %v1681
      %v1814 = vmax.f32 %v1813, %v1689
      %v1815 = vmax.f32 %v1814, %v1697
      %v1816 = vmax.f32 %v1815, %v1705
      %v1817 = vmax.f32 %v1816, %v1713
      %v1818 = vmax.f32 %v1817, %v1721
      %v1819 = vmax.f32 %v1818, %v1729
      %v1820 = vmax.f32 %v1819, %v1737
      %v1821 = vmax.f32 %v1820, %v1745
      %v1822 = vmax.f32 %v1821, %v1753
      %v1823 = vmax.f32 %v1822, %v1761
      %v1824 = vrot.slane %v1823, 4
      %v1825 = vmax.f32 %v1823, %v1824
      %v1826 = vrot.slane %v1825, 2
      %v1827 = vmax.f32 %v1825, %v1826
      %v1828 = vrot.slane %v1827, 1
      %v1829 = vmax.f32 %v1827, %v1828
      %v1830 = vmax.f32 %v1642, %v1650
      %v1831 = vmax.f32 %v1830, %v1658
      %v1832 = vmax.f32 %v1831, %v1666
      %v1833 = vmax.f32 %v1832, %v1674
      %v1834 = vmax.f32 %v1833, %v1682
      %v1835 = vmax.f32 %v1834, %v1690
      %v1836 = vmax.f32 %v1835, %v1698
      %v1837 = vmax.f32 %v1836, %v1706
      %v1838 = vmax.f32 %v1837, %v1714
      %v1839 = vmax.f32 %v1838, %v1722
      %v1840 = vmax.f32 %v1839, %v1730
      %v1841 = vmax.f32 %v1840, %v1738
      %v1842 = vmax.f32 %v1841, %v1746
      %v1843 = vmax.f32 %v1842, %v1754
      %v1844 = vmax.f32 %v1843, %v1762
      %v1845 = vrot.slane %v1844, 4
      %v1846 = vmax.f32 %v1844, %v1845
      %v1847 = vrot.slane %v1846, 2
      %v1848 = vmax.f32 %v1846, %v1847
      %v1849 = vrot.slane %v1848, 1
      %v1850 = vmax.f32 %v1848, %v1849
      %v1851 = vmax.f32 %v1643, %v1651
      %v1852 = vmax.f32 %v1851, %v1659
      %v1853 = vmax.f32 %v1852, %v1667
      %v1854 = vmax.f32 %v1853, %v1675
      %v1855 = vmax.f32 %v1854, %v1683
      %v1856 = vmax.f32 %v1855, %v1691
      %v1857 = vmax.f32 %v1856, %v1699
      %v1858 = vmax.f32 %v1857, %v1707
      %v1859 = vmax.f32 %v1858, %v1715
      %v1860 = vmax.f32 %v1859, %v1723
      %v1861 = vmax.f32 %v1860, %v1731
      %v1862 = vmax.f32 %v1861, %v1739
      %v1863 = vmax.f32 %v1862, %v1747
      %v1864 = vmax.f32 %v1863, %v1755
      %v1865 = vmax.f32 %v1864, %v1763
      %v1866 = vrot.slane %v1865, 4
      %v1867 = vmax.f32 %v1865, %v1866
      %v1868 = vrot.slane %v1867, 2
      %v1869 = vmax.f32 %v1867, %v1868
      %v1870 = vrot.slane %v1869, 1
      %v1871 = vmax.f32 %v1869, %v1870
      %v1872 = vmax.f32 %v1644, %v1652
      %v1873 = vmax.f32 %v1872, %v1660
      %v1874 = vmax.f32 %v1873, %v1668
      %v1875 = vmax.f32 %v1874, %v1676
      %v1876 = vmax.f32 %v1875, %v1684
      %v1877 = vmax.f32 %v1876, %v1692
      %v1878 = vmax.f32 %v1877, %v1700
      %v1879 = vmax.f32 %v1878, %v1708
      %v1880 = vmax.f32 %v1879, %v1716
      %v1881 = vmax.f32 %v1880, %v1724
      %v1882 = vmax.f32 %v1881, %v1732
      %v1883 = vmax.f32 %v1882, %v1740
      %v1884 = vmax.f32 %v1883, %v1748
      %v1885 = vmax.f32 %v1884, %v1756
      %v1886 = vmax.f32 %v1885, %v1764
      %v1887 = vrot.slane %v1886, 4
      %v1888 = vmax.f32 %v1886, %v1887
      %v1889 = vrot.slane %v1888, 2
      %v1890 = vmax.f32 %v1888, %v1889
      %v1891 = vrot.slane %v1890, 1
      %v1892 = vmax.f32 %v1890, %v1891
      %v1893 = vmax.f32 %v1645, %v1653
      %v1894 = vmax.f32 %v1893, %v1661
      %v1895 = vmax.f32 %v1894, %v1669
      %v1896 = vmax.f32 %v1895, %v1677
      %v1897 = vmax.f32 %v1896, %v1685
      %v1898 = vmax.f32 %v1897, %v1693
      %v1899 = vmax.f32 %v1898, %v1701
      %v1900 = vmax.f32 %v1899, %v1709
      %v1901 = vmax.f32 %v1900, %v1717
      %v1902 = vmax.f32 %v1901, %v1725
      %v1903 = vmax.f32 %v1902, %v1733
      %v1904 = vmax.f32 %v1903, %v1741
      %v1905 = vmax.f32 %v1904, %v1749
      %v1906 = vmax.f32 %v1905, %v1757
      %v1907 = vmax.f32 %v1906, %v1765
      %v1908 = vrot.slane %v1907, 4
      %v1909 = vmax.f32 %v1907, %v1908
      %v1910 = vrot.slane %v1909, 2
      %v1911 = vmax.f32 %v1909, %v1910
      %v1912 = vrot.slane %v1911, 1
      %v1913 = vmax.f32 %v1911, %v1912
      %v1914 = vmax.f32 %v1646, %v1654
      %v1915 = vmax.f32 %v1914, %v1662
      %v1916 = vmax.f32 %v1915, %v1670
      %v1917 = vmax.f32 %v1916, %v1678
      %v1918 = vmax.f32 %v1917, %v1686
      %v1919 = vmax.f32 %v1918, %v1694
      %v1920 = vmax.f32 %v1919, %v1702
      %v1921 = vmax.f32 %v1920, %v1710
      %v1922 = vmax.f32 %v1921, %v1718
      %v1923 = vmax.f32 %v1922, %v1726
      %v1924 = vmax.f32 %v1923, %v1734
      %v1925 = vmax.f32 %v1924, %v1742
      %v1926 = vmax.f32 %v1925, %v1750
      %v1927 = vmax.f32 %v1926, %v1758
      %v1928 = vmax.f32 %v1927, %v1766
      %v1929 = vrot.slane %v1928, 4
      %v1930 = vmax.f32 %v1928, %v1929
      %v1931 = vrot.slane %v1930, 2
      %v1932 = vmax.f32 %v1930, %v1931
      %v1933 = vrot.slane %v1932, 1
      %v1934 = vmax.f32 %v1932, %v1933
      %p1935 = scmp.eq.s32.totalorder %s24, 0
      // Predicated region
      $region45: #{_lambda_.4} parent=43 // pred_check
        %p1936 = pneg %p1935
      $region46: #{_lambda_.4} parent=43 // pred_check_branch
        %1938 = sbr.rel (%p1936) target = $region48
      $region47: #{_lambda_.4} parent=43 // pred_region
        %1939 = vst [vmem:[%s318] sm:$0xff] -inf
      $region48: #{_lambda_.4} parent=43 // pred_fallthru
        _
      %v1940 = vld [vmem:[%s318] sm:$0xff]
      %v1949 = vcombine.low %v1787, %v1808
      %v1950 = vcombine.low %v1829, %v1850
      %v1951 = vcombine.low %v1871, %v1892
      %v1952 = vcombine.low %v1913, %v1934
      %v1954 = vunpack.c.l.s4 1966171168
      %v1955 = vunpack.c.0.s8 %v1954
      %v1956 = vlaneseq
      %v1957 = vshrl.u32 %v1956, 7
      %v1958 = vsub.s32 %v1955, %v1957
      %v1959 = vrot.slane %v1949, %v1958
      %v1961 = vunpack.c.l.s4 1966171168
      %v1962 = vunpack.c.0.s8 %v1961
      %v1963 = vlaneseq
      %v1964 = vshrl.u32 %v1963, 7
      %v1965 = vsub.s32 %v1962, %v1964
      %v1966 = vrot.slane %v1950, %v1965
      %v1968 = vunpack.c.l.s4 1966171168
      %v1969 = vunpack.c.0.s8 %v1968
      %v1970 = vlaneseq
      %v1971 = vshrl.u32 %v1970, 7
      %v1972 = vsub.s32 %v1969, %v1971
      %v1973 = vrot.slane %v1951, %v1972
      %v1975 = vunpack.c.l.s4 1966171168
      %v1976 = vunpack.c.0.s8 %v1975
      %v1977 = vlaneseq
      %v1978 = vshrl.u32 %v1977, 7
      %v1979 = vsub.s32 %v1976, %v1978
      %v1980 = vrot.slane %v1952, %v1979
      %v1981 = vcombine.low %v1959, %v1966
      %v1982 = vcombine.low %v1973, %v1980
      %v1984 = vunpack.c.l.s4 1966171168
      %v1985 = vunpack.c.0.s8 %v1984
      %v1986 = vlaneseq
      %v1987 = vshrl.u32 %v1986, 7
      %v1988 = vsub.s32 %v1985, %v1987
      %v1989 = vrot.slane %v1981, %v1988
      %v1991 = vunpack.c.l.s4 1966171168
      %v1992 = vunpack.c.0.s8 %v1991
      %v1993 = vlaneseq
      %v1994 = vshrl.u32 %v1993, 7
      %v1995 = vsub.s32 %v1992, %v1994
      %v1996 = vrot.slane %v1982, %v1995
      %v1997 = vcombine.low %v1989, %v1996
      %v1999 = vmax.f32 %v1940, %v1997
      %2000 = vst [vmem:[%s318] sm:$0xff] %v1999
      %p2001 = scmp.lt.s32.totalorder %s23, 1
      %s2002 = scalar_select %p2001, %s23, 1
      %p2003 = scmp.lt.s32.totalorder %s22, 1
      %s2004 = scalar_select %p2003, %s22, 1
      %s2005 = smul.addr %s2004, 8
      %s2006 = smul.addr %s2002, 16
      %s2007 = sadd.s32 %s2005, %s2006
      %s2008 = scalar_lea.vmem %s6, %s2007
      // Predicated region
      $region49: #{_lambda_.4} parent=43 // pred_check
        %p2009 = pneg %p196
      $region50: #{_lambda_.4} parent=43 // pred_check_branch
        %2011 = sbr.rel (%p2009) target = $region52
      $region51: #{_lambda_.4} parent=43 // pred_region
        _
      $region52: #{_lambda_.4} parent=43 // pred_fallthru
        _
    $region44: #{_lambda_.4} parent=5 // pred_fallthru
      _
    %p2012 = scmp.le.s32.totalorder 2, %s12
    // Predicated region
    $region53: #{_lambda_.4} parent=5 // pred_check
      %p2013 = pneg %p2012
    $region54: #{_lambda_.4} parent=5 // pred_check_branch
      %2015 = sbr.rel (%p2013) target = $region56
    $region55: #{_lambda_.4} parent=5 // pred_region
      %s2016 = ssub.s32 %s12, 2
      // Predicated region
      $region57: #{_lambda_.4} parent=55 // pred_check
        %p2017 = pneg %p202
      $region58: #{_lambda_.4} parent=55 // pred_check_branch
        %2019 = sbr.rel (%p2017) target = $region60
      $region59: #{_lambda_.4} parent=55 // pred_region
        %p2020 = scmp.lt.s32.totalorder %s26, 1
        %s2021 = scalar_select %p2020, %s26, 1
        %p2022 = scmp.lt.s32.totalorder %s25, 1
        %s2023 = scalar_select %p2022, %s25, 1
        %s2024 = smul.addr %s2023, 8
        %s2025 = smul.addr %s2021, 16
        %s2026 = sadd.s32 %s2024, %s2025
        %s2027 = scalar_lea.vmem %s6, %s2026
      $region60: #{_lambda_.4} parent=55 // pred_fallthru
        _
    $region56: #{_lambda_.4} parent=5 // pred_fallthru
      _
  $region6: #{_lambda_.4} parent=0 // loop_footer
    %s16 = sadd.s32 1, %s12
  $region7: #{_lambda_.4} parent=0 // loop_footer_branch
    %11 = sbr.rel target = $region3
  $region8: #{_lambda_.4} parent=0 // loop_exit
    _

// kernel: _lambda_.5
$region0: #{_lambda_.5}
  #allocation0 [shape = 'u32[]', space=smem, size = 0x4, offset = 0x4, fixed_abs, tag = 'smem constant byte address 0x4 - core index']
  #allocation1 [shape = 'u32[144,128]{1,0:T(1,128)}', space=vmem, size = 0x12000, scoped, tag = 'internal scratch']
  %s0 = inlined_call_operand.vmem [shape: bf16[2,256,8], index: 0, kind: input, shape index: {}]
  %s1 = inlined_call_operand.vmem [shape: bf16[2,8,64], index: 1, kind: input, shape index: {}]
  %s2 = inlined_call_operand.vmem [shape: f32[1,64], index: 2, kind: input, shape index: {}]
  %s3 = inlined_call_operand.vmem [shape: f32[2,1,512], index: 3, kind: input, shape index: {}]
  %s4 = inlined_call_operand.vmem [shape: bf16[64,512], index: 4, kind: input, shape index: {}]
  %s5 = inlined_call_operand.vmem [shape: bf16[512,256], index: 5, kind: input, shape index: {}]
  %s6 = inlined_call_operand.vmem [shape: f32[1,256], index: 6, kind: input, shape index: {}]
  %s7 = inlined_call_operand.vmem [shape: bf16[256,128], index: 7, kind: input, shape index: {}]
  %s8 = inlined_call_operand.vmem [shape: f32[1,128], index: 8, kind: input, shape index: {}]
  %s9 = inlined_call_operand.vmem [shape: bf16[8,128], index: 9, kind: input, shape index: {}]
  %s10 = inlined_call_operand.vmem [shape: f32[8,1], index: 10, kind: input, shape index: {}]
  %s11 = inlined_call_operand.vmem [shape: f32[2,8,256], index: 11, kind: output, shape index: {}]
  %s12 = sld [smem:[#allocation0]]
  $region77: #{_lambda_.5} parent=0
    _
  %s14 = ssub.s32 1, %s12
  %s15 = scalar_select 0, %s14, %s12
  loop: start=0, step=1, limit=6
  $region2: #{_lambda_.5} parent=0 // loop_pre_header
    _
  $region3: #{_lambda_.5} parent=0 // loop_header
    %s17 = sphi 0, %s21
    %p18 = scmp.ge.s32.totalorder %s17, 6
    %s24 = sphi 0, %s36
    %s25 = sphi 0, %s32
    %s26 = sphi 0, %s24
    %s27 = sphi 0, %s25
    %s28 = sphi 0, %s26
    %s29 = sphi 0, %s27
    %s41 = sphi 0, %s43
    %s44 = sphi 0, %s41
    %s45 = sphi 0, %s44
    %s61 = sphi 0, %s45
    %s67 = sphi 0, %s69
    %s70 = sphi 0, %s67
    %s71 = sphi 0, %s70
    %s87 = sphi 0, %s71
    %s91 = sphi 0, %s91
    %s93 = sphi 0, %s91
    %s94 = sphi 0, %s93
    %s108 = sphi 0, %s94
    %s114 = sphi 0, %s116
    %s117 = sphi 0, %s114
    %s118 = sphi 0, %s117
    %s134 = sphi 0, %s118
    %s138 = sphi 0, %s138
    %s140 = sphi 0, %s138
    %s141 = sphi 0, %s140
    %s155 = sphi 0, %s141
    %s159 = sphi 0, %s159
    %s161 = sphi 0, %s159
    %s162 = sphi 0, %s161
    %s176 = sphi 0, %s162
    %s180 = sphi 0, %s180
    %s182 = sphi 0, %s180
    %s183 = sphi 0, %s182
    %s197 = sphi 0, %s183
    %s201 = sphi 0, %s201
    %s203 = sphi 0, %s201
    %s204 = sphi 0, %s203
    %s218 = sphi 0, %s204
    %s222 = sphi 0, %s222
    %s224 = sphi 0, %s222
    %s225 = sphi 0, %s224
    %s239 = sphi 0, %s225
    %s243 = sphi 0, %s243
    %s245 = sphi 0, %s243
    %s246 = sphi 0, %s245
    %s260 = sphi 0, %s246
    %s264 = sphi 0, %s264
    %s266 = sphi 0, %s264
    %s267 = sphi 0, %s266
    %s281 = sphi 0, %s267
    %s289 = sphi 0, %s291
    %s292 = sphi 0, %s289
    %s293 = sphi 0, %s292
    %s309 = sphi 0, %s293
  $region4: #{_lambda_.5} parent=0 // loop_header_branch
    %20 = sbr.rel (%p18) target = $region8
  $region5: #{_lambda_.5} parent=0 // loop_body
    %s22 = ssub.s32 %s17, 1
    %s23 = ssub.s32 %s17, 2
    %s30 = sadd.s32 1, %s25
    %p31 = scmp.ge.s32.totalorder %s30, 2
    %s32 = scalar_select %p31, 0, %s30
    %s33 = sadd.s32 1, %s24
    %s34 = scalar_select %p31, %s33, %s24
    %p35 = scmp.ge.s32.totalorder %s34, 2
    %s36 = scalar_select %p35, 0, %s34
    %s37 = ssub.s32 %s24, %s36
    %s38 = ssub.s32 %s25, %s32
    %s39 = sor.u32 %s37, %s38
    %p40 = scmp.eq.s32.totalorder %s39, 0
    %s42 = sadd.s32 %s41, 1
    %s43 = scalar_select %p40, %s41, %s42
    %p46 = pneg %p40
    %p47 = scmp.eq.s32.totalorder %s17, 3
    %p48 = por %p46, %p47
    %p49 = scmp.ne.s32.totalorder %s41, %s44
    %p50 = scmp.eq.s32.totalorder %s17, 0
    %p51 = por %p49, %p50
    %p52 = scmp.ne.s32.totalorder %s41, %s44
    %p53 = scmp.eq.s32.totalorder %s22, 3
    %p54 = por %p52, %p53
    %p55 = scmp.ne.s32.totalorder %s44, %s45
    %p56 = scmp.eq.s32.totalorder %s22, 0
    %p57 = por %p55, %p56
    %p58 = scmp.ne.s32.totalorder %s44, %s45
    %p59 = scmp.eq.s32.totalorder %s23, 3
    %p60 = por %p58, %p59
    %p62 = scmp.ne.s32.totalorder %s45, %s61
    %p63 = scmp.eq.s32.totalorder %s23, 0
    %p64 = por %p62, %p63
    %s65 = ssub.s32 %s24, %s36
    %p66 = scmp.eq.s32.totalorder %s65, 0
    %s68 = sadd.s32 %s67, 1
    %s69 = scalar_select %p66, %s67, %s68
    %p72 = pneg %p66
    %p73 = scmp.eq.s32.totalorder %s17, 3
    %p74 = por %p72, %p73
    %p75 = scmp.ne.s32.totalorder %s67, %s70
    %p76 = scmp.eq.s32.totalorder %s17, 0
    %p77 = por %p75, %p76
    %p78 = scmp.ne.s32.totalorder %s67, %s70
    %p79 = scmp.eq.s32.totalorder %s22, 3
    %p80 = por %p78, %p79
    %p81 = scmp.ne.s32.totalorder %s70, %s71
    %p82 = scmp.eq.s32.totalorder %s22, 0
    %p83 = por %p81, %p82
    %p84 = scmp.ne.s32.totalorder %s70, %s71
    %p85 = scmp.eq.s32.totalorder %s23, 3
    %p86 = por %p84, %p85
    %p88 = scmp.ne.s32.totalorder %s71, %s87
    %p89 = scmp.eq.s32.totalorder %s23, 0
    %p90 = por %p88, %p89
    %s92 = sadd.s32 %s91, 1
    %p95 = scmp.eq.s32.totalorder %s17, 3
    %p96 = scmp.ne.s32.totalorder %s91, %s93
    %p97 = scmp.eq.s32.totalorder %s17, 0
    %p98 = por %p96, %p97
    %p99 = scmp.ne.s32.totalorder %s91, %s93
    %p100 = scmp.eq.s32.totalorder %s22, 3
    %p101 = por %p99, %p100
    %p102 = scmp.ne.s32.totalorder %s93, %s94
    %p103 = scmp.eq.s32.totalorder %s22, 0
    %p104 = por %p102, %p103
    %p105 = scmp.ne.s32.totalorder %s93, %s94
    %p106 = scmp.eq.s32.totalorder %s23, 3
    %p107 = por %p105, %p106
    %p109 = scmp.ne.s32.totalorder %s94, %s108
    %p110 = scmp.eq.s32.totalorder %s23, 0
    %p111 = por %p109, %p110
    %s112 = ssub.s32 %s24, %s36
    %p113 = scmp.eq.s32.totalorder %s112, 0
    %s115 = sadd.s32 %s114, 1
    %s116 = scalar_select %p113, %s114, %s115
    %p119 = pneg %p113
    %p120 = scmp.eq.s32.totalorder %s17, 3
    %p121 = por %p119, %p120
    %p122 = scmp.ne.s32.totalorder %s114, %s117
    %p123 = scmp.eq.s32.totalorder %s17, 0
    %p124 = por %p122, %p123
    %p125 = scmp.ne.s32.totalorder %s114, %s117
    %p126 = scmp.eq.s32.totalorder %s22, 3
    %p127 = por %p125, %p126
    %p128 = scmp.ne.s32.totalorder %s117, %s118
    %p129 = scmp.eq.s32.totalorder %s22, 0
    %p130 = por %p128, %p129
    %p131 = scmp.ne.s32.totalorder %s117, %s118
    %p132 = scmp.eq.s32.totalorder %s23, 3
    %p133 = por %p131, %p132
    %p135 = scmp.ne.s32.totalorder %s118, %s134
    %p136 = scmp.eq.s32.totalorder %s23, 0
    %p137 = por %p135, %p136
    %s139 = sadd.s32 %s138, 1
    %p142 = scmp.eq.s32.totalorder %s17, 3
    %p143 = scmp.ne.s32.totalorder %s138, %s140
    %p144 = scmp.eq.s32.totalorder %s17, 0
    %p145 = por %p143, %p144
    %p146 = scmp.ne.s32.totalorder %s138, %s140
    %p147 = scmp.eq.s32.totalorder %s22, 3
    %p148 = por %p146, %p147
    %p149 = scmp.ne.s32.totalorder %s140, %s141
    %p150 = scmp.eq.s32.totalorder %s22, 0
    %p151 = por %p149, %p150
    %p152 = scmp.ne.s32.totalorder %s140, %s141
    %p153 = scmp.eq.s32.totalorder %s23, 3
    %p154 = por %p152, %p153
    %p156 = scmp.ne.s32.totalorder %s141, %s155
    %p157 = scmp.eq.s32.totalorder %s23, 0
    %p158 = por %p156, %p157
    %s160 = sadd.s32 %s159, 1
    %p163 = scmp.eq.s32.totalorder %s17, 3
    %p164 = scmp.ne.s32.totalorder %s159, %s161
    %p165 = scmp.eq.s32.totalorder %s17, 0
    %p166 = por %p164, %p165
    %p167 = scmp.ne.s32.totalorder %s159, %s161
    %p168 = scmp.eq.s32.totalorder %s22, 3
    %p169 = por %p167, %p168
    %p170 = scmp.ne.s32.totalorder %s161, %s162
    %p171 = scmp.eq.s32.totalorder %s22, 0
    %p172 = por %p170, %p171
    %p173 = scmp.ne.s32.totalorder %s161, %s162
    %p174 = scmp.eq.s32.totalorder %s23, 3
    %p175 = por %p173, %p174
    %p177 = scmp.ne.s32.totalorder %s162, %s176
    %p178 = scmp.eq.s32.totalorder %s23, 0
    %p179 = por %p177, %p178
    %s181 = sadd.s32 %s180, 1
    %p184 = scmp.eq.s32.totalorder %s17, 3
    %p185 = scmp.ne.s32.totalorder %s180, %s182
    %p186 = scmp.eq.s32.totalorder %s17, 0
    %p187 = por %p185, %p186
    %p188 = scmp.ne.s32.totalorder %s180, %s182
    %p189 = scmp.eq.s32.totalorder %s22, 3
    %p190 = por %p188, %p189
    %p191 = scmp.ne.s32.totalorder %s182, %s183
    %p192 = scmp.eq.s32.totalorder %s22, 0
    %p193 = por %p191, %p192
    %p194 = scmp.ne.s32.totalorder %s182, %s183
    %p195 = scmp.eq.s32.totalorder %s23, 3
    %p196 = por %p194, %p195
    %p198 = scmp.ne.s32.totalorder %s183, %s197
    %p199 = scmp.eq.s32.totalorder %s23, 0
    %p200 = por %p198, %p199
    %s202 = sadd.s32 %s201, 1
    %p205 = scmp.eq.s32.totalorder %s17, 3
    %p206 = scmp.ne.s32.totalorder %s201, %s203
    %p207 = scmp.eq.s32.totalorder %s17, 0
    %p208 = por %p206, %p207
    %p209 = scmp.ne.s32.totalorder %s201, %s203
    %p210 = scmp.eq.s32.totalorder %s22, 3
    %p211 = por %p209, %p210
    %p212 = scmp.ne.s32.totalorder %s203, %s204
    %p213 = scmp.eq.s32.totalorder %s22, 0
    %p214 = por %p212, %p213
    %p215 = scmp.ne.s32.totalorder %s203, %s204
    %p216 = scmp.eq.s32.totalorder %s23, 3
    %p217 = por %p215, %p216
    %p219 = scmp.ne.s32.totalorder %s204, %s218
    %p220 = scmp.eq.s32.totalorder %s23, 0
    %p221 = por %p219, %p220
    %s223 = sadd.s32 %s222, 1
    %p226 = scmp.eq.s32.totalorder %s17, 3
    %p227 = scmp.ne.s32.totalorder %s222, %s224
    %p228 = scmp.eq.s32.totalorder %s17, 0
    %p229 = por %p227, %p228
    %p230 = scmp.ne.s32.totalorder %s222, %s224
    %p231 = scmp.eq.s32.totalorder %s22, 3
    %p232 = por %p230, %p231
    %p233 = scmp.ne.s32.totalorder %s224, %s225
    %p234 = scmp.eq.s32.totalorder %s22, 0
    %p235 = por %p233, %p234
    %p236 = scmp.ne.s32.totalorder %s224, %s225
    %p237 = scmp.eq.s32.totalorder %s23, 3
    %p238 = por %p236, %p237
    %p240 = scmp.ne.s32.totalorder %s225, %s239
    %p241 = scmp.eq.s32.totalorder %s23, 0
    %p242 = por %p240, %p241
    %s244 = sadd.s32 %s243, 1
    %p247 = scmp.eq.s32.totalorder %s17, 3
    %p248 = scmp.ne.s32.totalorder %s243, %s245
    %p249 = scmp.eq.s32.totalorder %s17, 0
    %p250 = por %p248, %p249
    %p251 = scmp.ne.s32.totalorder %s243, %s245
    %p252 = scmp.eq.s32.totalorder %s22, 3
    %p253 = por %p251, %p252
    %p254 = scmp.ne.s32.totalorder %s245, %s246
    %p255 = scmp.eq.s32.totalorder %s22, 0
    %p256 = por %p254, %p255
    %p257 = scmp.ne.s32.totalorder %s245, %s246
    %p258 = scmp.eq.s32.totalorder %s23, 3
    %p259 = por %p257, %p258
    %p261 = scmp.ne.s32.totalorder %s246, %s260
    %p262 = scmp.eq.s32.totalorder %s23, 0
    %p263 = por %p261, %p262
    %s265 = sadd.s32 %s264, 1
    %p268 = scmp.eq.s32.totalorder %s17, 3
    %p269 = scmp.ne.s32.totalorder %s264, %s266
    %p270 = scmp.eq.s32.totalorder %s17, 0
    %p271 = por %p269, %p270
    %p272 = scmp.ne.s32.totalorder %s264, %s266
    %p273 = scmp.eq.s32.totalorder %s22, 3
    %p274 = por %p272, %p273
    %p275 = scmp.ne.s32.totalorder %s266, %s267
    %p276 = scmp.eq.s32.totalorder %s22, 0
    %p277 = por %p275, %p276
    %p278 = scmp.ne.s32.totalorder %s266, %s267
    %p279 = scmp.eq.s32.totalorder %s23, 3
    %p280 = por %p278, %p279
    %p282 = scmp.ne.s32.totalorder %s267, %s281
    %p283 = scmp.eq.s32.totalorder %s23, 0
    %p284 = por %p282, %p283
    %s285 = ssub.s32 %s24, %s36
    %s286 = ssub.s32 %s25, %s32
    %s287 = sor.u32 %s285, %s286
    %p288 = scmp.eq.s32.totalorder %s287, 0
    %s290 = sadd.s32 %s289, 1
    %s291 = scalar_select %p288, %s289, %s290
    %p294 = pneg %p288
    %p295 = scmp.eq.s32.totalorder %s17, 3
    %p296 = por %p294, %p295
    %p297 = scmp.ne.s32.totalorder %s289, %s292
    %p298 = scmp.eq.s32.totalorder %s17, 0
    %p299 = por %p297, %p298
    %p300 = scmp.ne.s32.totalorder %s289, %s292
    %p301 = scmp.eq.s32.totalorder %s22, 3
    %p302 = por %p300, %p301
    %p303 = scmp.ne.s32.totalorder %s292, %s293
    %p304 = scmp.eq.s32.totalorder %s22, 0
    %p305 = por %p303, %p304
    %p306 = scmp.ne.s32.totalorder %s292, %s293
    %p307 = scmp.eq.s32.totalorder %s23, 3
    %p308 = por %p306, %p307
    %p310 = scmp.ne.s32.totalorder %s293, %s309
    %p311 = scmp.eq.s32.totalorder %s23, 0
    %p312 = por %p310, %p311
    %p313 = scmp.le.s32.totalorder 1, %s17
    %p314 = scmp.lt.s32.totalorder %s17, 5
    %p315 = pnand %p313, %p314
    %p316 = pneg %p315
    // Predicated region
    $region9: #{_lambda_.5} parent=5 // pred_check
      _
    $region10: #{_lambda_.5} parent=5 // pred_check_branch
      %318 = sbr.rel (%p315) target = $region12
    $region11: #{_lambda_.5} parent=5 // pred_region
      %s319 = ssub.s32 %s17, 1
      // Predicated region
      $region13: #{_lambda_.5} parent=11 // pred_check
        %p320 = pneg %p104
      $region14: #{_lambda_.5} parent=11 // pred_check_branch
        %322 = sbr.rel (%p320) target = $region16
      $region15: #{_lambda_.5} parent=11 // pred_region
        _
      $region16: #{_lambda_.5} parent=11 // pred_fallthru
        _
      // Predicated region
      $region17: #{_lambda_.5} parent=11 // pred_check
        %p323 = pneg %p151
      $region18: #{_lambda_.5} parent=11 // pred_check_branch
        %325 = sbr.rel (%p323) target = $region20
      $region19: #{_lambda_.5} parent=11 // pred_region
        _
      $region20: #{_lambda_.5} parent=11 // pred_fallthru
        _
      // Predicated region
      $region21: #{_lambda_.5} parent=11 // pred_check
        %p326 = pneg %p172
      $region22: #{_lambda_.5} parent=11 // pred_check_branch
        %328 = sbr.rel (%p326) target = $region24
      $region23: #{_lambda_.5} parent=11 // pred_region
        _
      $region24: #{_lambda_.5} parent=11 // pred_fallthru
        _
      // Predicated region
      $region25: #{_lambda_.5} parent=11 // pred_check
        %p329 = pneg %p193
      $region26: #{_lambda_.5} parent=11 // pred_check_branch
        %331 = sbr.rel (%p329) target = $region28
      $region27: #{_lambda_.5} parent=11 // pred_region
        _
      $region28: #{_lambda_.5} parent=11 // pred_fallthru
        _
      // Predicated region
      $region29: #{_lambda_.5} parent=11 // pred_check
        %p332 = pneg %p214
      $region30: #{_lambda_.5} parent=11 // pred_check_branch
        %334 = sbr.rel (%p332) target = $region32
      $region31: #{_lambda_.5} parent=11 // pred_region
        _
      $region32: #{_lambda_.5} parent=11 // pred_fallthru
        _
      // Predicated region
      $region33: #{_lambda_.5} parent=11 // pred_check
        %p335 = pneg %p235
      $region34: #{_lambda_.5} parent=11 // pred_check_branch
        %337 = sbr.rel (%p335) target = $region36
      $region35: #{_lambda_.5} parent=11 // pred_region
        _
      $region36: #{_lambda_.5} parent=11 // pred_fallthru
        _
      // Predicated region
      $region37: #{_lambda_.5} parent=11 // pred_check
        %p338 = pneg %p256
      $region38: #{_lambda_.5} parent=11 // pred_check_branch
        %340 = sbr.rel (%p338) target = $region40
      $region39: #{_lambda_.5} parent=11 // pred_region
        _
      $region40: #{_lambda_.5} parent=11 // pred_fallthru
        _
      // Predicated region
      $region41: #{_lambda_.5} parent=11 // pred_check
        %p341 = pneg %p277
      $region42: #{_lambda_.5} parent=11 // pred_check_branch
        %343 = sbr.rel (%p341) target = $region44
      $region43: #{_lambda_.5} parent=11 // pred_region
        _
      $region44: #{_lambda_.5} parent=11 // pred_fallthru
        _
    $region12: #{_lambda_.5} parent=5 // pred_fallthru
      _
    %p344 = scmp.lt.s32.totalorder %s17, 4
    // Predicated region
    $region45: #{_lambda_.5} parent=5 // pred_check
      %p345 = pneg %p344
    $region46: #{_lambda_.5} parent=5 // pred_check_branch
      %347 = sbr.rel (%p345) target = $region48
    $region47: #{_lambda_.5} parent=5 // pred_region
      // Predicated region
      $region49: #{_lambda_.5} parent=47 // pred_check
        %p348 = pneg %p51
      $region50: #{_lambda_.5} parent=47 // pred_check_branch
        %350 = sbr.rel (%p348) target = $region52
      $region51: #{_lambda_.5} parent=47 // pred_region
        %s351 = smul.u32 16, %s25
        %p352 = scmp.lt.s32.totalorder %s24, 1
        %s353 = scalar_select %p352, %s24, 1
        %p354 = scmp.lt.s32.totalorder %s351, 31
        %s355 = scalar_select %p354, %s351, 31
        %s356 = smul.addr %s353, 32
        %s357 = sadd.s32 %s355, %s356
        %s358 = smul.addr %s357, 4
        %s359 = scalar_lea.vmem %s0, %s358
        %s360 = smul.u32 16, %s25
      $region52: #{_lambda_.5} parent=47 // pred_fallthru
        _
      // Predicated region
      $region53: #{_lambda_.5} parent=47 // pred_check
        %p361 = pneg %p77
      $region54: #{_lambda_.5} parent=47 // pred_check_branch
        %363 = sbr.rel (%p361) target = $region56
      $region55: #{_lambda_.5} parent=47 // pred_region
        %p364 = scmp.lt.s32.totalorder %s24, 1
        %s365 = scalar_select %p364, %s24, 1
        %s366 = smul.addr %s365, 4
        %s367 = scalar_lea.vmem %s1, %s366
      $region56: #{_lambda_.5} parent=47 // pred_fallthru
        _
      // Predicated region
      $region57: #{_lambda_.5} parent=47 // pred_check
        %p368 = pneg %p124
      $region58: #{_lambda_.5} parent=47 // pred_check_branch
        %370 = sbr.rel (%p368) target = $region60
      $region59: #{_lambda_.5} parent=47 // pred_region
        %p371 = scmp.lt.s32.totalorder %s24, 1
        %s372 = scalar_select %p371, %s24, 1
        %s373 = smul.addr %s372, 4
        %s374 = scalar_lea.vmem %s3, %s373
      $region60: #{_lambda_.5} parent=47 // pred_fallthru
        _
    $region48: #{_lambda_.5} parent=5 // pred_fallthru
      _
    %p375 = scmp.le.s32.totalorder 1, %s17
    %p376 = scmp.lt.s32.totalorder %s17, 5
    %p377 = pnand %p375, %p376
    %p378 = pneg %p377
    // Predicated region
    $region61: #{_lambda_.5} parent=5 // pred_check
      _
    $region62: #{_lambda_.5} parent=5 // pred_check_branch
      %380 = sbr.rel (%p377) target = $region64
    $region63: #{_lambda_.5} parent=5 // pred_region
      %s381 = ssub.s32 %s17, 1
      %s382 = smul.u32 16, %s27
      %p383 = scmp.lt.s32.totalorder %s26, 1
      %s384 = scalar_select %p383, %s26, 1
      %p385 = scmp.lt.s32.totalorder %s382, 31
      %s386 = scalar_select %p385, %s382, 31
      %s387 = smul.addr %s384, 32
      %s388 = sadd.s32 %s386, %s387
      %s389 = smul.addr %s388, 4
      %s390 = scalar_lea.vmem %s0, %s389
      %p391 = pneg %p57
      %p392 = pneg %p54
      %p393 = scmp.lt.s32.totalorder %s26, 1
      %s394 = scalar_select %p393, %s26, 1
      %s395 = smul.addr %s394, 4
      %s396 = scalar_lea.vmem %s1, %s395
      %p397 = pneg %p83
      %p398 = pneg %p80
      %p399 = pneg %p104
      %p400 = pneg %p101
      %p401 = scmp.lt.s32.totalorder %s26, 1
      %s402 = scalar_select %p401, %s26, 1
      %s403 = smul.addr %s402, 4
      %s404 = scalar_lea.vmem %s3, %s403
      %p405 = pneg %p130
      %p406 = pneg %p127
      %p407 = pneg %p151
      %p408 = pneg %p148
      %p409 = pneg %p172
      %p410 = pneg %p169
      %p411 = pneg %p193
      %p412 = pneg %p190
      %p413 = pneg %p214
      %p414 = pneg %p211
      %p415 = pneg %p235
      %p416 = pneg %p232
      %p417 = pneg %p256
      %p418 = pneg %p253
      %p419 = pneg %p277
      %p420 = pneg %p274
      %p421 = pneg %p305
      %p422 = pneg %p302
      %p423 = scmp.lt.s32.totalorder %s26, 1
      %s424 = scalar_select %p423, %s26, 1
      %p425 = scmp.lt.s32.totalorder %s27, 1
      %s426 = scalar_select %p425, %s27, 1
      %s427 = smul.addr %s424, 2
      %s428 = sadd.s32 %s426, %s427
      %s429 = smul.addr %s428, 8
      %s430 = scalar_lea.vmem %s11, %s429
      %s431 = smul.u32 16, %s27
      %p432 = scmp.lt.s32.totalorder %s26, 1
      %s433 = scalar_select %p432, %s26, 1
      %p434 = scmp.lt.s32.totalorder %s431, 31
      %s435 = scalar_select %p434, %s431, 31
      %s436 = smul.addr %s433, 32
      %s437 = sadd.s32 %s435, %s436
      %s438 = smul.addr %s437, 4
      %s439 = scalar_lea.vmem %s0, %s438
      %s440 = smul.u32 16, %s27
      %p441 = scmp.lt.s32.totalorder %s26, 1
      %s442 = scalar_select %p441, %s26, 1
      %s443 = smul.addr %s442, 4
      %s444 = scalar_lea.vmem %s1, %s443
      %p445 = scmp.lt.s32.totalorder %s26, 1
      %s446 = scalar_select %p445, %s26, 1
      %s447 = smul.addr %s446, 4
      %s448 = scalar_lea.vmem %s3, %s447
      %p449 = scmp.lt.s32.totalorder %s26, 1
      %s450 = scalar_select %p449, %s26, 1
      %p451 = scmp.lt.s32.totalorder %s27, 1
      %s452 = scalar_select %p451, %s27, 1
      %s453 = smul.addr %s450, 2
      %s454 = sadd.s32 %s452, %s453
      %s455 = smul.addr %s454, 8
      %s456 = scalar_lea.vmem %s11, %s455
      %v458 = vld [vmem:[%s439] sm:$0xf]
      %v459 = vld [vmem:[%s439 + $0x4] sm:$0xf]
      %v460 = vld [vmem:[%s439 + $0x8] sm:$0xf]
      %v461 = vld [vmem:[%s439 + $0xc] sm:$0xf]
      %v462 = vld [vmem:[%s439 + $0x10] sm:$0xf]
      %v463 = vld [vmem:[%s439 + $0x14] sm:$0xf]
      %v464 = vld [vmem:[%s439 + $0x18] sm:$0xf]
      %v465 = vld [vmem:[%s439 + $0x1c] sm:$0xf]
      %v466 = vld [vmem:[%s439 + $0x20] sm:$0xf]
      %v467 = vld [vmem:[%s439 + $0x24] sm:$0xf]
      %v468 = vld [vmem:[%s439 + $0x28] sm:$0xf]
      %v469 = vld [vmem:[%s439 + $0x2c] sm:$0xf]
      %v470 = vld [vmem:[%s439 + $0x30] sm:$0xf]
      %v471 = vld [vmem:[%s439 + $0x34] sm:$0xf]
      %v472 = vld [vmem:[%s439 + $0x38] sm:$0xf]
      %v473 = vld [vmem:[%s439 + $0x3c] sm:$0xf]
      %v474 = vld [vmem:[%s444] sm:$0xf]
      %v475 = vld [vmem:[%s2] sm:$0x1]
      %v477 = vlaneseq
      %v478 = vshrl.u32 %v477, 7
      %v479 = vsub.s32 0, %v478
      %v480 = vrot.slane %v475, %v479
      %v498 = vunpack.c.l.b16 %v458
      %v499 = vunpack.c.l.b16 %v459
      %v500 = vunpack.c.l.b16 %v460
      %v501 = vunpack.c.l.b16 %v461
      %v502 = vunpack.c.l.b16 %v462
      %v503 = vunpack.c.l.b16 %v463
      %v504 = vunpack.c.l.b16 %v464
      %v505 = vunpack.c.l.b16 %v465
      %v506 = vunpack.c.l.b16 %v466
      %v507 = vunpack.c.l.b16 %v467
      %v508 = vunpack.c.l.b16 %v468
      %v509 = vunpack.c.l.b16 %v469
      %v510 = vunpack.c.l.b16 %v470
      %v511 = vunpack.c.l.b16 %v471
      %v512 = vunpack.c.l.b16 %v472
      %v513 = vunpack.c.l.b16 %v473
      %v514 = vpack.c.b16 %v499, %v498
      %v515 = vpack.c.b16 %v501, %v500
      %v516 = vpack.c.b16 %v503, %v502
      %v517 = vpack.c.b16 %v505, %v504
      %v518 = vpack.c.b16 %v507, %v506
      %v519 = vpack.c.b16 %v509, %v508
      %v520 = vpack.c.b16 %v511, %v510
      %v521 = vpack.c.b16 %v513, %v512
      %vm522 = vcmask 64512
      %v524 = vsel %vm522, %v514, 0
      %v527 = vsel %vm522, %v515, 0
      %v530 = vsel %vm522, %v516, 0
      %v533 = vsel %vm522, %v517, 0
      %v536 = vsel %vm522, %v518, 0
      %v539 = vsel %vm522, %v519, 0
      %v542 = vsel %vm522, %v520, 0
      %v545 = vsel %vm522, %v521, 0
      %vm547 = vcmask 1043456
      %v549 = vsel %vm547, %v474, 0
      %551 = vmatprep.subr.bf16.mxu0 0
      %552 = vmatpush1.bf16.msra.mxu0 %v549
      %553 = vmatprep.subr.bf16.mxu0 0
      %554 = vmatpush1.bf16.msra.mxu0 0
      %555 = vmatprep.subr.bf16.mxu0 0
      %556 = vmatpush1.bf16.msra.mxu0 0
      %557 = vmatprep.subr.bf16.mxu0 0
      %558 = vmatpush1.bf16.msra.mxu0 0
      %559 = vmatprep.subr.bf16.mxu0 0
      %560 = vmatpush1.bf16.msra.mxu0 0
      %561 = vmatprep.subr.bf16.mxu0 0
      %562 = vmatpush1.bf16.msra.mxu0 0
      %563 = vmatprep.subr.bf16.mxu0 0
      %564 = vmatpush1.bf16.msra.mxu0 0
      %565 = vmatprep.subr.bf16.mxu0 0
      %566 = vmatpush1.bf16.msra.mxu0 0
      %567 = vmatprep.subr.bf16.mxu0 0
      %568 = vmatpush1.bf16.msra.mxu0 0
      %569 = vmatprep.subr.bf16.mxu0 0
      %570 = vmatpush1.bf16.msra.mxu0 0
      %571 = vmatprep.subr.bf16.mxu0 0
      %572 = vmatpush1.bf16.msra.mxu0 0
      %573 = vmatprep.subr.bf16.mxu0 0
      %574 = vmatpush1.bf16.msra.mxu0 0
      %575 = vmatprep.subr.bf16.mxu0 0
      %576 = vmatpush1.bf16.msra.mxu0 0
      %577 = vmatprep.subr.bf16.mxu0 0
      %578 = vmatpush1.bf16.msra.mxu0 0
      %579 = vmatprep.subr.bf16.mxu0 0
      %580 = vmatpush1.bf16.msra.mxu0 0
      %581 = vmatprep.subr.bf16.mxu0 0
      %582 = vmatpush1.bf16.msra.mxu0 0
      %583 = vmatprep.mubr.bf16.mxu0 0
      %584 = vmatmul.mubr.bf16.gmra.mrb[0].mxu0 %v524
      %v585 = vpop.f32.mrb[0].mxu0
      %v586 = vadd.f32 %v480, %v585
      %v587 = vpop.f32.mrb[0].mxu0
      %v588 = vpop.f32.mrb[0].mxu0
      %v589 = vadd.f32 %v480, %v588
      %v590 = vpop.f32.mrb[0].mxu0
      %591 = vmatprep.mubr.bf16.mxu0 0
      %592 = vmatmul.mubr.bf16.gmra.mrb[0].mxu0 %v527
      %v593 = vpop.f32.mrb[0].mxu0
      %v594 = vadd.f32 %v480, %v593
      %v595 = vpop.f32.mrb[0].mxu0
      %v596 = vpop.f32.mrb[0].mxu0
      %v597 = vadd.f32 %v480, %v596
      %v598 = vpop.f32.mrb[0].mxu0
      %599 = vmatprep.mubr.bf16.mxu0 0
      %600 = vmatmul.mubr.bf16.gmra.mrb[0].mxu0 %v530
      %v601 = vpop.f32.mrb[0].mxu0
      %v602 = vadd.f32 %v480, %v601
      %v603 = vpop.f32.mrb[0].mxu0
      %v604 = vpop.f32.mrb[0].mxu0
      %v605 = vadd.f32 %v480, %v604
      %v606 = vpop.f32.mrb[0].mxu0
      %607 = vmatprep.mubr.bf16.mxu0 0
      %608 = vmatmul.mubr.bf16.gmra.mrb[0].mxu0 %v533
      %v609 = vpop.f32.mrb[0].mxu0
      %v610 = vadd.f32 %v480, %v609
      %v611 = vpop.f32.mrb[0].mxu0
      %v612 = vpop.f32.mrb[0].mxu0
      %v613 = vadd.f32 %v480, %v612
      %v614 = vpop.f32.mrb[0].mxu0
      %615 = vmatprep.mubr.bf16.mxu0 0
      %616 = vmatmul.mubr.bf16.gmra.mrb[0].mxu0 %v536
      %v617 = vpop.f32.mrb[0].mxu0
      %v618 = vadd.f32 %v480, %v617
      %v619 = vpop.f32.mrb[0].mxu0
      %v620 = vpop.f32.mrb[0].mxu0
      %v621 = vadd.f32 %v480, %v620
      %v622 = vpop.f32.mrb[0].mxu0
      %623 = vmatprep.mubr.bf16.mxu0 0
      %624 = vmatmul.mubr.bf16.gmra.mrb[0].mxu0 %v539
      %v625 = vpop.f32.mrb[0].mxu0
      %v626 = vadd.f32 %v480, %v625
      %v627 = vpop.f32.mrb[0].mxu0
      %v628 = vpop.f32.mrb[0].mxu0
      %v629 = vadd.f32 %v480, %v628
      %v630 = vpop.f32.mrb[0].mxu0
      %631 = vmatprep.mubr.bf16.mxu0 0
      %632 = vmatmul.mubr.bf16.gmra.mrb[0].mxu0 %v542
      %v633 = vpop.f32.mrb[0].mxu0
      %v634 = vadd.f32 %v480, %v633
      %v635 = vpop.f32.mrb[0].mxu0
      %v636 = vpop.f32.mrb[0].mxu0
      %v637 = vadd.f32 %v480, %v636
      %v638 = vpop.f32.mrb[0].mxu0
      %639 = vmatprep.mubr.bf16.mxu0 0
      %640 = vmatmul.mubr.bf16.gmra.mrb[0].mxu0 %v545
      %v641 = vpop.f32.mrb[0].mxu0
      %v642 = vadd.f32 %v480, %v641
      %v643 = vpop.f32.mrb[0].mxu0
      %v644 = vpop.f32.mrb[0].mxu0
      %v645 = vadd.f32 %v480, %v644
      %v646 = vpop.f32.mrb[0].mxu0
      %647 = vdwg.mxu0
      %v648 = vmax.f32 %v586, 0.0
      %v649 = vmax.f32 %v589, 0.0
      %v650 = vmax.f32 %v594, 0.0
      %v651 = vmax.f32 %v597, 0.0
      %v652 = vmax.f32 %v602, 0.0
      %v653 = vmax.f32 %v605, 0.0
      %v654 = vmax.f32 %v610, 0.0
      %v655 = vmax.f32 %v613, 0.0
      %v656 = vmax.f32 %v618, 0.0
      %v657 = vmax.f32 %v621, 0.0
      %v658 = vmax.f32 %v626, 0.0
      %v659 = vmax.f32 %v629, 0.0
      %v660 = vmax.f32 %v634, 0.0
      %v661 = vmax.f32 %v637, 0.0
      %v662 = vmax.f32 %v642, 0.0
      %v663 = vmax.f32 %v645, 0.0
      %v664 = vpack.c.bf16 %v649, %v648
      %v665 = vpack.c.bf16 %v651, %v650
      %v666 = vpack.c.bf16 %v653, %v652
      %v667 = vpack.c.bf16 %v655, %v654
      %v668 = vpack.c.bf16 %v657, %v656
      %v669 = vpack.c.bf16 %v659, %v658
      %v670 = vpack.c.bf16 %v661, %v660
      %v671 = vpack.c.bf16 %v663, %v662
      %v672 = vld [vmem:[%s4] sm:$0xff]
      %v673 = vld [vmem:[%s4 + $0x8] sm:$0xff]
      %v674 = vld [vmem:[%s4 + $0x10] sm:$0xff]
      %v675 = vld [vmem:[%s4 + $0x18] sm:$0xff]
      %v676 = vld [vmem:[%s4 + $0x20] sm:$0xff]
      %v677 = vld [vmem:[%s4 + $0x28] sm:$0xff]
      %v678 = vld [vmem:[%s4 + $0x30] sm:$0xff]
      %v679 = vld [vmem:[%s4 + $0x38] sm:$0xff]
      %v680 = vld [vmem:[%s4 + $0x40] sm:$0xff]
      %v681 = vld [vmem:[%s4 + $0x48] sm:$0xff]
      %v682 = vld [vmem:[%s4 + $0x50] sm:$0xff]
      %v683 = vld [vmem:[%s4 + $0x58] sm:$0xff]
      %v684 = vld [vmem:[%s4 + $0x60] sm:$0xff]
      %v685 = vld [vmem:[%s4 + $0x68] sm:$0xff]
      %v686 = vld [vmem:[%s4 + $0x70] sm:$0xff]
      %v687 = vld [vmem:[%s4 + $0x78] sm:$0xff]
      %v688 = vld [vmem:[%s448] sm:$0xf]
      %v690 = vlaneseq
      %v691 = vshrl.u32 %v690, 7
      %v692 = vsub.s32 0, %v691
      %v693 = vrot.slane %v688, %v692
      %v694 = vlaneseq
      %v695 = vshrl.u32 %v694, 7
      %v696 = vsub.s32 1, %v695
      %v697 = vrot.slane %v688, %v696
      %v698 = vlaneseq
      %v699 = vshrl.u32 %v698, 7
      %v700 = vsub.s32 2, %v699
      %v701 = vrot.slane %v688, %v700
      %v702 = vlaneseq
      %v703 = vshrl.u32 %v702, 7
      %v704 = vsub.s32 3, %v703
      %v705 = vrot.slane %v688, %v704
      %v726 = vunpack.c.l.b16 %v672
      %v727 = vunpack.c.h.b16 %v672
      %v728 = vunpack.c.l.b16 %v673
      %v729 = vunpack.c.h.b16 %v673
      %v730 = vunpack.c.l.b16 %v674
      %v731 = vunpack.c.h.b16 %v674
      %v732 = vunpack.c.l.b16 %v675
      %v733 = vunpack.c.h.b16 %v675
      %v734 = vunpack.c.l.b16 %v676
      %v735 = vunpack.c.h.b16 %v676
      %v736 = vunpack.c.l.b16 %v677
      %v737 = vunpack.c.h.b16 %v677
      %v738 = vunpack.c.l.b16 %v678
      %v739 = vunpack.c.h.b16 %v678
      %v740 = vunpack.c.l.b16 %v679
      %v741 = vunpack.c.h.b16 %v679
      %v742 = vunpack.c.l.b16 %v680
      %v743 = vunpack.c.h.b16 %v680
      %v744 = vunpack.c.l.b16 %v681
      %v745 = vunpack.c.h.b16 %v681
      %v746 = vunpack.c.l.b16 %v682
      %v747 = vunpack.c.h.b16 %v682
      %v748 = vunpack.c.l.b16 %v683
      %v749 = vunpack.c.h.b16 %v683
      %v750 = vunpack.c.l.b16 %v684
      %v751 = vunpack.c.h.b16 %v684
      %v752 = vunpack.c.l.b16 %v685
      %v753 = vunpack.c.h.b16 %v685
      %v754 = vunpack.c.l.b16 %v686
      %v755 = vunpack.c.h.b16 %v686
      %v756 = vunpack.c.l.b16 %v687
      %v757 = vunpack.c.h.b16 %v687
      %v758 = vpack.c.b16 %v730, %v726
      %v759 = vpack.c.b16 %v731, %v727
      %v760 = vpack.c.b16 %v732, %v728
      %v761 = vpack.c.b16 %v733, %v729
      %v762 = vpack.c.b16 %v738, %v734
      %v763 = vpack.c.b16 %v739, %v735
      %v764 = vpack.c.b16 %v740, %v736
      %v765 = vpack.c.b16 %v741, %v737
      %v766 = vpack.c.b16 %v746, %v742
      %v767 = vpack.c.b16 %v747, %v743
      %v768 = vpack.c.b16 %v748, %v744
      %v769 = vpack.c.b16 %v749, %v745
      %v770 = vpack.c.b16 %v754, %v750
      %v771 = vpack.c.b16 %v755, %v751
      %v772 = vpack.c.b16 %v756, %v752
      %v773 = vpack.c.b16 %v757, %v753
      %vm790 = vcmask 523264
      %v792 = vsel %vm790, %v664, 0
      %v795 = vsel %vm790, %v665, 0
      %v798 = vsel %vm790, %v666, 0
      %v801 = vsel %vm790, %v667, 0
      %v804 = vsel %vm790, %v668, 0
      %v807 = vsel %vm790, %v669, 0
      %v810 = vsel %vm790, %v670, 0
      %v813 = vsel %vm790, %v671, 0
      %815 = vmatprep.subr.bf16.mxu0 %v759
      %816 = vmatpush1.bf16.msra.mxu0 %v758
      %817 = vmatprep.subr.bf16.mxu0 %v763
      %818 = vmatpush1.bf16.msra.mxu0 %v762
      %819 = vmatprep.subr.bf16.mxu0 %v767
      %820 = vmatpush1.bf16.msra.mxu0 %v766
      %821 = vmatprep.subr.bf16.mxu0 %v771
      %822 = vmatpush1.bf16.msra.mxu0 %v770
      %823 = vmatprep.subr.bf16.mxu0 0
      %824 = vmatpush1.bf16.msra.mxu0 0
      %825 = vmatprep.subr.bf16.mxu0 0
      %826 = vmatpush1.bf16.msra.mxu0 0
      %827 = vmatprep.subr.bf16.mxu0 0
      %828 = vmatpush1.bf16.msra.mxu0 0
      %829 = vmatprep.subr.bf16.mxu0 0
      %830 = vmatpush1.bf16.msra.mxu0 0
      %831 = vmatprep.subr.bf16.mxu0 0
      %832 = vmatpush1.bf16.msra.mxu0 0
      %833 = vmatprep.subr.bf16.mxu0 0
      %834 = vmatpush1.bf16.msra.mxu0 0
      %835 = vmatprep.subr.bf16.mxu0 0
      %836 = vmatpush1.bf16.msra.mxu0 0
      %837 = vmatprep.subr.bf16.mxu0 0
      %838 = vmatpush1.bf16.msra.mxu0 0
      %839 = vmatprep.subr.bf16.mxu0 0
      %840 = vmatpush1.bf16.msra.mxu0 0
      %841 = vmatprep.subr.bf16.mxu0 0
      %842 = vmatpush1.bf16.msra.mxu0 0
      %843 = vmatprep.subr.bf16.mxu0 0
      %844 = vmatpush1.bf16.msra.mxu0 0
      %845 = vmatprep.subr.bf16.mxu0 0
      %846 = vmatpush1.bf16.msra.mxu0 0
      %847 = vmatprep.mubr.bf16.mxu0 0
      %848 = vmatmul.mubr.bf16.gmra.mrb[0].mxu0 %v792
      %v849 = vpop.f32.mrb[0].mxu0
      %v850 = vadd.f32 %v693, %v849
      %v851 = vpop.f32.mrb[0].mxu0
      %v852 = vadd.f32 %v697, %v851
      %v853 = vpop.f32.mrb[0].mxu0
      %v854 = vadd.f32 %v693, %v853
      %v855 = vpop.f32.mrb[0].mxu0
      %v856 = vadd.f32 %v697, %v855
      %857 = vmatprep.mubr.bf16.mxu0 0
      %858 = vmatmul.mubr.bf16.gmra.mrb[0].mxu0 %v795
      %v859 = vpop.f32.mrb[0].mxu0
      %v860 = vadd.f32 %v693, %v859
      %v861 = vpop.f32.mrb[0].mxu0
      %v862 = vadd.f32 %v697, %v861
      %v863 = vpop.f32.mrb[0].mxu0
      %v864 = vadd.f32 %v693, %v863
      %v865 = vpop.f32.mrb[0].mxu0
      %v866 = vadd.f32 %v697, %v865
      %867 = vmatprep.mubr.bf16.mxu0 0
      %868 = vmatmul.mubr.bf16.gmra.mrb[0].mxu0 %v798
      %v869 = vpop.f32.mrb[0].mxu0
      %v870 = vadd.f32 %v693, %v869
      %v871 = vpop.f32.mrb[0].mxu0
      %v872 = vadd.f32 %v697, %v871
      %v873 = vpop.f32.mrb[0].mxu0
      %v874 = vadd.f32 %v693, %v873
      %v875 = vpop.f32.mrb[0].mxu0
      %v876 = vadd.f32 %v697, %v875
      %877 = vmatprep.mubr.bf16.mxu0 0
      %878 = vmatmul.mubr.bf16.gmra.mrb[0].mxu0 %v801
      %v879 = vpop.f32.mrb[0].mxu0
      %v880 = vadd.f32 %v693, %v879
      %v881 = vpop.f32.mrb[0].mxu0
      %v882 = vadd.f32 %v697, %v881
      %v883 = vpop.f32.mrb[0].mxu0
      %v884 = vadd.f32 %v693, %v883
      %v885 = vpop.f32.mrb[0].mxu0
      %v886 = vadd.f32 %v697, %v885
      %887 = vmatprep.mubr.bf16.mxu0 0
      %888 = vmatmul.mubr.bf16.gmra.mrb[0].mxu0 %v804
      %v889 = vpop.f32.mrb[0].mxu0
      %v890 = vadd.f32 %v693, %v889
      %v891 = vpop.f32.mrb[0].mxu0
      %v892 = vadd.f32 %v697, %v891
      %v893 = vpop.f32.mrb[0].mxu0
      %v894 = vadd.f32 %v693, %v893
      %v895 = vpop.f32.mrb[0].mxu0
      %v896 = vadd.f32 %v697, %v895
      %897 = vmatprep.mubr.bf16.mxu0 0
      %898 = vmatmul.mubr.bf16.gmra.mrb[0].mxu0 %v807
      %v899 = vpop.f32.mrb[0].mxu0
      %v900 = vadd.f32 %v693, %v899
      %v901 = vpop.f32.mrb[0].mxu0
      %v902 = vadd.f32 %v697, %v901
      %v903 = vpop.f32.mrb[0].mxu0
      %v904 = vadd.f32 %v693, %v903
      %v905 = vpop.f32.mrb[0].mxu0
      %v906 = vadd.f32 %v697, %v905
      %907 = vmatprep.mubr.bf16.mxu0 0
      %908 = vmatmul.mubr.bf16.gmra.mrb[0].mxu0 %v810
      %v909 = vpop.f32.mrb[0].mxu0
      %v910 = vadd.f32 %v693, %v909
      %v911 = vpop.f32.mrb[0].mxu0
      %v912 = vadd.f32 %v697, %v911
      %v913 = vpop.f32.mrb[0].mxu0
      %v914 = vadd.f32 %v693, %v913
      %v915 = vpop.f32.mrb[0].mxu0
      %v916 = vadd.f32 %v697, %v915
      %917 = vmatprep.mubr.bf16.mxu0 0
      %918 = vmatmul.mubr.bf16.gmra.mrb[0].mxu0 %v813
      %v919 = vpop.f32.mrb[0].mxu0
      %v920 = vadd.f32 %v693, %v919
      %v921 = vpop.f32.mrb[0].mxu0
      %v922 = vadd.f32 %v697, %v921
      %v923 = vpop.f32.mrb[0].mxu0
      %v924 = vadd.f32 %v693, %v923
      %v925 = vpop.f32.mrb[0].mxu0
      %v926 = vadd.f32 %v697, %v925
      %927 = vdwg.mxu0
      %928 = vmatprep.subr.bf16.mxu0 %v761
      %929 = vmatpush1.bf16.msra.mxu0 %v760
      %930 = vmatprep.subr.bf16.mxu0 %v765
      %931 = vmatpush1.bf16.msra.mxu0 %v764
      %932 = vmatprep.subr.bf16.mxu0 %v769
      %933 = vmatpush1.bf16.msra.mxu0 %v768
      %934 = vmatprep.subr.bf16.mxu0 %v773
      %935 = vmatpush1.bf16.msra.mxu0 %v772
      %936 = vmatprep.subr.bf16.mxu0 0
      %937 = vmatpush1.bf16.msra.mxu0 0
      %938 = vmatprep.subr.bf16.mxu0 0
      %939 = vmatpush1.bf16.msra.mxu0 0
      %940 = vmatprep.subr.bf16.mxu0 0
      %941 = vmatpush1.bf16.msra.mxu0 0
      %942 = vmatprep.subr.bf16.mxu0 0
      %943 = vmatpush1.bf16.msra.mxu0 0
      %944 = vmatprep.subr.bf16.mxu0 0
      %945 = vmatpush1.bf16.msra.mxu0 0
      %946 = vmatprep.subr.bf16.mxu0 0
      %947 = vmatpush1.bf16.msra.mxu0 0
      %948 = vmatprep.subr.bf16.mxu0 0
      %949 = vmatpush1.bf16.msra.mxu0 0
      %950 = vmatprep.subr.bf16.mxu0 0
      %951 = vmatpush1.bf16.msra.mxu0 0
      %952 = vmatprep.subr.bf16.mxu0 0
      %953 = vmatpush1.bf16.msra.mxu0 0
      %954 = vmatprep.subr.bf16.mxu0 0
      %955 = vmatpush1.bf16.msra.mxu0 0
      %956 = vmatprep.subr.bf16.mxu0 0
      %957 = vmatpush1.bf16.msra.mxu0 0
      %958 = vmatprep.subr.bf16.mxu0 0
      %959 = vmatpush1.bf16.msra.mxu0 0
      %960 = vmatprep.mubr.bf16.mxu0 0
      %961 = vmatmul.mubr.bf16.gmra.mrb[0].mxu0 %v792
      %v962 = vpop.f32.mrb[0].mxu0
      %v963 = vadd.f32 %v701, %v962
      %v964 = vpop.f32.mrb[0].mxu0
      %v965 = vadd.f32 %v705, %v964
      %v966 = vpop.f32.mrb[0].mxu0
      %v967 = vadd.f32 %v701, %v966
      %v968 = vpop.f32.mrb[0].mxu0
      %v969 = vadd.f32 %v705, %v968
      %970 = vmatprep.mubr.bf16.mxu0 0
      %971 = vmatmul.mubr.bf16.gmra.mrb[0].mxu0 %v795
      %v972 = vpop.f32.mrb[0].mxu0
      %v973 = vadd.f32 %v701, %v972
      %v974 = vpop.f32.mrb[0].mxu0
      %v975 = vadd.f32 %v705, %v974
      %v976 = vpop.f32.mrb[0].mxu0
      %v977 = vadd.f32 %v701, %v976
      %v978 = vpop.f32.mrb[0].mxu0
      %v979 = vadd.f32 %v705, %v978
      %980 = vmatprep.mubr.bf16.mxu0 0
      %981 = vmatmul.mubr.bf16.gmra.mrb[0].mxu0 %v798
      %v982 = vpop.f32.mrb[0].mxu0
      %v983 = vadd.f32 %v701, %v982
      %v984 = vpop.f32.mrb[0].mxu0
      %v985 = vadd.f32 %v705, %v984
      %v986 = vpop.f32.mrb[0].mxu0
      %v987 = vadd.f32 %v701, %v986
      %v988 = vpop.f32.mrb[0].mxu0
      %v989 = vadd.f32 %v705, %v988
      %990 = vmatprep.mubr.bf16.mxu0 0
      %991 = vmatmul.mubr.bf16.gmra.mrb[0].mxu0 %v801
      %v992 = vpop.f32.mrb[0].mxu0
      %v993 = vadd.f32 %v701, %v992
      %v994 = vpop.f32.mrb[0].mxu0
      %v995 = vadd.f32 %v705, %v994
      %v996 = vpop.f32.mrb[0].mxu0
      %v997 = vadd.f32 %v701, %v996
      %v998 = vpop.f32.mrb[0].mxu0
      %v999 = vadd.f32 %v705, %v998
      %1000 = vmatprep.mubr.bf16.mxu0 0
      %1001 = vmatmul.mubr.bf16.gmra.mrb[0].mxu0 %v804
      %v1002 = vpop.f32.mrb[0].mxu0
      %v1003 = vadd.f32 %v701, %v1002
      %v1004 = vpop.f32.mrb[0].mxu0
      %v1005 = vadd.f32 %v705, %v1004
      %v1006 = vpop.f32.mrb[0].mxu0
      %v1007 = vadd.f32 %v701, %v1006
      %v1008 = vpop.f32.mrb[0].mxu0
      %v1009 = vadd.f32 %v705, %v1008
      %1010 = vmatprep.mubr.bf16.mxu0 0
      %1011 = vmatmul.mubr.bf16.gmra.mrb[0].mxu0 %v807
      %v1012 = vpop.f32.mrb[0].mxu0
      %v1013 = vadd.f32 %v701, %v1012
      %v1014 = vpop.f32.mrb[0].mxu0
      %v1015 = vadd.f32 %v705, %v1014
      %v1016 = vpop.f32.mrb[0].mxu0
      %v1017 = vadd.f32 %v701, %v1016
      %v1018 = vpop.f32.mrb[0].mxu0
      %v1019 = vadd.f32 %v705, %v1018
      %1020 = vmatprep.mubr.bf16.mxu0 0
      %1021 = vmatmul.mubr.bf16.gmra.mrb[0].mxu0 %v810
      %v1022 = vpop.f32.mrb[0].mxu0
      %v1023 = vadd.f32 %v701, %v1022
      %v1024 = vpop.f32.mrb[0].mxu0
      %v1025 = vadd.f32 %v705, %v1024
      %v1026 = vpop.f32.mrb[0].mxu0
      %v1027 = vadd.f32 %v701, %v1026
      %v1028 = vpop.f32.mrb[0].mxu0
      %v1029 = vadd.f32 %v705, %v1028
      %1030 = vmatprep.mubr.bf16.mxu0 0
      %1031 = vmatmul.mubr.bf16.gmra.mrb[0].mxu0 %v813
      %v1032 = vpop.f32.mrb[0].mxu0
      %v1033 = vadd.f32 %v701, %v1032
      %v1034 = vpop.f32.mrb[0].mxu0
      %v1035 = vadd.f32 %v705, %v1034
      %v1036 = vpop.f32.mrb[0].mxu0
      %v1037 = vadd.f32 %v701, %v1036
      %v1038 = vpop.f32.mrb[0].mxu0
      %v1039 = vadd.f32 %v705, %v1038
      %1040 = vdwg.mxu0
      %v1041 = vmax.f32 %v850, 0.0
      %v1042 = vmax.f32 %v852, 0.0
      %v1043 = vmax.f32 %v963, 0.0
      %v1044 = vmax.f32 %v965, 0.0
      %v1045 = vmax.f32 %v854, 0.0
      %v1046 = vmax.f32 %v856, 0.0
      %v1047 = vmax.f32 %v967, 0.0
      %v1048 = vmax.f32 %v969, 0.0
      %v1049 = vmax.f32 %v860, 0.0
      %v1050 = vmax.f32 %v862, 0.0
      %v1051 = vmax.f32 %v973, 0.0
      %v1052 = vmax.f32 %v975, 0.0
      %v1053 = vmax.f32 %v864, 0.0
      %v1054 = vmax.f32 %v866, 0.0
      %v1055 = vmax.f32 %v977, 0.0
      %v1056 = vmax.f32 %v979, 0.0
      %v1057 = vmax.f32 %v870, 0.0
      %v1058 = vmax.f32 %v872, 0.0
      %v1059 = vmax.f32 %v983, 0.0
      %v1060 = vmax.f32 %v985, 0.0
      %v1061 = vmax.f32 %v874, 0.0
      %v1062 = vmax.f32 %v876, 0.0
      %v1063 = vmax.f32 %v987, 0.0
      %v1064 = vmax.f32 %v989, 0.0
      %v1065 = vmax.f32 %v880, 0.0
      %v1066 = vmax.f32 %v882, 0.0
      %v1067 = vmax.f32 %v993, 0.0
      %v1068 = vmax.f32 %v995, 0.0
      %v1069 = vmax.f32 %v884, 0.0
      %v1070 = vmax.f32 %v886, 0.0
      %v1071 = vmax.f32 %v997, 0.0
      %v1072 = vmax.f32 %v999, 0.0
      %v1073 = vmax.f32 %v890, 0.0
      %v1074 = vmax.f32 %v892, 0.0
      %v1075 = vmax.f32 %v1003, 0.0
      %v1076 = vmax.f32 %v1005, 0.0
      %v1077 = vmax.f32 %v894, 0.0
      %v1078 = vmax.f32 %v896, 0.0
      %v1079 = vmax.f32 %v1007, 0.0
      %v1080 = vmax.f32 %v1009, 0.0
      %v1081 = vmax.f32 %v900, 0.0
      %v1082 = vmax.f32 %v902, 0.0
      %v1083 = vmax.f32 %v1013, 0.0
      %v1084 = vmax.f32 %v1015, 0.0
      %v1085 = vmax.f32 %v904, 0.0
      %v1086 = vmax.f32 %v906, 0.0
      %v1087 = vmax.f32 %v1017, 0.0
      %v1088 = vmax.f32 %v1019, 0.0
      %v1089 = vmax.f32 %v910, 0.0
      %v1090 = vmax.f32 %v912, 0.0
      %v1091 = vmax.f32 %v1023, 0.0
      %v1092 = vmax.f32 %v1025, 0.0
      %v1093 = vmax.f32 %v914, 0.0
      %v1094 = vmax.f32 %v916, 0.0
      %v1095 = vmax.f32 %v1027, 0.0
      %v1096 = vmax.f32 %v1029, 0.0
      %v1097 = vmax.f32 %v920, 0.0
      %v1098 = vmax.f32 %v922, 0.0
      %v1099 = vmax.f32 %v1033, 0.0
      %v1100 = vmax.f32 %v1035, 0.0
      %v1101 = vmax.f32 %v924, 0.0
      %v1102 = vmax.f32 %v926, 0.0
      %v1103 = vmax.f32 %v1037, 0.0
      %v1104 = vmax.f32 %v1039, 0.0
      %v1105 = vpack.c.bf16 %v1045, %v1041
      %v1106 = vpack.c.bf16 %v1046, %v1042
      %v1107 = vpack.c.bf16 %v1047, %v1043
      %v1108 = vpack.c.bf16 %v1048, %v1044
      %v1109 = vpack.c.bf16 %v1053, %v1049
      %v1110 = vpack.c.bf16 %v1054, %v1050
      %v1111 = vpack.c.bf16 %v1055, %v1051
      %v1112 = vpack.c.bf16 %v1056, %v1052
      %v1113 = vpack.c.bf16 %v1061, %v1057
      %v1114 = vpack.c.bf16 %v1062, %v1058
      %v1115 = vpack.c.bf16 %v1063, %v1059
      %v1116 = vpack.c.bf16 %v1064, %v1060
      %v1117 = vpack.c.bf16 %v1069, %v1065
      %v1118 = vpack.c.bf16 %v1070, %v1066
      %v1119 = vpack.c.bf16 %v1071, %v1067
      %v1120 = vpack.c.bf16 %v1072, %v1068
      %v1121 = vpack.c.bf16 %v1077, %v1073
      %v1122 = vpack.c.bf16 %v1078, %v1074
      %v1123 = vpack.c.bf16 %v1079, %v1075
      %v1124 = vpack.c.bf16 %v1080, %v1076
      %v1125 = vpack.c.bf16 %v1085, %v1081
      %v1126 = vpack.c.bf16 %v1086, %v1082
      %v1127 = vpack.c.bf16 %v1087, %v1083
      %v1128 = vpack.c.bf16 %v1088, %v1084
      %v1129 = vpack.c.bf16 %v1093, %v1089
      %v1130 = vpack.c.bf16 %v1094, %v1090
      %v1131 = vpack.c.bf16 %v1095, %v1091
      %v1132 = vpack.c.bf16 %v1096, %v1092
      %v1133 = vpack.c.bf16 %v1101, %v1097
      %v1134 = vpack.c.bf16 %v1102, %v1098
      %v1135 = vpack.c.bf16 %v1103, %v1099
      %v1136 = vpack.c.bf16 %v1104, %v1100
      %v1137 = vld [vmem:[%s5] sm:$0xff]
      %v1138 = vld [vmem:[%s5 + $0x8] sm:$0xff]
      %v1139 = vld [vmem:[%s5 + $0x10] sm:$0xff]
      %v1140 = vld [vmem:[%s5 + $0x18] sm:$0xff]
      %v1141 = vld [vmem:[%s5 + $0x20] sm:$0xff]
      %v1142 = vld [vmem:[%s5 + $0x28] sm:$0xff]
      %v1143 = vld [vmem:[%s5 + $0x30] sm:$0xff]
      %v1144 = vld [vmem:[%s5 + $0x38] sm:$0xff]
      %v1145 = vld [vmem:[%s5 + $0x40] sm:$0xff]
      %v1146 = vld [vmem:[%s5 + $0x48] sm:$0xff]
      %v1147 = vld [vmem:[%s5 + $0x50] sm:$0xff]
      %v1148 = vld [vmem:[%s5 + $0x58] sm:$0xff]
      %v1149 = vld [vmem:[%s5 + $0x60] sm:$0xff]
      %v1150 = vld [vmem:[%s5 + $0x68] sm:$0xff]
      %v1151 = vld [vmem:[%s5 + $0x70] sm:$0xff]
      %v1152 = vld [vmem:[%s5 + $0x78] sm:$0xff]
      %v1153 = vld [vmem:[%s5 + $0x80] sm:$0xff]
      %v1154 = vld [vmem:[%s5 + $0x88] sm:$0xff]
      %v1155 = vld [vmem:[%s5 + $0x90] sm:$0xff]
      %v1156 = vld [vmem:[%s5 + $0x98] sm:$0xff]
      %v1157 = vld [vmem:[%s5 + $0xa0] sm:$0xff]
      %v1158 = vld [vmem:[%s5 + $0xa8] sm:$0xff]
      %v1159 = vld [vmem:[%s5 + $0xb0] sm:$0xff]
      %v1160 = vld [vmem:[%s5 + $0xb8] sm:$0xff]
      %v1161 = vld [vmem:[%s5 + $0xc0] sm:$0xff]
      %v1162 = vld [vmem:[%s5 + $0xc8] sm:$0xff]
      %v1163 = vld [vmem:[%s5 + $0xd0] sm:$0xff]
      %v1164 = vld [vmem:[%s5 + $0xd8] sm:$0xff]
      %v1165 = vld [vmem:[%s5 + $0xe0] sm:$0xff]
      %v1166 = vld [vmem:[%s5 + $0xe8] sm:$0xff]
      %v1167 = vld [vmem:[%s5 + $0xf0] sm:$0xff]
      %v1168 = vld [vmem:[%s5 + $0xf8] sm:$0xff]
      %v1169 = vld [vmem:[%s5 + $0x100] sm:$0xff]
      %v1170 = vld [vmem:[%s5 + $0x108] sm:$0xff]
      %v1171 = vld [vmem:[%s5 + $0x110] sm:$0xff]
      %v1172 = vld [vmem:[%s5 + $0x118] sm:$0xff]
      %v1173 = vld [vmem:[%s5 + $0x120] sm:$0xff]
      %v1174 = vld [vmem:[%s5 + $0x128] sm:$0xff]
      %v1175 = vld [vmem:[%s5 + $0x130] sm:$0xff]
      %v1176 = vld [vmem:[%s5 + $0x138] sm:$0xff]
      %v1177 = vld [vmem:[%s5 + $0x140] sm:$0xff]
      %v1178 = vld [vmem:[%s5 + $0x148] sm:$0xff]
      %v1179 = vld [vmem:[%s5 + $0x150] sm:$0xff]
      %v1180 = vld [vmem:[%s5 + $0x158] sm:$0xff]
      %v1181 = vld [vmem:[%s5 + $0x160] sm:$0xff]
      %v1182 = vld [vmem:[%s5 + $0x168] sm:$0xff]
      %v1183 = vld [vmem:[%s5 + $0x170] sm:$0xff]
      %v1184 = vld [vmem:[%s5 + $0x178] sm:$0xff]
      %v1185 = vld [vmem:[%s5 + $0x180] sm:$0xff]
      %v1186 = vld [vmem:[%s5 + $0x188] sm:$0xff]
      %v1187 = vld [vmem:[%s5 + $0x190] sm:$0xff]
      %v1188 = vld [vmem:[%s5 + $0x198] sm:$0xff]
      %v1189 = vld [vmem:[%s5 + $0x1a0] sm:$0xff]
      %v1190 = vld [vmem:[%s5 + $0x1a8] sm:$0xff]
      %v1191 = vld [vmem:[%s5 + $0x1b0] sm:$0xff]
      %v1192 = vld [vmem:[%s5 + $0x1b8] sm:$0xff]
      %v1193 = vld [vmem:[%s5 + $0x1c0] sm:$0xff]
      %v1194 = vld [vmem:[%s5 + $0x1c8] sm:$0xff]
      %v1195 = vld [vmem:[%s5 + $0x1d0] sm:$0xff]
      %v1196 = vld [vmem:[%s5 + $0x1d8] sm:$0xff]
      %v1197 = vld [vmem:[%s5 + $0x1e0] sm:$0xff]
      %v1198 = vld [vmem:[%s5 + $0x1e8] sm:$0xff]
      %v1199 = vld [vmem:[%s5 + $0x1f0] sm:$0xff]
      %v1200 = vld [vmem:[%s5 + $0x1f8] sm:$0xff]
      %v1201 = vld [vmem:[%s6] sm:$0x3]
      %v1203 = vlaneseq
      %v1204 = vshrl.u32 %v1203, 7
      %v1205 = vsub.s32 0, %v1204
      %v1206 = vrot.slane %v1201, %v1205
      %v1207 = vlaneseq
      %v1208 = vshrl.u32 %v1207, 7
      %v1209 = vsub.s32 1, %v1208
      %v1210 = vrot.slane %v1201, %v1209
      %v1277 = vunpack.c.l.b16 %v1137
      %v1278 = vunpack.c.h.b16 %v1137
      %v1279 = vunpack.c.l.b16 %v1138
      %v1280 = vunpack.c.h.b16 %v1138
      %v1281 = vunpack.c.l.b16 %v1139
      %v1282 = vunpack.c.h.b16 %v1139
      %v1283 = vunpack.c.l.b16 %v1140
      %v1284 = vunpack.c.h.b16 %v1140
      %v1285 = vunpack.c.l.b16 %v1141
      %v1286 = vunpack.c.h.b16 %v1141
      %v1287 = vunpack.c.l.b16 %v1142
      %v1288 = vunpack.c.h.b16 %v1142
      %v1289 = vunpack.c.l.b16 %v1143
      %v1290 = vunpack.c.h.b16 %v1143
      %v1291 = vunpack.c.l.b16 %v1144
      %v1292 = vunpack.c.h.b16 %v1144
      %v1293 = vunpack.c.l.b16 %v1145
      %v1294 = vunpack.c.h.b16 %v1145
      %v1295 = vunpack.c.l.b16 %v1146
      %v1296 = vunpack.c.h.b16 %v1146
      %v1297 = vunpack.c.l.b16 %v1147
      %v1298 = vunpack.c.h.b16 %v1147
      %v1299 = vunpack.c.l.b16 %v1148
      %v1300 = vunpack.c.h.b16 %v1148
      %v1301 = vunpack.c.l.b16 %v1149
      %v1302 = vunpack.c.h.b16 %v1149
      %v1303 = vunpack.c.l.b16 %v1150
      %v1304 = vunpack.c.h.b16 %v1150
      %v1305 = vunpack.c.l.b16 %v1151
      %v1306 = vunpack.c.h.b16 %v1151
      %v1307 = vunpack.c.l.b16 %v1152
      %v1308 = vunpack.c.h.b16 %v1152
      %v1309 = vunpack.c.l.b16 %v1153
      %v1310 = vunpack.c.h.b16 %v1153
      %v1311 = vunpack.c.l.b16 %v1154
      %v1312 = vunpack.c.h.b16 %v1154
      %v1313 = vunpack.c.l.b16 %v1155
      %v1314 = vunpack.c.h.b16 %v1155
      %v1315 = vunpack.c.l.b16 %v1156
      %v1316 = vunpack.c.h.b16 %v1156
      %v1317 = vunpack.c.l.b16 %v1157
      %v1318 = vunpack.c.h.b16 %v1157
      %v1319 = vunpack.c.l.b16 %v1158
      %v1320 = vunpack.c.h.b16 %v1158
      %v1321 = vunpack.c.l.b16 %v1159
      %v1322 = vunpack.c.h.b16 %v1159
      %v1323 = vunpack.c.l.b16 %v1160
      %v1324 = vunpack.c.h.b16 %v1160
      %v1325 = vunpack.c.l.b16 %v1161
      %v1326 = vunpack.c.h.b16 %v1161
      %v1327 = vunpack.c.l.b16 %v1162
      %v1328 = vunpack.c.h.b16 %v1162
      %v1329 = vunpack.c.l.b16 %v1163
      %v1330 = vunpack.c.h.b16 %v1163
      %v1331 = vunpack.c.l.b16 %v1164
      %v1332 = vunpack.c.h.b16 %v1164
      %v1333 = vunpack.c.l.b16 %v1165
      %v1334 = vunpack.c.h.b16 %v1165
      %v1335 = vunpack.c.l.b16 %v1166
      %v1336 = vunpack.c.h.b16 %v1166
      %v1337 = vunpack.c.l.b16 %v1167
      %v1338 = vunpack.c.h.b16 %v1167
      %v1339 = vunpack.c.l.b16 %v1168
      %v1340 = vunpack.c.h.b16 %v1168
      %v1341 = vunpack.c.l.b16 %v1169
      %v1342 = vunpack.c.h.b16 %v1169
      %v1343 = vunpack.c.l.b16 %v1170
      %v1344 = vunpack.c.h.b16 %v1170
      %v1345 = vunpack.c.l.b16 %v1171
      %v1346 = vunpack.c.h.b16 %v1171
      %v1347 = vunpack.c.l.b16 %v1172
      %v1348 = vunpack.c.h.b16 %v1172
      %v1349 = vunpack.c.l.b16 %v1173
      %v1350 = vunpack.c.h.b16 %v1173
      %v1351 = vunpack.c.l.b16 %v1174
      %v1352 = vunpack.c.h.b16 %v1174
      %v1353 = vunpack.c.l.b16 %v1175
      %v1354 = vunpack.c.h.b16 %v1175
      %v1355 = vunpack.c.l.b16 %v1176
      %v1356 = vunpack.c.h.b16 %v1176
      %v1357 = vunpack.c.l.b16 %v1177
      %v1358 = vunpack.c.h.b16 %v1177
      %v1359 = vunpack.c.l.b16 %v1178
      %v1360 = vunpack.c.h.b16 %v1178
      %v1361 = vunpack.c.l.b16 %v1179
      %v1362 = vunpack.c.h.b16 %v1179
      %v1363 = vunpack.c.l.b16 %v1180
      %v1364 = vunpack.c.h.b16 %v1180
      %v1365 = vunpack.c.l.b16 %v1181
      %v1366 = vunpack.c.h.b16 %v1181
      %v1367 = vunpack.c.l.b16 %v1182
      %v1368 = vunpack.c.h.b16 %v1182
      %v1369 = vunpack.c.l.b16 %v1183
      %v1370 = vunpack.c.h.b16 %v1183
      %v1371 = vunpack.c.l.b16 %v1184
      %v1372 = vunpack.c.h.b16 %v1184
      %v1373 = vunpack.c.l.b16 %v1185
      %v1374 = vunpack.c.h.b16 %v1185
      %v1375 = vunpack.c.l.b16 %v1186
      %v1376 = vunpack.c.h.b16 %v1186
      %v1377 = vunpack.c.l.b16 %v1187
      %v1378 = vunpack.c.h.b16 %v1187
      %v1379 = vunpack.c.l.b16 %v1188
      %v1380 = vunpack.c.h.b16 %v1188
      %v1381 = vunpack.c.l.b16 %v1189
      %v1382 = vunpack.c.h.b16 %v1189
      %v1383 = vunpack.c.l.b16 %v1190
      %v1384 = vunpack.c.h.b16 %v1190
      %v1385 = vunpack.c.l.b16 %v1191
      %v1386 = vunpack.c.h.b16 %v1191
      %v1387 = vunpack.c.l.b16 %v1192
      %v1388 = vunpack.c.h.b16 %v1192
      %v1389 = vunpack.c.l.b16 %v1193
      %v1390 = vunpack.c.h.b16 %v1193
      %v1391 = vunpack.c.l.b16 %v1194
      %v1392 = vunpack.c.h.b16 %v1194
      %v1393 = vunpack.c.l.b16 %v1195
      %v1394 = vunpack.c.h.b16 %v1195
      %v1395 = vunpack.c.l.b16 %v1196
      %v1396 = vunpack.c.h.b16 %v1196
      %v1397 = vunpack.c.l.b16 %v1197
      %v1398 = vunpack.c.h.b16 %v1197
      %v1399 = vunpack.c.l.b16 %v1198
      %v1400 = vunpack.c.h.b16 %v1198
      %v1401 = vunpack.c.l.b16 %v1199
      %v1402 = vunpack.c.h.b16 %v1199
      %v1403 = vunpack.c.l.b16 %v1200
      %v1404 = vunpack.c.h.b16 %v1200
      %v1405 = vpack.c.b16 %v1279, %v1277
      %v1406 = vpack.c.b16 %v1280, %v1278
      %v1407 = vpack.c.b16 %v1283, %v1281
      %v1408 = vpack.c.b16 %v1284, %v1282
      %v1409 = vpack.c.b16 %v1287, %v1285
      %v1410 = vpack.c.b16 %v1288, %v1286
      %v1411 = vpack.c.b16 %v1291, %v1289
      %v1412 = vpack.c.b16 %v1292, %v1290
      %v1413 = vpack.c.b16 %v1295, %v1293
      %v1414 = vpack.c.b16 %v1296, %v1294
      %v1415 = vpack.c.b16 %v1299, %v1297
      %v1416 = vpack.c.b16 %v1300, %v1298
      %v1417 = vpack.c.b16 %v1303, %v1301
      %v1418 = vpack.c.b16 %v1304, %v1302
      %v1419 = vpack.c.b16 %v1307, %v1305
      %v1420 = vpack.c.b16 %v1308, %v1306
      %v1421 = vpack.c.b16 %v1311, %v1309
      %v1422 = vpack.c.b16 %v1312, %v1310
      %v1423 = vpack.c.b16 %v1315, %v1313
      %v1424 = vpack.c.b16 %v1316, %v1314
      %v1425 = vpack.c.b16 %v1319, %v1317
      %v1426 = vpack.c.b16 %v1320, %v1318
      %v1427 = vpack.c.b16 %v1323, %v1321
      %v1428 = vpack.c.b16 %v1324, %v1322
      %v1429 = vpack.c.b16 %v1327, %v1325
      %v1430 = vpack.c.b16 %v1328, %v1326
      %v1431 = vpack.c.b16 %v1331, %v1329
      %v1432 = vpack.c.b16 %v1332, %v1330
      %v1433 = vpack.c.b16 %v1335, %v1333
      %v1434 = vpack.c.b16 %v1336, %v1334
      %v1435 = vpack.c.b16 %v1339, %v1337
      %v1436 = vpack.c.b16 %v1340, %v1338
      %v1437 = vpack.c.b16 %v1343, %v1341
      %v1438 = vpack.c.b16 %v1344, %v1342
      %v1439 = vpack.c.b16 %v1347, %v1345
      %v1440 = vpack.c.b16 %v1348, %v1346
      %v1441 = vpack.c.b16 %v1351, %v1349
      %v1442 = vpack.c.b16 %v1352, %v1350
      %v1443 = vpack.c.b16 %v1355, %v1353
      %v1444 = vpack.c.b16 %v1356, %v1354
      %v1445 = vpack.c.b16 %v1359, %v1357
      %v1446 = vpack.c.b16 %v1360, %v1358
      %v1447 = vpack.c.b16 %v1363, %v1361
      %v1448 = vpack.c.b16 %v1364, %v1362
      %v1449 = vpack.c.b16 %v1367, %v1365
      %v1450 = vpack.c.b16 %v1368, %v1366
      %v1451 = vpack.c.b16 %v1371, %v1369
      %v1452 = vpack.c.b16 %v1372, %v1370
      %v1453 = vpack.c.b16 %v1375, %v1373
      %v1454 = vpack.c.b16 %v1376, %v1374
      %v1455 = vpack.c.b16 %v1379, %v1377
      %v1456 = vpack.c.b16 %v1380, %v1378
      %v1457 = vpack.c.b16 %v1383, %v1381
      %v1458 = vpack.c.b16 %v1384, %v1382
      %v1459 = vpack.c.b16 %v1387, %v1385
      %v1460 = vpack.c.b16 %v1388, %v1386
      %v1461 = vpack.c.b16 %v1391, %v1389
      %v1462 = vpack.c.b16 %v1392, %v1390
      %v1463 = vpack.c.b16 %v1395, %v1393
      %v1464 = vpack.c.b16 %v1396, %v1394
      %v1465 = vpack.c.b16 %v1399, %v1397
      %v1466 = vpack.c.b16 %v1400, %v1398
      %v1467 = vpack.c.b16 %v1403, %v1401
      %v1468 = vpack.c.b16 %v1404, %v1402
      %1533 = vmatprep.subr.bf16.mxu0 %v1406
      %1534 = vmatpush1.bf16.msra.mxu0 %v1405
      %1535 = vmatprep.subr.bf16.mxu0 %v1408
      %1536 = vmatpush1.bf16.msra.mxu0 %v1407
      %1537 = vmatprep.subr.bf16.mxu0 %v1410
      %1538 = vmatpush1.bf16.msra.mxu0 %v1409
      %1539 = vmatprep.subr.bf16.mxu0 %v1412
      %1540 = vmatpush1.bf16.msra.mxu0 %v1411
      %1541 = vmatprep.subr.bf16.mxu0 %v1414
      %1542 = vmatpush1.bf16.msra.mxu0 %v1413
      %1543 = vmatprep.subr.bf16.mxu0 %v1416
      %1544 = vmatpush1.bf16.msra.mxu0 %v1415
      %1545 = vmatprep.subr.bf16.mxu0 %v1418
      %1546 = vmatpush1.bf16.msra.mxu0 %v1417
      %1547 = vmatprep.subr.bf16.mxu0 %v1420
      %1548 = vmatpush1.bf16.msra.mxu0 %v1419
      %1549 = vmatprep.subr.bf16.mxu0 %v1422
      %1550 = vmatpush1.bf16.msra.mxu0 %v1421
      %1551 = vmatprep.subr.bf16.mxu0 %v1424
      %1552 = vmatpush1.bf16.msra.mxu0 %v1423
      %1553 = vmatprep.subr.bf16.mxu0 %v1426
      %1554 = vmatpush1.bf16.msra.mxu0 %v1425
      %1555 = vmatprep.subr.bf16.mxu0 %v1428
      %1556 = vmatpush1.bf16.msra.mxu0 %v1427
      %1557 = vmatprep.subr.bf16.mxu0 %v1430
      %1558 = vmatpush1.bf16.msra.mxu0 %v1429
      %1559 = vmatprep.subr.bf16.mxu0 %v1432
      %1560 = vmatpush1.bf16.msra.mxu0 %v1431
      %1561 = vmatprep.subr.bf16.mxu0 %v1434
      %1562 = vmatpush1.bf16.msra.mxu0 %v1433
      %1563 = vmatprep.subr.bf16.mxu0 %v1436
      %1564 = vmatpush1.bf16.msra.mxu0 %v1435
      %1565 = vmatprep.mubr.bf16.mxu0 %v1106
      %1566 = vmatmul.mubr.bf16.gmra.mrb[0].mxu0 %v1105
      %v1567 = vpop.f32.mrb[0].mxu0
      %v1568 = vadd.f32 %v1206, %v1567
      %v1569 = vpop.f32.mrb[0].mxu0
      %v1570 = vadd.f32 %v1210, %v1569
      %v1571 = vpop.f32.mrb[0].mxu0
      %v1572 = vadd.f32 %v1206, %v1571
      %v1573 = vpop.f32.mrb[0].mxu0
      %v1574 = vadd.f32 %v1210, %v1573
      %1575 = vmatprep.mubr.bf16.mxu0 %v1110
      %1576 = vmatmul.mubr.bf16.gmra.mrb[0].mxu0 %v1109
      %v1577 = vpop.f32.mrb[0].mxu0
      %v1578 = vadd.f32 %v1206, %v1577
      %v1579 = vpop.f32.mrb[0].mxu0
      %v1580 = vadd.f32 %v1210, %v1579
      %v1581 = vpop.f32.mrb[0].mxu0
      %v1582 = vadd.f32 %v1206, %v1581
      %v1583 = vpop.f32.mrb[0].mxu0
      %v1584 = vadd.f32 %v1210, %v1583
      %1585 = vmatprep.mubr.bf16.mxu0 %v1114
      %1586 = vmatmul.mubr.bf16.gmra.mrb[0].mxu0 %v1113
      %v1587 = vpop.f32.mrb[0].mxu0
      %v1588 = vadd.f32 %v1206, %v1587
      %v1589 = vpop.f32.mrb[0].mxu0
      %v1590 = vadd.f32 %v1210, %v1589
      %v1591 = vpop.f32.mrb[0].mxu0
      %v1592 = vadd.f32 %v1206, %v1591
      %v1593 = vpop.f32.mrb[0].mxu0
      %v1594 = vadd.f32 %v1210, %v1593
      %1595 = vmatprep.mubr.bf16.mxu0 %v1118
      %1596 = vmatmul.mubr.bf16.gmra.mrb[0].mxu0 %v1117
      %v1597 = vpop.f32.mrb[0].mxu0
      %v1598 = vadd.f32 %v1206, %v1597
      %v1599 = vpop.f32.mrb[0].mxu0
      %v1600 = vadd.f32 %v1210, %v1599
      %v1601 = vpop.f32.mrb[0].mxu0
      %v1602 = vadd.f32 %v1206, %v1601
      %v1603 = vpop.f32.mrb[0].mxu0
      %v1604 = vadd.f32 %v1210, %v1603
      %1605 = vmatprep.mubr.bf16.mxu0 %v1122
      %1606 = vmatmul.mubr.bf16.gmra.mrb[0].mxu0 %v1121
      %v1607 = vpop.f32.mrb[0].mxu0
      %v1608 = vadd.f32 %v1206, %v1607
      %v1609 = vpop.f32.mrb[0].mxu0
      %v1610 = vadd.f32 %v1210, %v1609
      %v1611 = vpop.f32.mrb[0].mxu0
      %v1612 = vadd.f32 %v1206, %v1611
      %v1613 = vpop.f32.mrb[0].mxu0
      %v1614 = vadd.f32 %v1210, %v1613
      %1615 = vmatprep.mubr.bf16.mxu0 %v1126
      %1616 = vmatmul.mubr.bf16.gmra.mrb[0].mxu0 %v1125
      %v1617 = vpop.f32.mrb[0].mxu0
      %v1618 = vadd.f32 %v1206, %v1617
      %v1619 = vpop.f32.mrb[0].mxu0
      %v1620 = vadd.f32 %v1210, %v1619
      %v1621 = vpop.f32.mrb[0].mxu0
      %v1622 = vadd.f32 %v1206, %v1621
      %v1623 = vpop.f32.mrb[0].mxu0
      %v1624 = vadd.f32 %v1210, %v1623
      %1625 = vmatprep.mubr.bf16.mxu0 %v1130
      %1626 = vmatmul.mubr.bf16.gmra.mrb[0].mxu0 %v1129
      %v1627 = vpop.f32.mrb[0].mxu0
      %v1628 = vadd.f32 %v1206, %v1627
      %v1629 = vpop.f32.mrb[0].mxu0
      %v1630 = vadd.f32 %v1210, %v1629
      %v1631 = vpop.f32.mrb[0].mxu0
      %v1632 = vadd.f32 %v1206, %v1631
      %v1633 = vpop.f32.mrb[0].mxu0
      %v1634 = vadd.f32 %v1210, %v1633
      %1635 = vmatprep.mubr.bf16.mxu0 %v1134
      %1636 = vmatmul.mubr.bf16.gmra.mrb[0].mxu0 %v1133
      %v1637 = vpop.f32.mrb[0].mxu0
      %v1638 = vadd.f32 %v1206, %v1637
      %v1639 = vpop.f32.mrb[0].mxu0
      %v1640 = vadd.f32 %v1210, %v1639
      %v1641 = vpop.f32.mrb[0].mxu0
      %v1642 = vadd.f32 %v1206, %v1641
      %v1643 = vpop.f32.mrb[0].mxu0
      %v1644 = vadd.f32 %v1210, %v1643
      %1645 = vdwg.mxu0
      %1646 = vmatprep.subr.bf16.mxu0 %v1438
      %1647 = vmatpush1.bf16.msra.mxu0 %v1437
      %1648 = vmatprep.subr.bf16.mxu0 %v1440
      %1649 = vmatpush1.bf16.msra.mxu0 %v1439
      %1650 = vmatprep.subr.bf16.mxu0 %v1442
      %1651 = vmatpush1.bf16.msra.mxu0 %v1441
      %1652 = vmatprep.subr.bf16.mxu0 %v1444
      %1653 = vmatpush1.bf16.msra.mxu0 %v1443
      %1654 = vmatprep.subr.bf16.mxu0 %v1446
      %1655 = vmatpush1.bf16.msra.mxu0 %v1445
      %1656 = vmatprep.subr.bf16.mxu0 %v1448
      %1657 = vmatpush1.bf16.msra.mxu0 %v1447
      %1658 = vmatprep.subr.bf16.mxu0 %v1450
      %1659 = vmatpush1.bf16.msra.mxu0 %v1449
      %1660 = vmatprep.subr.bf16.mxu0 %v1452
      %1661 = vmatpush1.bf16.msra.mxu0 %v1451
      %1662 = vmatprep.subr.bf16.mxu0 %v1454
      %1663 = vmatpush1.bf16.msra.mxu0 %v1453
      %1664 = vmatprep.subr.bf16.mxu0 %v1456
      %1665 = vmatpush1.bf16.msra.mxu0 %v1455
      %1666 = vmatprep.subr.bf16.mxu0 %v1458
      %1667 = vmatpush1.bf16.msra.mxu0 %v1457
      %1668 = vmatprep.subr.bf16.mxu0 %v1460
      %1669 = vmatpush1.bf16.msra.mxu0 %v1459
      %1670 = vmatprep.subr.bf16.mxu0 %v1462
      %1671 = vmatpush1.bf16.msra.mxu0 %v1461
      %1672 = vmatprep.subr.bf16.mxu0 %v1464
      %1673 = vmatpush1.bf16.msra.mxu0 %v1463
      %1674 = vmatprep.subr.bf16.mxu0 %v1466
      %1675 = vmatpush1.bf16.msra.mxu0 %v1465
      %1676 = vmatprep.subr.bf16.mxu0 %v1468
      %1677 = vmatpush1.bf16.msra.mxu0 %v1467
      %1678 = vmatprep.mubr.bf16.mxu0 %v1108
      %1679 = vmatmul.mubr.bf16.gmra.mrb[0].mxu0 %v1107
      %v1680 = vpop.f32.mrb[0].mxu0
      %v1681 = vadd.f32 %v1568, %v1680
      %v1682 = vpop.f32.mrb[0].mxu0
      %v1683 = vadd.f32 %v1570, %v1682
      %v1684 = vpop.f32.mrb[0].mxu0
      %v1685 = vadd.f32 %v1572, %v1684
      %v1686 = vpop.f32.mrb[0].mxu0
      %v1687 = vadd.f32 %v1574, %v1686
      %1688 = vmatprep.mubr.bf16.mxu0 %v1112
      %1689 = vmatmul.mubr.bf16.gmra.mrb[0].mxu0 %v1111
      %v1690 = vpop.f32.mrb[0].mxu0
      %v1691 = vadd.f32 %v1578, %v1690
      %v1692 = vpop.f32.mrb[0].mxu0
      %v1693 = vadd.f32 %v1580, %v1692
      %v1694 = vpop.f32.mrb[0].mxu0
      %v1695 = vadd.f32 %v1582, %v1694
      %v1696 = vpop.f32.mrb[0].mxu0
      %v1697 = vadd.f32 %v1584, %v1696
      %1698 = vmatprep.mubr.bf16.mxu0 %v1116
      %1699 = vmatmul.mubr.bf16.gmra.mrb[0].mxu0 %v1115
      %v1700 = vpop.f32.mrb[0].mxu0
      %v1701 = vadd.f32 %v1588, %v1700
      %v1702 = vpop.f32.mrb[0].mxu0
      %v1703 = vadd.f32 %v1590, %v1702
      %v1704 = vpop.f32.mrb[0].mxu0
      %v1705 = vadd.f32 %v1592, %v1704
      %v1706 = vpop.f32.mrb[0].mxu0
      %v1707 = vadd.f32 %v1594, %v1706
      %1708 = vmatprep.mubr.bf16.mxu0 %v1120
      %1709 = vmatmul.mubr.bf16.gmra.mrb[0].mxu0 %v1119
      %v1710 = vpop.f32.mrb[0].mxu0
      %v1711 = vadd.f32 %v1598, %v1710
      %v1712 = vpop.f32.mrb[0].mxu0
      %v1713 = vadd.f32 %v1600, %v1712
      %v1714 = vpop.f32.mrb[0].mxu0
      %v1715 = vadd.f32 %v1602, %v1714
      %v1716 = vpop.f32.mrb[0].mxu0
      %v1717 = vadd.f32 %v1604, %v1716
      %1718 = vmatprep.mubr.bf16.mxu0 %v1124
      %1719 = vmatmul.mubr.bf16.gmra.mrb[0].mxu0 %v1123
      %v1720 = vpop.f32.mrb[0].mxu0
      %v1721 = vadd.f32 %v1608, %v1720
      %v1722 = vpop.f32.mrb[0].mxu0
      %v1723 = vadd.f32 %v1610, %v1722
      %v1724 = vpop.f32.mrb[0].mxu0
      %v1725 = vadd.f32 %v1612, %v1724
      %v1726 = vpop.f32.mrb[0].mxu0
      %v1727 = vadd.f32 %v1614, %v1726
      %1728 = vmatprep.mubr.bf16.mxu0 %v1128
      %1729 = vmatmul.mubr.bf16.gmra.mrb[0].mxu0 %v1127
      %v1730 = vpop.f32.mrb[0].mxu0
      %v1731 = vadd.f32 %v1618, %v1730
      %v1732 = vpop.f32.mrb[0].mxu0
      %v1733 = vadd.f32 %v1620, %v1732
      %v1734 = vpop.f32.mrb[0].mxu0
      %v1735 = vadd.f32 %v1622, %v1734
      %v1736 = vpop.f32.mrb[0].mxu0
      %v1737 = vadd.f32 %v1624, %v1736
      %1738 = vmatprep.mubr.bf16.mxu0 %v1132
      %1739 = vmatmul.mubr.bf16.gmra.mrb[0].mxu0 %v1131
      %v1740 = vpop.f32.mrb[0].mxu0
      %v1741 = vadd.f32 %v1628, %v1740
      %v1742 = vpop.f32.mrb[0].mxu0
      %v1743 = vadd.f32 %v1630, %v1742
      %v1744 = vpop.f32.mrb[0].mxu0
      %v1745 = vadd.f32 %v1632, %v1744
      %v1746 = vpop.f32.mrb[0].mxu0
      %v1747 = vadd.f32 %v1634, %v1746
      %1748 = vmatprep.mubr.bf16.mxu0 %v1136
      %1749 = vmatmul.mubr.bf16.gmra.mrb[0].mxu0 %v1135
      %v1750 = vpop.f32.mrb[0].mxu0
      %v1751 = vadd.f32 %v1638, %v1750
      %v1752 = vpop.f32.mrb[0].mxu0
      %v1753 = vadd.f32 %v1640, %v1752
      %v1754 = vpop.f32.mrb[0].mxu0
      %v1755 = vadd.f32 %v1642, %v1754
      %v1756 = vpop.f32.mrb[0].mxu0
      %v1757 = vadd.f32 %v1644, %v1756
      %1758 = vdwg.mxu0
      %v1759 = vmax.f32 %v1681, 0.0
      %v1760 = vmax.f32 %v1683, 0.0
      %v1761 = vmax.f32 %v1685, 0.0
      %v1762 = vmax.f32 %v1687, 0.0
      %v1763 = vmax.f32 %v1691, 0.0
      %v1764 = vmax.f32 %v1693, 0.0
      %v1765 = vmax.f32 %v1695, 0.0
      %v1766 = vmax.f32 %v1697, 0.0
      %v1767 = vmax.f32 %v1701, 0.0
      %v1768 = vmax.f32 %v1703, 0.0
      %v1769 = vmax.f32 %v1705, 0.0
      %v1770 = vmax.f32 %v1707, 0.0
      %v1771 = vmax.f32 %v1711, 0.0
      %v1772 = vmax.f32 %v1713, 0.0
      %v1773 = vmax.f32 %v1715, 0.0
      %v1774 = vmax.f32 %v1717, 0.0
      %v1775 = vmax.f32 %v1721, 0.0
      %v1776 = vmax.f32 %v1723, 0.0
      %v1777 = vmax.f32 %v1725, 0.0
      %v1778 = vmax.f32 %v1727, 0.0
      %v1779 = vmax.f32 %v1731, 0.0
      %v1780 = vmax.f32 %v1733, 0.0
      %v1781 = vmax.f32 %v1735, 0.0
      %v1782 = vmax.f32 %v1737, 0.0
      %v1783 = vmax.f32 %v1741, 0.0
      %v1784 = vmax.f32 %v1743, 0.0
      %v1785 = vmax.f32 %v1745, 0.0
      %v1786 = vmax.f32 %v1747, 0.0
      %v1787 = vmax.f32 %v1751, 0.0
      %v1788 = vmax.f32 %v1753, 0.0
      %v1789 = vmax.f32 %v1755, 0.0
      %v1790 = vmax.f32 %v1757, 0.0
      %v1791 = vpack.c.bf16 %v1761, %v1759
      %v1792 = vpack.c.bf16 %v1762, %v1760
      %v1793 = vpack.c.bf16 %v1765, %v1763
      %v1794 = vpack.c.bf16 %v1766, %v1764
      %v1795 = vpack.c.bf16 %v1769, %v1767
      %v1796 = vpack.c.bf16 %v1770, %v1768
      %v1797 = vpack.c.bf16 %v1773, %v1771
      %v1798 = vpack.c.bf16 %v1774, %v1772
      %v1799 = vpack.c.bf16 %v1777, %v1775
      %v1800 = vpack.c.bf16 %v1778, %v1776
      %v1801 = vpack.c.bf16 %v1781, %v1779
      %v1802 = vpack.c.bf16 %v1782, %v1780
      %v1803 = vpack.c.bf16 %v1785, %v1783
      %v1804 = vpack.c.bf16 %v1786, %v1784
      %v1805 = vpack.c.bf16 %v1789, %v1787
      %v1806 = vpack.c.bf16 %v1790, %v1788
      %v1807 = vld [vmem:[%s7] sm:$0xf]
      %v1808 = vld [vmem:[%s7 + $0x4] sm:$0xf]
      %v1809 = vld [vmem:[%s7 + $0x8] sm:$0xf]
      %v1810 = vld [vmem:[%s7 + $0xc] sm:$0xf]
      %v1811 = vld [vmem:[%s7 + $0x10] sm:$0xf]
      %v1812 = vld [vmem:[%s7 + $0x14] sm:$0xf]
      %v1813 = vld [vmem:[%s7 + $0x18] sm:$0xf]
      %v1814 = vld [vmem:[%s7 + $0x1c] sm:$0xf]
      %v1815 = vld [vmem:[%s7 + $0x20] sm:$0xf]
      %v1816 = vld [vmem:[%s7 + $0x24] sm:$0xf]
      %v1817 = vld [vmem:[%s7 + $0x28] sm:$0xf]
      %v1818 = vld [vmem:[%s7 + $0x2c] sm:$0xf]
      %v1819 = vld [vmem:[%s7 + $0x30] sm:$0xf]
      %v1820 = vld [vmem:[%s7 + $0x34] sm:$0xf]
      %v1821 = vld [vmem:[%s7 + $0x38] sm:$0xf]
      %v1822 = vld [vmem:[%s7 + $0x3c] sm:$0xf]
      %v1823 = vld [vmem:[%s7 + $0x40] sm:$0xf]
      %v1824 = vld [vmem:[%s7 + $0x44] sm:$0xf]
      %v1825 = vld [vmem:[%s7 + $0x48] sm:$0xf]
      %v1826 = vld [vmem:[%s7 + $0x4c] sm:$0xf]
      %v1827 = vld [vmem:[%s7 + $0x50] sm:$0xf]
      %v1828 = vld [vmem:[%s7 + $0x54] sm:$0xf]
      %v1829 = vld [vmem:[%s7 + $0x58] sm:$0xf]
      %v1830 = vld [vmem:[%s7 + $0x5c] sm:$0xf]
      %v1831 = vld [vmem:[%s7 + $0x60] sm:$0xf]
      %v1832 = vld [vmem:[%s7 + $0x64] sm:$0xf]
      %v1833 = vld [vmem:[%s7 + $0x68] sm:$0xf]
      %v1834 = vld [vmem:[%s7 + $0x6c] sm:$0xf]
      %v1835 = vld [vmem:[%s7 + $0x70] sm:$0xf]
      %v1836 = vld [vmem:[%s7 + $0x74] sm:$0xf]
      %v1837 = vld [vmem:[%s7 + $0x78] sm:$0xf]
      %v1838 = vld [vmem:[%s7 + $0x7c] sm:$0xf]
      %v1839 = vld [vmem:[%s8] sm:$0x1]
      %v1841 = vlaneseq
      %v1842 = vshrl.u32 %v1841, 7
      %v1843 = vsub.s32 0, %v1842
      %v1844 = vrot.slane %v1839, %v1843
      %v1878 = vunpack.c.l.b16 %v1807
      %v1879 = vunpack.c.l.b16 %v1808
      %v1880 = vunpack.c.l.b16 %v1809
      %v1881 = vunpack.c.l.b16 %v1810
      %v1882 = vunpack.c.l.b16 %v1811
      %v1883 = vunpack.c.l.b16 %v1812
      %v1884 = vunpack.c.l.b16 %v1813
      %v1885 = vunpack.c.l.b16 %v1814
      %v1886 = vunpack.c.l.b16 %v1815
      %v1887 = vunpack.c.l.b16 %v1816
      %v1888 = vunpack.c.l.b16 %v1817
      %v1889 = vunpack.c.l.b16 %v1818
      %v1890 = vunpack.c.l.b16 %v1819
      %v1891 = vunpack.c.l.b16 %v1820
      %v1892 = vunpack.c.l.b16 %v1821
      %v1893 = vunpack.c.l.b16 %v1822
      %v1894 = vunpack.c.l.b16 %v1823
      %v1895 = vunpack.c.l.b16 %v1824
      %v1896 = vunpack.c.l.b16 %v1825
      %v1897 = vunpack.c.l.b16 %v1826
      %v1898 = vunpack.c.l.b16 %v1827
      %v1899 = vunpack.c.l.b16 %v1828
      %v1900 = vunpack.c.l.b16 %v1829
      %v1901 = vunpack.c.l.b16 %v1830
      %v1902 = vunpack.c.l.b16 %v1831
      %v1903 = vunpack.c.l.b16 %v1832
      %v1904 = vunpack.c.l.b16 %v1833
      %v1905 = vunpack.c.l.b16 %v1834
      %v1906 = vunpack.c.l.b16 %v1835
      %v1907 = vunpack.c.l.b16 %v1836
      %v1908 = vunpack.c.l.b16 %v1837
      %v1909 = vunpack.c.l.b16 %v1838
      %v1910 = vpack.c.b16 %v1879, %v1878
      %v1911 = vpack.c.b16 %v1881, %v1880
      %v1912 = vpack.c.b16 %v1883, %v1882
      %v1913 = vpack.c.b16 %v1885, %v1884
      %v1914 = vpack.c.b16 %v1887, %v1886
      %v1915 = vpack.c.b16 %v1889, %v1888
      %v1916 = vpack.c.b16 %v1891, %v1890
      %v1917 = vpack.c.b16 %v1893, %v1892
      %v1918 = vpack.c.b16 %v1895, %v1894
      %v1919 = vpack.c.b16 %v1897, %v1896
      %v1920 = vpack.c.b16 %v1899, %v1898
      %v1921 = vpack.c.b16 %v1901, %v1900
      %v1922 = vpack.c.b16 %v1903, %v1902
      %v1923 = vpack.c.b16 %v1905, %v1904
      %v1924 = vpack.c.b16 %v1907, %v1906
      %v1925 = vpack.c.b16 %v1909, %v1908
      %1942 = vmatprep.subr.bf16.mxu0 0
      %1943 = vmatpush1.bf16.msra.mxu0 %v1910
      %1944 = vmatprep.subr.bf16.mxu0 0
      %1945 = vmatpush1.bf16.msra.mxu0 %v1911
      %1946 = vmatprep.subr.bf16.mxu0 0
      %1947 = vmatpush1.bf16.msra.mxu0 %v1912
      %1948 = vmatprep.subr.bf16.mxu0 0
      %1949 = vmatpush1.bf16.msra.mxu0 %v1913
      %1950 = vmatprep.subr.bf16.mxu0 0
      %1951 = vmatpush1.bf16.msra.mxu0 %v1914
      %1952 = vmatprep.subr.bf16.mxu0 0
      %1953 = vmatpush1.bf16.msra.mxu0 %v1915
      %1954 = vmatprep.subr.bf16.mxu0 0
      %1955 = vmatpush1.bf16.msra.mxu0 %v1916
      %1956 = vmatprep.subr.bf16.mxu0 0
      %1957 = vmatpush1.bf16.msra.mxu0 %v1917
      %1958 = vmatprep.subr.bf16.mxu0 0
      %1959 = vmatpush1.bf16.msra.mxu0 %v1918
      %1960 = vmatprep.subr.bf16.mxu0 0
      %1961 = vmatpush1.bf16.msra.mxu0 %v1919
      %1962 = vmatprep.subr.bf16.mxu0 0
      %1963 = vmatpush1.bf16.msra.mxu0 %v1920
      %1964 = vmatprep.subr.bf16.mxu0 0
      %1965 = vmatpush1.bf16.msra.mxu0 %v1921
      %1966 = vmatprep.subr.bf16.mxu0 0
      %1967 = vmatpush1.bf16.msra.mxu0 %v1922
      %1968 = vmatprep.subr.bf16.mxu0 0
      %1969 = vmatpush1.bf16.msra.mxu0 %v1923
      %1970 = vmatprep.subr.bf16.mxu0 0
      %1971 = vmatpush1.bf16.msra.mxu0 %v1924
      %1972 = vmatprep.subr.bf16.mxu0 0
      %1973 = vmatpush1.bf16.msra.mxu0 %v1925
      %1974 = vmatprep.mubr.bf16.mxu0 %v1792
      %1975 = vmatmul.mubr.bf16.gmra.mrb[0].mxu0 %v1791
      %v1976 = vpop.f32.mrb[0].mxu0
      %v1977 = vadd.f32 %v1844, %v1976
      %v1978 = vpop.f32.mrb[0].mxu0
      %v1979 = vpop.f32.mrb[0].mxu0
      %v1980 = vadd.f32 %v1844, %v1979
      %v1981 = vpop.f32.mrb[0].mxu0
      %1982 = vmatprep.mubr.bf16.mxu0 %v1794
      %1983 = vmatmul.mubr.bf16.gmra.mrb[0].mxu0 %v1793
      %v1984 = vpop.f32.mrb[0].mxu0
      %v1985 = vadd.f32 %v1844, %v1984
      %v1986 = vpop.f32.mrb[0].mxu0
      %v1987 = vpop.f32.mrb[0].mxu0
      %v1988 = vadd.f32 %v1844, %v1987
      %v1989 = vpop.f32.mrb[0].mxu0
      %1990 = vmatprep.mubr.bf16.mxu0 %v1796
      %1991 = vmatmul.mubr.bf16.gmra.mrb[0].mxu0 %v1795
      %v1992 = vpop.f32.mrb[0].mxu0
      %v1993 = vadd.f32 %v1844, %v1992
      %v1994 = vpop.f32.mrb[0].mxu0
      %v1995 = vpop.f32.mrb[0].mxu0
      %v1996 = vadd.f32 %v1844, %v1995
      %v1997 = vpop.f32.mrb[0].mxu0
      %1998 = vmatprep.mubr.bf16.mxu0 %v1798
      %1999 = vmatmul.mubr.bf16.gmra.mrb[0].mxu0 %v1797
      %v2000 = vpop.f32.mrb[0].mxu0
      %v2001 = vadd.f32 %v1844, %v2000
      %v2002 = vpop.f32.mrb[0].mxu0
      %v2003 = vpop.f32.mrb[0].mxu0
      %v2004 = vadd.f32 %v1844, %v2003
      %v2005 = vpop.f32.mrb[0].mxu0
      %2006 = vmatprep.mubr.bf16.mxu0 %v1800
      %2007 = vmatmul.mubr.bf16.gmra.mrb[0].mxu0 %v1799
      %v2008 = vpop.f32.mrb[0].mxu0
      %v2009 = vadd.f32 %v1844, %v2008
      %v2010 = vpop.f32.mrb[0].mxu0
      %v2011 = vpop.f32.mrb[0].mxu0
      %v2012 = vadd.f32 %v1844, %v2011
      %v2013 = vpop.f32.mrb[0].mxu0
      %2014 = vmatprep.mubr.bf16.mxu0 %v1802
      %2015 = vmatmul.mubr.bf16.gmra.mrb[0].mxu0 %v1801
      %v2016 = vpop.f32.mrb[0].mxu0
      %v2017 = vadd.f32 %v1844, %v2016
      %v2018 = vpop.f32.mrb[0].mxu0
      %v2019 = vpop.f32.mrb[0].mxu0
      %v2020 = vadd.f32 %v1844, %v2019
      %v2021 = vpop.f32.mrb[0].mxu0
      %2022 = vmatprep.mubr.bf16.mxu0 %v1804
      %2023 = vmatmul.mubr.bf16.gmra.mrb[0].mxu0 %v1803
      %v2024 = vpop.f32.mrb[0].mxu0
      %v2025 = vadd.f32 %v1844, %v2024
      %v2026 = vpop.f32.mrb[0].mxu0
      %v2027 = vpop.f32.mrb[0].mxu0
      %v2028 = vadd.f32 %v1844, %v2027
      %v2029 = vpop.f32.mrb[0].mxu0
      %2030 = vmatprep.mubr.bf16.mxu0 %v1806
      %2031 = vmatmul.mubr.bf16.gmra.mrb[0].mxu0 %v1805
      %v2032 = vpop.f32.mrb[0].mxu0
      %v2033 = vadd.f32 %v1844, %v2032
      %v2034 = vpop.f32.mrb[0].mxu0
      %v2035 = vpop.f32.mrb[0].mxu0
      %v2036 = vadd.f32 %v1844, %v2035
      %v2037 = vpop.f32.mrb[0].mxu0
      %2038 = vdwg.mxu0
      %v2039 = vmax.f32 %v1977, 0.0
      %v2040 = vmax.f32 %v1980, 0.0
      %v2041 = vmax.f32 %v1985, 0.0
      %v2042 = vmax.f32 %v1988, 0.0
      %v2043 = vmax.f32 %v1993, 0.0
      %v2044 = vmax.f32 %v1996, 0.0
      %v2045 = vmax.f32 %v2001, 0.0
      %v2046 = vmax.f32 %v2004, 0.0
      %v2047 = vmax.f32 %v2009, 0.0
      %v2048 = vmax.f32 %v2012, 0.0
      %v2049 = vmax.f32 %v2017, 0.0
      %v2050 = vmax.f32 %v2020, 0.0
      %v2051 = vmax.f32 %v2025, 0.0
      %v2052 = vmax.f32 %v2028, 0.0
      %v2053 = vmax.f32 %v2033, 0.0
      %v2054 = vmax.f32 %v2036, 0.0
      %v2055 = vpack.c.bf16 %v2040, %v2039
      %v2056 = vpack.c.bf16 %v2042, %v2041
      %v2057 = vpack.c.bf16 %v2044, %v2043
      %v2058 = vpack.c.bf16 %v2046, %v2045
      %v2059 = vpack.c.bf16 %v2048, %v2047
      %v2060 = vpack.c.bf16 %v2050, %v2049
      %v2061 = vpack.c.bf16 %v2052, %v2051
      %v2062 = vpack.c.bf16 %v2054, %v2053
      %v2063 = vld [vmem:[%s9] sm:$0xf]
      %v2064 = vld [vmem:[%s10] sm:$0xff]
      %2066 = vset.pattern.permute.xlu0 0
      %2067 = vperm.xlu0 %2066, %v2064
      %v2068 = vpop.permute.xlu0 %2067
      %2070 = vmatprep.subr.bf16.mxu0 0
      %2071 = vmatpush1.bf16.xpose.msra.mxu0 %v2055
      %2072 = vmatprep.subr.bf16.mxu0 0
      %2073 = vmatpush1.bf16.xpose.msra.mxu0 %v2056
      %2074 = vmatprep.subr.bf16.mxu0 0
      %2075 = vmatpush1.bf16.xpose.msra.mxu0 %v2057
      %2076 = vmatprep.subr.bf16.mxu0 0
      %2077 = vmatpush1.bf16.xpose.msra.mxu0 %v2058
      %2078 = vmatprep.subr.bf16.mxu0 0
      %2079 = vmatpush1.bf16.xpose.msra.mxu0 %v2059
      %2080 = vmatprep.subr.bf16.mxu0 0
      %2081 = vmatpush1.bf16.xpose.msra.mxu0 %v2060
      %2082 = vmatprep.subr.bf16.mxu0 0
      %2083 = vmatpush1.bf16.xpose.msra.mxu0 %v2061
      %2084 = vmatprep.subr.bf16.mxu0 0
      %2085 = vmatpush1.bf16.xpose.msra.mxu0 %v2062
      %2086 = vmatprep.subr.bf16.mxu0 0
      %2087 = vmatpush1.bf16.xpose.msra.mxu0 0
      %2088 = vmatprep.subr.bf16.mxu0 0
      %2089 = vmatpush1.bf16.xpose.msra.mxu0 0
      %2090 = vmatprep.subr.bf16.mxu0 0
      %2091 = vmatpush1.bf16.xpose.msra.mxu0 0
      %2092 = vmatprep.subr.bf16.mxu0 0
      %2093 = vmatpush1.bf16.xpose.msra.mxu0 0
      %2094 = vmatprep.subr.bf16.mxu0 0
      %2095 = vmatpush1.bf16.xpose.msra.mxu0 0
      %2096 = vmatprep.subr.bf16.mxu0 0
      %2097 = vmatpush1.bf16.xpose.msra.mxu0 0
      %2098 = vmatprep.subr.bf16.mxu0 0
      %2099 = vmatpush1.bf16.xpose.msra.mxu0 0
      %2100 = vmatprep.subr.bf16.mxu0 0
      %2101 = vmatpush1.bf16.xpose.msra.mxu0 0
      %2102 = vmatprep.mubr.bf16.mxu0 0
      %2103 = vmatmul.mubr.bf16.gmra.mrb[0].mxu0 %v2063
      %v2104 = vpop.f32.mrb[0].mxu0
      %v2105 = vadd.f32 %v2068, %v2104
      %v2106 = vpop.f32.mrb[0].mxu0
      %v2107 = vpop.f32.mrb[0].mxu0
      %v2108 = vpop.f32.mrb[0].mxu0
      %2109 = vdwg.mxu0
      %v2110 = vrot.slane %v2105, 4
      %v2111 = vmax.f32 %v2105, %v2110
      %v2112 = vrot.slane %v2111, 2
      %v2113 = vmax.f32 %v2111, %v2112
      %v2114 = vrot.slane %v2113, 1
      %v2115 = vmax.f32 %v2113, %v2114
      %v2116 = vsub.f32 %v2105, %v2115
      %v2117 = vmul.f32 %v2116, 1.442695
      %v2118 = vpow.pop %v2117
      %v2119 = vrot.slane %v2118, 4
      %v2120 = vadd.f32 %v2118, %v2119
      %v2121 = vrot.slane %v2120, 2
      %v2122 = vadd.f32 %v2120, %v2121
      %v2123 = vrot.slane %v2122, 1
      %v2124 = vadd.f32 %v2122, %v2123
      %v2125 = vlog2.pop %v2124
      %v2126 = vmul.f32 %v2125, 0.6931472
      %v2127 = vsub.f32 %v2116, %v2126
      %2128 = vst [vmem:[%s456] sm:$0xff] %v2127
      %p2129 = scmp.lt.s32.totalorder %s26, 1
      %s2130 = scalar_select %p2129, %s26, 1
      %p2131 = scmp.lt.s32.totalorder %s27, 1
      %s2132 = scalar_select %p2131, %s27, 1
      %s2133 = smul.addr %s2130, 2
      %s2134 = sadd.s32 %s2132, %s2133
      %s2135 = smul.addr %s2134, 8
      %s2136 = scalar_lea.vmem %s11, %s2135
      // Predicated region
      $region65: #{_lambda_.5} parent=63 // pred_check
        %p2137 = pneg %p302
      $region66: #{_lambda_.5} parent=63 // pred_check_branch
        %2139 = sbr.rel (%p2137) target = $region68
      $region67: #{_lambda_.5} parent=63 // pred_region
        _
      $region68: #{_lambda_.5} parent=63 // pred_fallthru
        _
    $region64: #{_lambda_.5} parent=5 // pred_fallthru
      _
    %p2140 = scmp.le.s32.totalorder 2, %s17
    // Predicated region
    $region69: #{_lambda_.5} parent=5 // pred_check
      %p2141 = pneg %p2140
    $region70: #{_lambda_.5} parent=5 // pred_check_branch
      %2143 = sbr.rel (%p2141) target = $region72
    $region71: #{_lambda_.5} parent=5 // pred_region
      %s2144 = ssub.s32 %s17, 2
      // Predicated region
      $region73: #{_lambda_.5} parent=71 // pred_check
        %p2145 = pneg %p308
      $region74: #{_lambda_.5} parent=71 // pred_check_branch
        %2147 = sbr.rel (%p2145) target = $region76
      $region75: #{_lambda_.5} parent=71 // pred_region
        %p2148 = scmp.lt.s32.totalorder %s28, 1
        %s2149 = scalar_select %p2148, %s28, 1
        %p2150 = scmp.lt.s32.totalorder %s29, 1
        %s2151 = scalar_select %p2150, %s29, 1
        %s2152 = smul.addr %s2149, 2
        %s2153 = sadd.s32 %s2151, %s2152
        %s2154 = smul.addr %s2153, 8
        %s2155 = scalar_lea.vmem %s11, %s2154
      $region76: #{_lambda_.5} parent=71 // pred_fallthru
        _
    $region72: #{_lambda_.5} parent=5 // pred_fallthru
      _
  $region6: #{_lambda_.5} parent=0 // loop_footer
    %s21 = sadd.s32 1, %s17
  $region7: #{_lambda_.5} parent=0 // loop_footer_branch
    %16 = sbr.rel target = $region3
  $region8: #{_lambda_.5} parent=0 // loop_exit
    _

</llo_original>
